<compile_context>
chip_gen: v5e
topology: v5e:2x2
jax: 0.10.0
libtpu: 0.0.40
codegen_flags: <defaults>
</compile_context>

<pallas_src>
import functools

import jax
import jax.numpy as jnp
from jax.experimental import pallas as pl
from jax.experimental.pallas import tpu as pltpu


def _round_up(x, m):
    return (x + m - 1) // m * m


# ---------------------------------------------------------------------------
# Fused kernel (built per (num_layers, T, B_pad, H_pad, Din0) configuration)
# ---------------------------------------------------------------------------
def _build_fused_kernel(num_layers, T, Bp, Hp, Din0):
    """Kernel refs (in order):
      x_ref                      : (T, Bp, Din0) f32  time-major padded input
      [wih_l, whh_l, b_l] * L    : (Din_l, 4Hp) bf16, (Hp, 4Hp) bf16, (1, 4Hp) f32
      fc_w_ref, fc_b_ref         : (Hp, Op) bf16, (1, Op) f32
      out_ref                    : (Bp, Op) f32
      gx_scr                     : (T, Bp, 4Hp) f32 VMEM  hoisted projections
      hseq_scr                   : (T, Bp, Hp) bf16 VMEM  layer-output sequence
    """
    G = 4 * Hp

    def kernel(*refs):
        x_ref = refs[0]
        layer_refs = refs[1:1 + 3 * num_layers]
        fc_w_ref = refs[1 + 3 * num_layers]
        fc_b_ref = refs[2 + 3 * num_layers]
        out_ref = refs[3 + 3 * num_layers]
        gx_scr = refs[4 + 3 * num_layers]
        hseq_scr = refs[5 + 3 * num_layers]

        for layer in range(num_layers):
            wih = layer_refs[3 * layer][...]          # (Din_l, 4Hp) bf16
            whh = layer_refs[3 * layer + 1][...]      # (Hp, 4Hp)   bf16
            bias = layer_refs[3 * layer + 2][...]     # (1, 4Hp)    f32

            # Input sequence for this layer: x for layer 0, previous layer's
            # hidden states (bf16, resident in VMEM scratch) otherwise.
            if layer == 0:
                seq2 = x_ref[...].reshape(T * Bp, Din0).astype(jnp.bfloat16)
            else:
                seq2 = hseq_scr[...].reshape(T * Bp, Hp)

            # Hoisted input projection for ALL time steps: one wide bf16 MXU
            # matmul with f32 accumulation; bias added in f32.
            gx = jnp.dot(seq2, wih, preferred_element_type=jnp.float32) + bias
            gx_scr[...] = gx.reshape(T, Bp, G)

            h = jnp.zeros((Bp, Hp), jnp.float32)
            c = jnp.zeros((Bp, Hp), jnp.float32)
            last = layer == num_layers - 1

            # Recurrence: fully unrolled (T is small and static). Only the
            # small h @ W_hh matmul + gate math remain on the serial path.
            # TODO(synk): for T > ~16 switch to lax.fori_loop(..., unroll=4)
            # with h/c carried via small VMEM scratch to bound instruction
            # count and vreg live ranges.
            for t in range(T):
                g = gx_scr[t] + jnp.dot(
                    h.astype(jnp.bfloat16), whh,
                    preferred_element_type=jnp.float32)           # (Bp, 4Hp)
                # PyTorch gate order i, f, g, o; each gate is its own
                # 128-lane-aligned block, so slices are free tile selections.
                i_g = jax.nn.sigmoid(g[:, 0 * Hp:1 * Hp])
                f_g = jax.nn.sigmoid(g[:, 1 * Hp:2 * Hp])
                g_g = jnp.tanh(g[:, 2 * Hp:3 * Hp])
                o_g = jax.nn.sigmoid(g[:, 3 * Hp:4 * Hp])
                c = f_g * c + i_g * g_g
                h = o_g * jnp.tanh(c)
                if not last:
                    # Intermediate sequence stays VMEM-resident (bf16: it is
                    # only ever a matmul operand for the next layer).
                    hseq_scr[t] = h.astype(jnp.bfloat16)

            if last:
                # Fused fc head on the final hidden state; the only HBM write.
                out_ref[...] = (
                    jnp.dot(h.astype(jnp.bfloat16), fc_w_ref[...],
                            preferred_element_type=jnp.float32)
                    + fc_b_ref[...]
                )

    return kernel


# ---------------------------------------------------------------------------
# One-time parameter preparation (outside the jitted forward)
# ---------------------------------------------------------------------------
def prepare_params(params):
    """Transpose to (in, out), pad each gate's H columns to a 128-lane block,
    pad contraction rows to Hp, fuse b_ih + b_hh, cast matmul weights to bf16
    (biases stay f32). Padded weight rows/cols are zero so padded hidden lanes
    stay exactly 0 through the recurrence."""
    H = params["lstm"][0]["w_hh"].shape[1]
    Hp = _round_up(H, 128)
    O = params["fc_w"].shape[0]
    Op = _round_up(O, 128)

    def pad_gate_cols(w_t, rows_p):
        # w_t: (rows, 4H) with PyTorch gate blocks [i|f|g|o] along columns.
        rows = w_t.shape[0]
        w4 = w_t.reshape(rows, 4, H)
        out = jnp.zeros((rows_p, 4, Hp), jnp.float32).at[:rows, :, :H].set(w4)
        return out.reshape(rows_p, 4 * Hp)

    prepped = {"lstm": []}
    for layer_i, layer in enumerate(params["lstm"]):
        w_ih = jnp.asarray(layer["w_ih"], jnp.float32)   # (4H, Din)
        w_hh = jnp.asarray(layer["w_hh"], jnp.float32)   # (4H, H)
        din = w_ih.shape[1]
        din_p = din if layer_i == 0 else Hp
        wih_p = pad_gate_cols(w_ih.T, din_p).astype(jnp.bfloat16)
        whh_p = pad_gate_cols(w_hh.T, Hp).astype(jnp.bfloat16)
        b = (layer["b_ih"] + layer["b_hh"]).astype(jnp.float32).reshape(4, H)
        b_p = jnp.zeros((4, Hp), jnp.float32).at[:, :H].set(b).reshape(1, 4 * Hp)
        prepped["lstm"].append({"w_ih": wih_p, "w_hh": whh_p, "b": b_p})

    fc_w = jnp.asarray(params["fc_w"], jnp.float32)      # (O, H)
    prepped["fc_w"] = (jnp.zeros((Hp, Op), jnp.float32)
                       .at[:H, :O].set(fc_w.T)).astype(jnp.bfloat16)
    prepped["fc_b"] = (jnp.zeros((1, Op), jnp.float32)
                       .at[0, :O].set(params["fc_b"].astype(jnp.float32)))
    return prepped


# ---------------------------------------------------------------------------
# Wrapper: whole forward pass == one pallas_call
# ---------------------------------------------------------------------------
@functools.partial(jax.jit, static_argnames=("out_features",))
def lstm_model_forward(x_btd, prepped, *, out_features=2):
    """Equivalent of LSTM.forward: stacked LSTM (zero init state) + fc on the
    last time step. x_btd: (B, T, input_size), batch-first like PyTorch."""
    B, T, Din = x_btd.shape
    num_layers = len(prepped["lstm"])
    Hp = prepped["lstm"][0]["w_hh"].shape[0]
    G = 4 * Hp
    Op = prepped["fc_w"].shape[1]
    Bp = _round_up(B, 8)

    # Time-major, batch padded to a full 8-sublane tile so per-step scratch
    # accesses are pure leading-axis tile selections (no masked partials).
    x_tbd = jnp.transpose(x_btd, (1, 0, 2)).astype(jnp.float32)
    x_pad = jnp.zeros((T, Bp, Din), jnp.float32).at[:, :B, :].set(x_tbd)

    inputs = [x_pad]
    in_specs = [pl.BlockSpec((T, Bp, Din), lambda: (0, 0, 0))]
    for layer in prepped["lstm"]:
        d_in = layer["w_ih"].shape[0]
        inputs += [layer["w_ih"], layer["w_hh"], layer["b"]]
        in_specs += [
            pl.BlockSpec((d_in, G), lambda: (0, 0)),
            pl.BlockSpec((Hp, G), lambda: (0, 0)),
            pl.BlockSpec((1, G), lambda: (0, 0)),
        ]
    inputs += [prepped["fc_w"], prepped["fc_b"]]
    in_specs += [pl.BlockSpec((Hp, Op), lambda: (0, 0)),
                 pl.BlockSpec((1, Op), lambda: (0, 0))]

    scratch_shapes = [
        pltpu.VMEM((T, Bp, G), jnp.float32),     # hoisted gate projections
        pltpu.VMEM((T, Bp, Hp), jnp.bfloat16),   # intermediate layer outputs
    ]

    # Size scoped VMEM against the actual footprint (+ headroom), instead of
    # relying on the 16/32 MiB defaults.
    vmem_bytes = sum(int(a.size) * a.dtype.itemsize for a in inputs)
    vmem_bytes += Bp * Op * 4 + T * Bp * G * 4 + T * Bp * Hp * 2
    vmem_limit = int(min(2 * vmem_bytes + (4 << 20), 96 << 20))

    kernel = _build_fused_kernel(num_layers, T, Bp, Hp, Din)

    out_pad = pl.pallas_call(
        kernel,
        out_shape=jax.ShapeDtypeStruct((Bp, Op), jnp.float32),
        in_specs=in_specs,
        out_specs=pl.BlockSpec((Bp, Op), lambda: (0, 0)),
        scratch_shapes=scratch_shapes,
        compiler_params=pltpu.CompilerParams(vmem_limit_bytes=vmem_limit),
    )(*inputs)
    # TODO(synk): for large H / num_layers, stream per-layer weights from HBM
    # (memory_space=pl.ANY + make_async_copy double-buffering), pin W_hh in
    # MXU staging registers (pltpu.matmul_push_rhs) across the T loop, and add
    # a batch-parallel grid axis to use v7x's second TensorCore.
    return out_pad[:B, :out_features]


# ---------------------------------------------------------------------------
# Pure-JAX reference (for correctness check only)
# ---------------------------------------------------------------------------
def lstm_model_reference(x_btd, params):
    B = x_btd.shape[0]
    h_all = jnp.transpose(x_btd, (1, 0, 2)).astype(jnp.float32)  # (T, B, D)
    for layer in params["lstm"]:
        H = layer["w_hh"].shape[1]
        wih_t = layer["w_ih"].T
        whh_t = layer["w_hh"].T
        b = layer["b_ih"] + layer["b_hh"]

        def step(carry, x_t):
            h, c = carry
            g = x_t @ wih_t + h @ whh_t + b
            i = jax.nn.sigmoid(g[:, 0 * H:1 * H])
            f = jax.nn.sigmoid(g[:, 1 * H:2 * H])
            gg = jnp.tanh(g[:, 2 * H:3 * H])
            o = jax.nn.sigmoid(g[:, 3 * H:4 * H])
            c = f * c + i * gg
            h = o * jnp.tanh(c)
            return (h, c), h

        init = (jnp.zeros((B, H), jnp.float32), jnp.zeros((B, H), jnp.float32))
        _, h_all = jax.lax.scan(step, init, h_all)
    return h_all[-1] @ params["fc_w"].T + params["fc_b"]


# ---------------------------------------------------------------------------
# Parameter init (deterministic, matches PyTorch nn.LSTM/nn.Linear shapes)
# ---------------------------------------------------------------------------
def init_params(key, input_size, hidden_size, num_layers):
    params = {"lstm": []}
    bound = 1.0 / jnp.sqrt(hidden_size)
    for layer in range(num_layers):
        d_in = input_size if layer == 0 else hidden_size
        key, k1, k2, k3, k4 = jax.random.split(key, 5)
        params["lstm"].append({
            "w_ih": jax.random.uniform(k1, (4 * hidden_size, d_in),
                                       jnp.float32, -bound, bound),
            "w_hh": jax.random.uniform(k2, (4 * hidden_size, hidden_size),
                                       jnp.float32, -bound, bound),
            "b_ih": jax.random.uniform(k3, (4 * hidden_size,),
                                       jnp.float32, -bound, bound),
            "b_hh": jax.random.uniform(k4, (4 * hidden_size,),
                                       jnp.float32, -bound, bound),
        })
    key, k5, k6 = jax.random.split(key, 3)
    fc_bound = 1.0 / jnp.sqrt(hidden_size)
    params["fc_w"] = jax.random.uniform(k5, (2, hidden_size),
                                        jnp.float32, -fc_bound, fc_bound)
    params["fc_b"] = jax.random.uniform(k6, (2,),
                                        jnp.float32, -fc_bound, fc_bound)
    return params


if __name__ == "__main__":
    input_size = 4
    hidden_size = 32
    num_layers = 2
    batch = 2
    seq = 8

    key = jax.random.PRNGKey(0)
    key, kx, kp = jax.random.split(key, 3)
    x = jax.random.normal(kx, (batch, seq, input_size), jnp.float32)
    params = init_params(kp, input_size, hidden_size, num_layers)

    prepped = prepare_params(params)           # one-time layout prep
    out = lstm_model_forward(x, prepped, out_features=2)
    out = jax.block_until_ready(out)

    ref = lstm_model_reference(x, params)
    assert out.shape == (batch, 2)
    # bf16 MXU operands vs f32 reference -> loosened tolerance.
    assert jnp.allclose(out, ref, atol=2e-2, rtol=2e-2), (out, ref)
    print("KERNEL_OK")
</pallas_src>

<mosaic_0001>
module attributes {stable_mosaic.version = 11 : i64} {
  func.func @kernel(%arg0: memref<8x8x4xf32, #tpu.memory_space<vmem>>, %arg1: memref<4x512xbf16, #tpu.memory_space<vmem>>, %arg2: memref<128x512xbf16, #tpu.memory_space<vmem>>, %arg3: memref<1x512xf32, #tpu.memory_space<vmem>>, %arg4: memref<128x512xbf16, #tpu.memory_space<vmem>>, %arg5: memref<128x512xbf16, #tpu.memory_space<vmem>>, %arg6: memref<1x512xf32, #tpu.memory_space<vmem>>, %arg7: memref<128x128xbf16, #tpu.memory_space<vmem>>, %arg8: memref<1x128xf32, #tpu.memory_space<vmem>>, %arg9: memref<8x128xf32, #tpu.memory_space<vmem>>, %arg10: memref<8x8x512xf32, #tpu.memory_space<vmem>>, %arg11: memref<8x8x128xbf16, #tpu.memory_space<vmem>>) attributes {dimension_semantics = [], scalar_prefetch = 0 : i64, scratch_operands = 2 : i64, tpu.core_type = #tpu.core_type<tc>} {
    %c0 = arith.constant 0 : index
    %c0_0 = arith.constant 0 : index
    %0 = vector.load %arg1[%c0, %c0_0] : memref<4x512xbf16, #tpu.memory_space<vmem>>, vector<4x512xbf16>
    %c0_1 = arith.constant 0 : index
    %c0_2 = arith.constant 0 : index
    %1 = vector.load %arg2[%c0_1, %c0_2] : memref<128x512xbf16, #tpu.memory_space<vmem>>, vector<128x512xbf16>
    %c0_3 = arith.constant 0 : index
    %c0_4 = arith.constant 0 : index
    %2 = vector.load %arg3[%c0_3, %c0_4] : memref<1x512xf32, #tpu.memory_space<vmem>>, vector<1x512xf32>
    %c0_5 = arith.constant 0 : index
    %c0_6 = arith.constant 0 : index
    %c0_7 = arith.constant 0 : index
    %3 = vector.load %arg0[%c0_5, %c0_6, %c0_7] : memref<8x8x4xf32, #tpu.memory_space<vmem>>, vector<8x8x4xf32>
    %4 = vector.shape_cast %3 : vector<8x8x4xf32> to vector<64x4xf32>
    %5 = arith.truncf %4 : vector<64x4xf32> to vector<64x4xbf16>
    %cst = arith.constant dense<0.000000e+00> : vector<64x512xf32>
    %6 = tpu.matmul %5, %0, %cst {dimension_numbers = #tpu.dot_dimension_numbers<[1], [0], [0], [1], [0, 0, 1, 1], [], []>} : vector<64x4xbf16>, vector<4x512xbf16>, vector<64x512xf32> -> vector<64x512xf32>
    %7 = vector.broadcast %2 : vector<1x512xf32> to vector<64x512xf32>
    %8 = arith.addf %6, %7 : vector<64x512xf32>
    %9 = vector.shape_cast %8 : vector<64x512xf32> to vector<8x8x512xf32>
    %c0_8 = arith.constant 0 : index
    %c0_9 = arith.constant 0 : index
    %c0_10 = arith.constant 0 : index
    %10 = vector.load %arg10[%c0_8, %c0_9, %c0_10] : memref<8x8x512xf32, #tpu.memory_space<vmem>>, vector<8x8x512xf32>
    tpu.vector_store %arg10[%c0_8, %c0_9, %c0_10], %9 {strides = array<i32>} : memref<8x8x512xf32, #tpu.memory_space<vmem>>, vector<8x8x512xf32>,
    %cst_11 = arith.constant 0.000000e+00 : f32
    %11 = vector.broadcast %cst_11 : f32 to vector<8x128xf32>
    %cst_12 = arith.constant 0.000000e+00 : f32
    %12 = vector.broadcast %cst_12 : f32 to vector<8x128xf32>
    %c0_13 = arith.constant 0 : index
    %c0_14 = arith.constant 0 : index
    %c0_15 = arith.constant 0 : index
    %13 = vector.load %arg10[%c0_13, %c0_14, %c0_15] : memref<8x8x512xf32, #tpu.memory_space<vmem>>, vector<1x8x512xf32>
    %14 = vector.shape_cast %13 : vector<1x8x512xf32> to vector<8x512xf32>
    %15 = arith.truncf %11 : vector<8x128xf32> to vector<8x128xbf16>
    %cst_16 = arith.constant dense<0.000000e+00> : vector<8x512xf32>
    %16 = tpu.matmul %15, %1, %cst_16 {dimension_numbers = #tpu.dot_dimension_numbers<[1], [0], [0], [1], [0, 0, 1, 1], [], []>} : vector<8x128xbf16>, vector<128x512xbf16>, vector<8x512xf32> -> vector<8x512xf32>
    %17 = arith.addf %14, %16 : vector<8x512xf32>
    %18 = vector.extract_strided_slice %17 {offsets = [0, 0], sizes = [8, 128], strides = [1, 1]} : vector<8x512xf32> to vector<8x128xf32>
    %19 = arith.negf %18 : vector<8x128xf32>
    %20 = math.exp %19 : vector<8x128xf32>
    %cst_17 = arith.constant 1.000000e+00 : f32
    %21 = vector.broadcast %cst_17 : f32 to vector<8x128xf32>
    %22 = arith.addf %21, %20 : vector<8x128xf32>
    %23 = arith.divf %21, %22 : vector<8x128xf32>
    %24 = vector.extract_strided_slice %17 {offsets = [0, 128], sizes = [8, 128], strides = [1, 1]} : vector<8x512xf32> to vector<8x128xf32>
    %25 = arith.negf %24 : vector<8x128xf32>
    %26 = math.exp %25 : vector<8x128xf32>
    %cst_18 = arith.constant 1.000000e+00 : f32
    %27 = vector.broadcast %cst_18 : f32 to vector<8x128xf32>
    %28 = arith.addf %27, %26 : vector<8x128xf32>
    %29 = arith.divf %27, %28 : vector<8x128xf32>
    %30 = vector.extract_strided_slice %17 {offsets = [0, 256], sizes = [8, 128], strides = [1, 1]} : vector<8x512xf32> to vector<8x128xf32>
    %31 = math.tanh %30 : vector<8x128xf32>
    %32 = vector.extract_strided_slice %17 {offsets = [0, 384], sizes = [8, 128], strides = [1, 1]} : vector<8x512xf32> to vector<8x128xf32>
    %33 = arith.negf %32 : vector<8x128xf32>
    %34 = math.exp %33 : vector<8x128xf32>
    %cst_19 = arith.constant 1.000000e+00 : f32
    %35 = vector.broadcast %cst_19 : f32 to vector<8x128xf32>
    %36 = arith.addf %35, %34 : vector<8x128xf32>
    %37 = arith.divf %35, %36 : vector<8x128xf32>
    %38 = arith.mulf %29, %12 : vector<8x128xf32>
    %39 = arith.mulf %23, %31 : vector<8x128xf32>
    %40 = arith.addf %38, %39 : vector<8x128xf32>
    %41 = math.tanh %40 : vector<8x128xf32>
    %42 = arith.mulf %37, %41 : vector<8x128xf32>
    %43 = arith.truncf %42 : vector<8x128xf32> to vector<8x128xbf16>
    %c0_20 = arith.constant 0 : index
    %c0_21 = arith.constant 0 : index
    %c0_22 = arith.constant 0 : index
    %44 = vector.load %arg11[%c0_20, %c0_21, %c0_22] : memref<8x8x128xbf16, #tpu.memory_space<vmem>>, vector<1x8x128xbf16>
    %45 = vector.shape_cast %44 : vector<1x8x128xbf16> to vector<8x128xbf16>
    %46 = vector.shape_cast %43 : vector<8x128xbf16> to vector<1x8x128xbf16>
    tpu.vector_store %arg11[%c0_20, %c0_21, %c0_22], %46 {strides = array<i32>} : memref<8x8x128xbf16, #tpu.memory_space<vmem>>, vector<1x8x128xbf16>,
    %c1 = arith.constant 1 : index
    %c0_23 = arith.constant 0 : index
    %c0_24 = arith.constant 0 : index
    %47 = vector.load %arg10[%c1, %c0_23, %c0_24] : memref<8x8x512xf32, #tpu.memory_space<vmem>>, vector<1x8x512xf32>
    %48 = vector.shape_cast %47 : vector<1x8x512xf32> to vector<8x512xf32>
    %49 = arith.truncf %42 : vector<8x128xf32> to vector<8x128xbf16>
    %cst_25 = arith.constant dense<0.000000e+00> : vector<8x512xf32>
    %50 = tpu.matmul %49, %1, %cst_25 {dimension_numbers = #tpu.dot_dimension_numbers<[1], [0], [0], [1], [0, 0, 1, 1], [], []>} : vector<8x128xbf16>, vector<128x512xbf16>, vector<8x512xf32> -> vector<8x512xf32>
    %51 = arith.addf %48, %50 : vector<8x512xf32>
    %52 = vector.extract_strided_slice %51 {offsets = [0, 0], sizes = [8, 128], strides = [1, 1]} : vector<8x512xf32> to vector<8x128xf32>
    %53 = arith.negf %52 : vector<8x128xf32>
    %54 = math.exp %53 : vector<8x128xf32>
    %cst_26 = arith.constant 1.000000e+00 : f32
    %55 = vector.broadcast %cst_26 : f32 to vector<8x128xf32>
    %56 = arith.addf %55, %54 : vector<8x128xf32>
    %57 = arith.divf %55, %56 : vector<8x128xf32>
    %58 = vector.extract_strided_slice %51 {offsets = [0, 128], sizes = [8, 128], strides = [1, 1]} : vector<8x512xf32> to vector<8x128xf32>
    %59 = arith.negf %58 : vector<8x128xf32>
    %60 = math.exp %59 : vector<8x128xf32>
    %cst_27 = arith.constant 1.000000e+00 : f32
    %61 = vector.broadcast %cst_27 : f32 to vector<8x128xf32>
    %62 = arith.addf %61, %60 : vector<8x128xf32>
    %63 = arith.divf %61, %62 : vector<8x128xf32>
    %64 = vector.extract_strided_slice %51 {offsets = [0, 256], sizes = [8, 128], strides = [1, 1]} : vector<8x512xf32> to vector<8x128xf32>
    %65 = math.tanh %64 : vector<8x128xf32>
    %66 = vector.extract_strided_slice %51 {offsets = [0, 384], sizes = [8, 128], strides = [1, 1]} : vector<8x512xf32> to vector<8x128xf32>
    %67 = arith.negf %66 : vector<8x128xf32>
    %68 = math.exp %67 : vector<8x128xf32>
    %cst_28 = arith.constant 1.000000e+00 : f32
    %69 = vector.broadcast %cst_28 : f32 to vector<8x128xf32>
    %70 = arith.addf %69, %68 : vector<8x128xf32>
    %71 = arith.divf %69, %70 : vector<8x128xf32>
    %72 = arith.mulf %63, %40 : vector<8x128xf32>
    %73 = arith.mulf %57, %65 : vector<8x128xf32>
    %74 = arith.addf %72, %73 : vector<8x128xf32>
    %75 = math.tanh %74 : vector<8x128xf32>
    %76 = arith.mulf %71, %75 : vector<8x128xf32>
    %77 = arith.truncf %76 : vector<8x128xf32> to vector<8x128xbf16>
    %c1_29 = arith.constant 1 : index
    %c0_30 = arith.constant 0 : index
    %c0_31 = arith.constant 0 : index
    %78 = vector.load %arg11[%c1_29, %c0_30, %c0_31] : memref<8x8x128xbf16, #tpu.memory_space<vmem>>, vector<1x8x128xbf16>
    %79 = vector.shape_cast %78 : vector<1x8x128xbf16> to vector<8x128xbf16>
    %80 = vector.shape_cast %77 : vector<8x128xbf16> to vector<1x8x128xbf16>
    tpu.vector_store %arg11[%c1_29, %c0_30, %c0_31], %80 {strides = array<i32>} : memref<8x8x128xbf16, #tpu.memory_space<vmem>>, vector<1x8x128xbf16>,
    %c2 = arith.constant 2 : index
    %c0_32 = arith.constant 0 : index
    %c0_33 = arith.constant 0 : index
    %81 = vector.load %arg10[%c2, %c0_32, %c0_33] : memref<8x8x512xf32, #tpu.memory_space<vmem>>, vector<1x8x512xf32>
    %82 = vector.shape_cast %81 : vector<1x8x512xf32> to vector<8x512xf32>
    %83 = arith.truncf %76 : vector<8x128xf32> to vector<8x128xbf16>
    %cst_34 = arith.constant dense<0.000000e+00> : vector<8x512xf32>
    %84 = tpu.matmul %83, %1, %cst_34 {dimension_numbers = #tpu.dot_dimension_numbers<[1], [0], [0], [1], [0, 0, 1, 1], [], []>} : vector<8x128xbf16>, vector<128x512xbf16>, vector<8x512xf32> -> vector<8x512xf32>
    %85 = arith.addf %82, %84 : vector<8x512xf32>
    %86 = vector.extract_strided_slice %85 {offsets = [0, 0], sizes = [8, 128], strides = [1, 1]} : vector<8x512xf32> to vector<8x128xf32>
    %87 = arith.negf %86 : vector<8x128xf32>
    %88 = math.exp %87 : vector<8x128xf32>
    %cst_35 = arith.constant 1.000000e+00 : f32
    %89 = vector.broadcast %cst_35 : f32 to vector<8x128xf32>
    %90 = arith.addf %89, %88 : vector<8x128xf32>
    %91 = arith.divf %89, %90 : vector<8x128xf32>
    %92 = vector.extract_strided_slice %85 {offsets = [0, 128], sizes = [8, 128], strides = [1, 1]} : vector<8x512xf32> to vector<8x128xf32>
    %93 = arith.negf %92 : vector<8x128xf32>
    %94 = math.exp %93 : vector<8x128xf32>
    %cst_36 = arith.constant 1.000000e+00 : f32
    %95 = vector.broadcast %cst_36 : f32 to vector<8x128xf32>
    %96 = arith.addf %95, %94 : vector<8x128xf32>
    %97 = arith.divf %95, %96 : vector<8x128xf32>
    %98 = vector.extract_strided_slice %85 {offsets = [0, 256], sizes = [8, 128], strides = [1, 1]} : vector<8x512xf32> to vector<8x128xf32>
    %99 = math.tanh %98 : vector<8x128xf32>
    %100 = vector.extract_strided_slice %85 {offsets = [0, 384], sizes = [8, 128], strides = [1, 1]} : vector<8x512xf32> to vector<8x128xf32>
    %101 = arith.negf %100 : vector<8x128xf32>
    %102 = math.exp %101 : vector<8x128xf32>
    %cst_37 = arith.constant 1.000000e+00 : f32
    %103 = vector.broadcast %cst_37 : f32 to vector<8x128xf32>
    %104 = arith.addf %103, %102 : vector<8x128xf32>
    %105 = arith.divf %103, %104 : vector<8x128xf32>
    %106 = arith.mulf %97, %74 : vector<8x128xf32>
    %107 = arith.mulf %91, %99 : vector<8x128xf32>
    %108 = arith.addf %106, %107 : vector<8x128xf32>
    %109 = math.tanh %108 : vector<8x128xf32>
    %110 = arith.mulf %105, %109 : vector<8x128xf32>
    %111 = arith.truncf %110 : vector<8x128xf32> to vector<8x128xbf16>
    %c2_38 = arith.constant 2 : index
    %c0_39 = arith.constant 0 : index
    %c0_40 = arith.constant 0 : index
    %112 = vector.load %arg11[%c2_38, %c0_39, %c0_40] : memref<8x8x128xbf16, #tpu.memory_space<vmem>>, vector<1x8x128xbf16>
    %113 = vector.shape_cast %112 : vector<1x8x128xbf16> to vector<8x128xbf16>
    %114 = vector.shape_cast %111 : vector<8x128xbf16> to vector<1x8x128xbf16>
    tpu.vector_store %arg11[%c2_38, %c0_39, %c0_40], %114 {strides = array<i32>} : memref<8x8x128xbf16, #tpu.memory_space<vmem>>, vector<1x8x128xbf16>,
    %c3 = arith.constant 3 : index
    %c0_41 = arith.constant 0 : index
    %c0_42 = arith.constant 0 : index
    %115 = vector.load %arg10[%c3, %c0_41, %c0_42] : memref<8x8x512xf32, #tpu.memory_space<vmem>>, vector<1x8x512xf32>
    %116 = vector.shape_cast %115 : vector<1x8x512xf32> to vector<8x512xf32>
    %117 = arith.truncf %110 : vector<8x128xf32> to vector<8x128xbf16>
    %cst_43 = arith.constant dense<0.000000e+00> : vector<8x512xf32>
    %118 = tpu.matmul %117, %1, %cst_43 {dimension_numbers = #tpu.dot_dimension_numbers<[1], [0], [0], [1], [0, 0, 1, 1], [], []>} : vector<8x128xbf16>, vector<128x512xbf16>, vector<8x512xf32> -> vector<8x512xf32>
    %119 = arith.addf %116, %118 : vector<8x512xf32>
    %120 = vector.extract_strided_slice %119 {offsets = [0, 0], sizes = [8, 128], strides = [1, 1]} : vector<8x512xf32> to vector<8x128xf32>
    %121 = arith.negf %120 : vector<8x128xf32>
    %122 = math.exp %121 : vector<8x128xf32>
    %cst_44 = arith.constant 1.000000e+00 : f32
    %123 = vector.broadcast %cst_44 : f32 to vector<8x128xf32>
    %124 = arith.addf %123, %122 : vector<8x128xf32>
    %125 = arith.divf %123, %124 : vector<8x128xf32>
    %126 = vector.extract_strided_slice %119 {offsets = [0, 128], sizes = [8, 128], strides = [1, 1]} : vector<8x512xf32> to vector<8x128xf32>
    %127 = arith.negf %126 : vector<8x128xf32>
    %128 = math.exp %127 : vector<8x128xf32>
    %cst_45 = arith.constant 1.000000e+00 : f32
    %129 = vector.broadcast %cst_45 : f32 to vector<8x128xf32>
    %130 = arith.addf %129, %128 : vector<8x128xf32>
    %131 = arith.divf %129, %130 : vector<8x128xf32>
    %132 = vector.extract_strided_slice %119 {offsets = [0, 256], sizes = [8, 128], strides = [1, 1]} : vector<8x512xf32> to vector<8x128xf32>
    %133 = math.tanh %132 : vector<8x128xf32>
    %134 = vector.extract_strided_slice %119 {offsets = [0, 384], sizes = [8, 128], strides = [1, 1]} : vector<8x512xf32> to vector<8x128xf32>
    %135 = arith.negf %134 : vector<8x128xf32>
    %136 = math.exp %135 : vector<8x128xf32>
    %cst_46 = arith.constant 1.000000e+00 : f32
    %137 = vector.broadcast %cst_46 : f32 to vector<8x128xf32>
    %138 = arith.addf %137, %136 : vector<8x128xf32>
    %139 = arith.divf %137, %138 : vector<8x128xf32>
    %140 = arith.mulf %131, %108 : vector<8x128xf32>
    %141 = arith.mulf %125, %133 : vector<8x128xf32>
    %142 = arith.addf %140, %141 : vector<8x128xf32>
    %143 = math.tanh %142 : vector<8x128xf32>
    %144 = arith.mulf %139, %143 : vector<8x128xf32>
    %145 = arith.truncf %144 : vector<8x128xf32> to vector<8x128xbf16>
    %c3_47 = arith.constant 3 : index
    %c0_48 = arith.constant 0 : index
    %c0_49 = arith.constant 0 : index
    %146 = vector.load %arg11[%c3_47, %c0_48, %c0_49] : memref<8x8x128xbf16, #tpu.memory_space<vmem>>, vector<1x8x128xbf16>
    %147 = vector.shape_cast %146 : vector<1x8x128xbf16> to vector<8x128xbf16>
    %148 = vector.shape_cast %145 : vector<8x128xbf16> to vector<1x8x128xbf16>
    tpu.vector_store %arg11[%c3_47, %c0_48, %c0_49], %148 {strides = array<i32>} : memref<8x8x128xbf16, #tpu.memory_space<vmem>>, vector<1x8x128xbf16>,
    %c4 = arith.constant 4 : index
    %c0_50 = arith.constant 0 : index
    %c0_51 = arith.constant 0 : index
    %149 = vector.load %arg10[%c4, %c0_50, %c0_51] : memref<8x8x512xf32, #tpu.memory_space<vmem>>, vector<1x8x512xf32>
    %150 = vector.shape_cast %149 : vector<1x8x512xf32> to vector<8x512xf32>
    %151 = arith.truncf %144 : vector<8x128xf32> to vector<8x128xbf16>
    %cst_52 = arith.constant dense<0.000000e+00> : vector<8x512xf32>
    %152 = tpu.matmul %151, %1, %cst_52 {dimension_numbers = #tpu.dot_dimension_numbers<[1], [0], [0], [1], [0, 0, 1, 1], [], []>} : vector<8x128xbf16>, vector<128x512xbf16>, vector<8x512xf32> -> vector<8x512xf32>
    %153 = arith.addf %150, %152 : vector<8x512xf32>
    %154 = vector.extract_strided_slice %153 {offsets = [0, 0], sizes = [8, 128], strides = [1, 1]} : vector<8x512xf32> to vector<8x128xf32>
    %155 = arith.negf %154 : vector<8x128xf32>
    %156 = math.exp %155 : vector<8x128xf32>
    %cst_53 = arith.constant 1.000000e+00 : f32
    %157 = vector.broadcast %cst_53 : f32 to vector<8x128xf32>
    %158 = arith.addf %157, %156 : vector<8x128xf32>
    %159 = arith.divf %157, %158 : vector<8x128xf32>
    %160 = vector.extract_strided_slice %153 {offsets = [0, 128], sizes = [8, 128], strides = [1, 1]} : vector<8x512xf32> to vector<8x128xf32>
    %161 = arith.negf %160 : vector<8x128xf32>
    %162 = math.exp %161 : vector<8x128xf32>
    %cst_54 = arith.constant 1.000000e+00 : f32
    %163 = vector.broadcast %cst_54 : f32 to vector<8x128xf32>
    %164 = arith.addf %163, %162 : vector<8x128xf32>
    %165 = arith.divf %163, %164 : vector<8x128xf32>
    %166 = vector.extract_strided_slice %153 {offsets = [0, 256], sizes = [8, 128], strides = [1, 1]} : vector<8x512xf32> to vector<8x128xf32>
    %167 = math.tanh %166 : vector<8x128xf32>
    %168 = vector.extract_strided_slice %153 {offsets = [0, 384], sizes = [8, 128], strides = [1, 1]} : vector<8x512xf32> to vector<8x128xf32>
    %169 = arith.negf %168 : vector<8x128xf32>
    %170 = math.exp %169 : vector<8x128xf32>
    %cst_55 = arith.constant 1.000000e+00 : f32
    %171 = vector.broadcast %cst_55 : f32 to vector<8x128xf32>
    %172 = arith.addf %171, %170 : vector<8x128xf32>
    %173 = arith.divf %171, %172 : vector<8x128xf32>
    %174 = arith.mulf %165, %142 : vector<8x128xf32>
    %175 = arith.mulf %159, %167 : vector<8x128xf32>
    %176 = arith.addf %174, %175 : vector<8x128xf32>
    %177 = math.tanh %176 : vector<8x128xf32>
    %178 = arith.mulf %173, %177 : vector<8x128xf32>
    %179 = arith.truncf %178 : vector<8x128xf32> to vector<8x128xbf16>
    %c4_56 = arith.constant 4 : index
    %c0_57 = arith.constant 0 : index
    %c0_58 = arith.constant 0 : index
    %180 = vector.load %arg11[%c4_56, %c0_57, %c0_58] : memref<8x8x128xbf16, #tpu.memory_space<vmem>>, vector<1x8x128xbf16>
    %181 = vector.shape_cast %180 : vector<1x8x128xbf16> to vector<8x128xbf16>
    %182 = vector.shape_cast %179 : vector<8x128xbf16> to vector<1x8x128xbf16>
    tpu.vector_store %arg11[%c4_56, %c0_57, %c0_58], %182 {strides = array<i32>} : memref<8x8x128xbf16, #tpu.memory_space<vmem>>, vector<1x8x128xbf16>,
    %c5 = arith.constant 5 : index
    %c0_59 = arith.constant 0 : index
    %c0_60 = arith.constant 0 : index
    %183 = vector.load %arg10[%c5, %c0_59, %c0_60] : memref<8x8x512xf32, #tpu.memory_space<vmem>>, vector<1x8x512xf32>
    %184 = vector.shape_cast %183 : vector<1x8x512xf32> to vector<8x512xf32>
    %185 = arith.truncf %178 : vector<8x128xf32> to vector<8x128xbf16>
    %cst_61 = arith.constant dense<0.000000e+00> : vector<8x512xf32>
    %186 = tpu.matmul %185, %1, %cst_61 {dimension_numbers = #tpu.dot_dimension_numbers<[1], [0], [0], [1], [0, 0, 1, 1], [], []>} : vector<8x128xbf16>, vector<128x512xbf16>, vector<8x512xf32> -> vector<8x512xf32>
    %187 = arith.addf %184, %186 : vector<8x512xf32>
    %188 = vector.extract_strided_slice %187 {offsets = [0, 0], sizes = [8, 128], strides = [1, 1]} : vector<8x512xf32> to vector<8x128xf32>
    %189 = arith.negf %188 : vector<8x128xf32>
    %190 = math.exp %189 : vector<8x128xf32>
    %cst_62 = arith.constant 1.000000e+00 : f32
    %191 = vector.broadcast %cst_62 : f32 to vector<8x128xf32>
    %192 = arith.addf %191, %190 : vector<8x128xf32>
    %193 = arith.divf %191, %192 : vector<8x128xf32>
    %194 = vector.extract_strided_slice %187 {offsets = [0, 128], sizes = [8, 128], strides = [1, 1]} : vector<8x512xf32> to vector<8x128xf32>
    %195 = arith.negf %194 : vector<8x128xf32>
    %196 = math.exp %195 : vector<8x128xf32>
    %cst_63 = arith.constant 1.000000e+00 : f32
    %197 = vector.broadcast %cst_63 : f32 to vector<8x128xf32>
    %198 = arith.addf %197, %196 : vector<8x128xf32>
    %199 = arith.divf %197, %198 : vector<8x128xf32>
    %200 = vector.extract_strided_slice %187 {offsets = [0, 256], sizes = [8, 128], strides = [1, 1]} : vector<8x512xf32> to vector<8x128xf32>
    %201 = math.tanh %200 : vector<8x128xf32>
    %202 = vector.extract_strided_slice %187 {offsets = [0, 384], sizes = [8, 128], strides = [1, 1]} : vector<8x512xf32> to vector<8x128xf32>
    %203 = arith.negf %202 : vector<8x128xf32>
    %204 = math.exp %203 : vector<8x128xf32>
    %cst_64 = arith.constant 1.000000e+00 : f32
    %205 = vector.broadcast %cst_64 : f32 to vector<8x128xf32>
    %206 = arith.addf %205, %204 : vector<8x128xf32>
    %207 = arith.divf %205, %206 : vector<8x128xf32>
    %208 = arith.mulf %199, %176 : vector<8x128xf32>
    %209 = arith.mulf %193, %201 : vector<8x128xf32>
    %210 = arith.addf %208, %209 : vector<8x128xf32>
    %211 = math.tanh %210 : vector<8x128xf32>
    %212 = arith.mulf %207, %211 : vector<8x128xf32>
    %213 = arith.truncf %212 : vector<8x128xf32> to vector<8x128xbf16>
    %c5_65 = arith.constant 5 : index
    %c0_66 = arith.constant 0 : index
    %c0_67 = arith.constant 0 : index
    %214 = vector.load %arg11[%c5_65, %c0_66, %c0_67] : memref<8x8x128xbf16, #tpu.memory_space<vmem>>, vector<1x8x128xbf16>
    %215 = vector.shape_cast %214 : vector<1x8x128xbf16> to vector<8x128xbf16>
    %216 = vector.shape_cast %213 : vector<8x128xbf16> to vector<1x8x128xbf16>
    tpu.vector_store %arg11[%c5_65, %c0_66, %c0_67], %216 {strides = array<i32>} : memref<8x8x128xbf16, #tpu.memory_space<vmem>>, vector<1x8x128xbf16>,
    %c6 = arith.constant 6 : index
    %c0_68 = arith.constant 0 : index
    %c0_69 = arith.constant 0 : index
    %217 = vector.load %arg10[%c6, %c0_68, %c0_69] : memref<8x8x512xf32, #tpu.memory_space<vmem>>, vector<1x8x512xf32>
    %218 = vector.shape_cast %217 : vector<1x8x512xf32> to vector<8x512xf32>
    %219 = arith.truncf %212 : vector<8x128xf32> to vector<8x128xbf16>
    %cst_70 = arith.constant dense<0.000000e+00> : vector<8x512xf32>
    %220 = tpu.matmul %219, %1, %cst_70 {dimension_numbers = #tpu.dot_dimension_numbers<[1], [0], [0], [1], [0, 0, 1, 1], [], []>} : vector<8x128xbf16>, vector<128x512xbf16>, vector<8x512xf32> -> vector<8x512xf32>
    %221 = arith.addf %218, %220 : vector<8x512xf32>
    %222 = vector.extract_strided_slice %221 {offsets = [0, 0], sizes = [8, 128], strides = [1, 1]} : vector<8x512xf32> to vector<8x128xf32>
    %223 = arith.negf %222 : vector<8x128xf32>
    %224 = math.exp %223 : vector<8x128xf32>
    %cst_71 = arith.constant 1.000000e+00 : f32
    %225 = vector.broadcast %cst_71 : f32 to vector<8x128xf32>
    %226 = arith.addf %225, %224 : vector<8x128xf32>
    %227 = arith.divf %225, %226 : vector<8x128xf32>
    %228 = vector.extract_strided_slice %221 {offsets = [0, 128], sizes = [8, 128], strides = [1, 1]} : vector<8x512xf32> to vector<8x128xf32>
    %229 = arith.negf %228 : vector<8x128xf32>
    %230 = math.exp %229 : vector<8x128xf32>
    %cst_72 = arith.constant 1.000000e+00 : f32
    %231 = vector.broadcast %cst_72 : f32 to vector<8x128xf32>
    %232 = arith.addf %231, %230 : vector<8x128xf32>
    %233 = arith.divf %231, %232 : vector<8x128xf32>
    %234 = vector.extract_strided_slice %221 {offsets = [0, 256], sizes = [8, 128], strides = [1, 1]} : vector<8x512xf32> to vector<8x128xf32>
    %235 = math.tanh %234 : vector<8x128xf32>
    %236 = vector.extract_strided_slice %221 {offsets = [0, 384], sizes = [8, 128], strides = [1, 1]} : vector<8x512xf32> to vector<8x128xf32>
    %237 = arith.negf %236 : vector<8x128xf32>
    %238 = math.exp %237 : vector<8x128xf32>
    %cst_73 = arith.constant 1.000000e+00 : f32
    %239 = vector.broadcast %cst_73 : f32 to vector<8x128xf32>
    %240 = arith.addf %239, %238 : vector<8x128xf32>
    %241 = arith.divf %239, %240 : vector<8x128xf32>
    %242 = arith.mulf %233, %210 : vector<8x128xf32>
    %243 = arith.mulf %227, %235 : vector<8x128xf32>
    %244 = arith.addf %242, %243 : vector<8x128xf32>
    %245 = math.tanh %244 : vector<8x128xf32>
    %246 = arith.mulf %241, %245 : vector<8x128xf32>
    %247 = arith.truncf %246 : vector<8x128xf32> to vector<8x128xbf16>
    %c6_74 = arith.constant 6 : index
    %c0_75 = arith.constant 0 : index
    %c0_76 = arith.constant 0 : index
    %248 = vector.load %arg11[%c6_74, %c0_75, %c0_76] : memref<8x8x128xbf16, #tpu.memory_space<vmem>>, vector<1x8x128xbf16>
    %249 = vector.shape_cast %248 : vector<1x8x128xbf16> to vector<8x128xbf16>
    %250 = vector.shape_cast %247 : vector<8x128xbf16> to vector<1x8x128xbf16>
    tpu.vector_store %arg11[%c6_74, %c0_75, %c0_76], %250 {strides = array<i32>} : memref<8x8x128xbf16, #tpu.memory_space<vmem>>, vector<1x8x128xbf16>,
    %c7 = arith.constant 7 : index
    %c0_77 = arith.constant 0 : index
    %c0_78 = arith.constant 0 : index
    %251 = vector.load %arg10[%c7, %c0_77, %c0_78] : memref<8x8x512xf32, #tpu.memory_space<vmem>>, vector<1x8x512xf32>
    %252 = vector.shape_cast %251 : vector<1x8x512xf32> to vector<8x512xf32>
    %253 = arith.truncf %246 : vector<8x128xf32> to vector<8x128xbf16>
    %cst_79 = arith.constant dense<0.000000e+00> : vector<8x512xf32>
    %254 = tpu.matmul %253, %1, %cst_79 {dimension_numbers = #tpu.dot_dimension_numbers<[1], [0], [0], [1], [0, 0, 1, 1], [], []>} : vector<8x128xbf16>, vector<128x512xbf16>, vector<8x512xf32> -> vector<8x512xf32>
    %255 = arith.addf %252, %254 : vector<8x512xf32>
    %256 = vector.extract_strided_slice %255 {offsets = [0, 0], sizes = [8, 128], strides = [1, 1]} : vector<8x512xf32> to vector<8x128xf32>
    %257 = arith.negf %256 : vector<8x128xf32>
    %258 = math.exp %257 : vector<8x128xf32>
    %cst_80 = arith.constant 1.000000e+00 : f32
    %259 = vector.broadcast %cst_80 : f32 to vector<8x128xf32>
    %260 = arith.addf %259, %258 : vector<8x128xf32>
    %261 = arith.divf %259, %260 : vector<8x128xf32>
    %262 = vector.extract_strided_slice %255 {offsets = [0, 128], sizes = [8, 128], strides = [1, 1]} : vector<8x512xf32> to vector<8x128xf32>
    %263 = arith.negf %262 : vector<8x128xf32>
    %264 = math.exp %263 : vector<8x128xf32>
    %cst_81 = arith.constant 1.000000e+00 : f32
    %265 = vector.broadcast %cst_81 : f32 to vector<8x128xf32>
    %266 = arith.addf %265, %264 : vector<8x128xf32>
    %267 = arith.divf %265, %266 : vector<8x128xf32>
    %268 = vector.extract_strided_slice %255 {offsets = [0, 256], sizes = [8, 128], strides = [1, 1]} : vector<8x512xf32> to vector<8x128xf32>
    %269 = math.tanh %268 : vector<8x128xf32>
    %270 = vector.extract_strided_slice %255 {offsets = [0, 384], sizes = [8, 128], strides = [1, 1]} : vector<8x512xf32> to vector<8x128xf32>
    %271 = arith.negf %270 : vector<8x128xf32>
    %272 = math.exp %271 : vector<8x128xf32>
    %cst_82 = arith.constant 1.000000e+00 : f32
    %273 = vector.broadcast %cst_82 : f32 to vector<8x128xf32>
    %274 = arith.addf %273, %272 : vector<8x128xf32>
    %275 = arith.divf %273, %274 : vector<8x128xf32>
    %276 = arith.mulf %267, %244 : vector<8x128xf32>
    %277 = arith.mulf %261, %269 : vector<8x128xf32>
    %278 = arith.addf %276, %277 : vector<8x128xf32>
    %279 = math.tanh %278 : vector<8x128xf32>
    %280 = arith.mulf %275, %279 : vector<8x128xf32>
    %281 = arith.truncf %280 : vector<8x128xf32> to vector<8x128xbf16>
    %c7_83 = arith.constant 7 : index
    %c0_84 = arith.constant 0 : index
    %c0_85 = arith.constant 0 : index
    %282 = vector.load %arg11[%c7_83, %c0_84, %c0_85] : memref<8x8x128xbf16, #tpu.memory_space<vmem>>, vector<1x8x128xbf16>
    %283 = vector.shape_cast %282 : vector<1x8x128xbf16> to vector<8x128xbf16>
    %284 = vector.shape_cast %281 : vector<8x128xbf16> to vector<1x8x128xbf16>
    tpu.vector_store %arg11[%c7_83, %c0_84, %c0_85], %284 {strides = array<i32>} : memref<8x8x128xbf16, #tpu.memory_space<vmem>>, vector<1x8x128xbf16>,
    %c0_86 = arith.constant 0 : index
    %c0_87 = arith.constant 0 : index
    %285 = vector.load %arg4[%c0_86, %c0_87] : memref<128x512xbf16, #tpu.memory_space<vmem>>, vector<128x512xbf16>
    %c0_88 = arith.constant 0 : index
    %c0_89 = arith.constant 0 : index
    %286 = vector.load %arg5[%c0_88, %c0_89] : memref<128x512xbf16, #tpu.memory_space<vmem>>, vector<128x512xbf16>
    %c0_90 = arith.constant 0 : index
    %c0_91 = arith.constant 0 : index
    %287 = vector.load %arg6[%c0_90, %c0_91] : memref<1x512xf32, #tpu.memory_space<vmem>>, vector<1x512xf32>
    %c0_92 = arith.constant 0 : index
    %c0_93 = arith.constant 0 : index
    %c0_94 = arith.constant 0 : index
    %288 = vector.load %arg11[%c0_92, %c0_93, %c0_94] : memref<8x8x128xbf16, #tpu.memory_space<vmem>>, vector<8x8x128xbf16>
    %289 = vector.shape_cast %288 : vector<8x8x128xbf16> to vector<64x128xbf16>
    %cst_95 = arith.constant dense<0.000000e+00> : vector<64x512xf32>
    %290 = tpu.matmul %289, %285, %cst_95 {dimension_numbers = #tpu.dot_dimension_numbers<[1], [0], [0], [1], [0, 0, 1, 1], [], []>} : vector<64x128xbf16>, vector<128x512xbf16>, vector<64x512xf32> -> vector<64x512xf32>
    %291 = vector.broadcast %287 : vector<1x512xf32> to vector<64x512xf32>
    %292 = arith.addf %290, %291 : vector<64x512xf32>
    %293 = vector.shape_cast %292 : vector<64x512xf32> to vector<8x8x512xf32>
    %c0_96 = arith.constant 0 : index
    %c0_97 = arith.constant 0 : index
    %c0_98 = arith.constant 0 : index
    %294 = vector.load %arg10[%c0_96, %c0_97, %c0_98] : memref<8x8x512xf32, #tpu.memory_space<vmem>>, vector<8x8x512xf32>
    tpu.vector_store %arg10[%c0_96, %c0_97, %c0_98], %293 {strides = array<i32>} : memref<8x8x512xf32, #tpu.memory_space<vmem>>, vector<8x8x512xf32>,
    %cst_99 = arith.constant 0.000000e+00 : f32
    %295 = vector.broadcast %cst_99 : f32 to vector<8x128xf32>
    %cst_100 = arith.constant 0.000000e+00 : f32
    %296 = vector.broadcast %cst_100 : f32 to vector<8x128xf32>
    %c0_101 = arith.constant 0 : index
    %c0_102 = arith.constant 0 : index
    %c0_103 = arith.constant 0 : index
    %297 = vector.load %arg10[%c0_101, %c0_102, %c0_103] : memref<8x8x512xf32, #tpu.memory_space<vmem>>, vector<1x8x512xf32>
    %298 = vector.shape_cast %297 : vector<1x8x512xf32> to vector<8x512xf32>
    %299 = arith.truncf %295 : vector<8x128xf32> to vector<8x128xbf16>
    %cst_104 = arith.constant dense<0.000000e+00> : vector<8x512xf32>
    %300 = tpu.matmul %299, %286, %cst_104 {dimension_numbers = #tpu.dot_dimension_numbers<[1], [0], [0], [1], [0, 0, 1, 1], [], []>} : vector<8x128xbf16>, vector<128x512xbf16>, vector<8x512xf32> -> vector<8x512xf32>
    %301 = arith.addf %298, %300 : vector<8x512xf32>
    %302 = vector.extract_strided_slice %301 {offsets = [0, 0], sizes = [8, 128], strides = [1, 1]} : vector<8x512xf32> to vector<8x128xf32>
    %303 = arith.negf %302 : vector<8x128xf32>
    %304 = math.exp %303 : vector<8x128xf32>
    %cst_105 = arith.constant 1.000000e+00 : f32
    %305 = vector.broadcast %cst_105 : f32 to vector<8x128xf32>
    %306 = arith.addf %305, %304 : vector<8x128xf32>
    %307 = arith.divf %305, %306 : vector<8x128xf32>
    %308 = vector.extract_strided_slice %301 {offsets = [0, 128], sizes = [8, 128], strides = [1, 1]} : vector<8x512xf32> to vector<8x128xf32>
    %309 = arith.negf %308 : vector<8x128xf32>
    %310 = math.exp %309 : vector<8x128xf32>
    %cst_106 = arith.constant 1.000000e+00 : f32
    %311 = vector.broadcast %cst_106 : f32 to vector<8x128xf32>
    %312 = arith.addf %311, %310 : vector<8x128xf32>
    %313 = arith.divf %311, %312 : vector<8x128xf32>
    %314 = vector.extract_strided_slice %301 {offsets = [0, 256], sizes = [8, 128], strides = [1, 1]} : vector<8x512xf32> to vector<8x128xf32>
    %315 = math.tanh %314 : vector<8x128xf32>
    %316 = vector.extract_strided_slice %301 {offsets = [0, 384], sizes = [8, 128], strides = [1, 1]} : vector<8x512xf32> to vector<8x128xf32>
    %317 = arith.negf %316 : vector<8x128xf32>
    %318 = math.exp %317 : vector<8x128xf32>
    %cst_107 = arith.constant 1.000000e+00 : f32
    %319 = vector.broadcast %cst_107 : f32 to vector<8x128xf32>
    %320 = arith.addf %319, %318 : vector<8x128xf32>
    %321 = arith.divf %319, %320 : vector<8x128xf32>
    %322 = arith.mulf %313, %296 : vector<8x128xf32>
    %323 = arith.mulf %307, %315 : vector<8x128xf32>
    %324 = arith.addf %322, %323 : vector<8x128xf32>
    %325 = math.tanh %324 : vector<8x128xf32>
    %326 = arith.mulf %321, %325 : vector<8x128xf32>
    %c1_108 = arith.constant 1 : index
    %c0_109 = arith.constant 0 : index
    %c0_110 = arith.constant 0 : index
    %327 = vector.load %arg10[%c1_108, %c0_109, %c0_110] : memref<8x8x512xf32, #tpu.memory_space<vmem>>, vector<1x8x512xf32>
    %328 = vector.shape_cast %327 : vector<1x8x512xf32> to vector<8x512xf32>
    %329 = arith.truncf %326 : vector<8x128xf32> to vector<8x128xbf16>
    %cst_111 = arith.constant dense<0.000000e+00> : vector<8x512xf32>
    %330 = tpu.matmul %329, %286, %cst_111 {dimension_numbers = #tpu.dot_dimension_numbers<[1], [0], [0], [1], [0, 0, 1, 1], [], []>} : vector<8x128xbf16>, vector<128x512xbf16>, vector<8x512xf32> -> vector<8x512xf32>
    %331 = arith.addf %328, %330 : vector<8x512xf32>
    %332 = vector.extract_strided_slice %331 {offsets = [0, 0], sizes = [8, 128], strides = [1, 1]} : vector<8x512xf32> to vector<8x128xf32>
    %333 = arith.negf %332 : vector<8x128xf32>
    %334 = math.exp %333 : vector<8x128xf32>
    %cst_112 = arith.constant 1.000000e+00 : f32
    %335 = vector.broadcast %cst_112 : f32 to vector<8x128xf32>
    %336 = arith.addf %335, %334 : vector<8x128xf32>
    %337 = arith.divf %335, %336 : vector<8x128xf32>
    %338 = vector.extract_strided_slice %331 {offsets = [0, 128], sizes = [8, 128], strides = [1, 1]} : vector<8x512xf32> to vector<8x128xf32>
    %339 = arith.negf %338 : vector<8x128xf32>
    %340 = math.exp %339 : vector<8x128xf32>
    %cst_113 = arith.constant 1.000000e+00 : f32
    %341 = vector.broadcast %cst_113 : f32 to vector<8x128xf32>
    %342 = arith.addf %341, %340 : vector<8x128xf32>
    %343 = arith.divf %341, %342 : vector<8x128xf32>
    %344 = vector.extract_strided_slice %331 {offsets = [0, 256], sizes = [8, 128], strides = [1, 1]} : vector<8x512xf32> to vector<8x128xf32>
    %345 = math.tanh %344 : vector<8x128xf32>
    %346 = vector.extract_strided_slice %331 {offsets = [0, 384], sizes = [8, 128], strides = [1, 1]} : vector<8x512xf32> to vector<8x128xf32>
    %347 = arith.negf %346 : vector<8x128xf32>
    %348 = math.exp %347 : vector<8x128xf32>
    %cst_114 = arith.constant 1.000000e+00 : f32
    %349 = vector.broadcast %cst_114 : f32 to vector<8x128xf32>
    %350 = arith.addf %349, %348 : vector<8x128xf32>
    %351 = arith.divf %349, %350 : vector<8x128xf32>
    %352 = arith.mulf %343, %324 : vector<8x128xf32>
    %353 = arith.mulf %337, %345 : vector<8x128xf32>
    %354 = arith.addf %352, %353 : vector<8x128xf32>
    %355 = math.tanh %354 : vector<8x128xf32>
    %356 = arith.mulf %351, %355 : vector<8x128xf32>
    %c2_115 = arith.constant 2 : index
    %c0_116 = arith.constant 0 : index
    %c0_117 = arith.constant 0 : index
    %357 = vector.load %arg10[%c2_115, %c0_116, %c0_117] : memref<8x8x512xf32, #tpu.memory_space<vmem>>, vector<1x8x512xf32>
    %358 = vector.shape_cast %357 : vector<1x8x512xf32> to vector<8x512xf32>
    %359 = arith.truncf %356 : vector<8x128xf32> to vector<8x128xbf16>
    %cst_118 = arith.constant dense<0.000000e+00> : vector<8x512xf32>
    %360 = tpu.matmul %359, %286, %cst_118 {dimension_numbers = #tpu.dot_dimension_numbers<[1], [0], [0], [1], [0, 0, 1, 1], [], []>} : vector<8x128xbf16>, vector<128x512xbf16>, vector<8x512xf32> -> vector<8x512xf32>
    %361 = arith.addf %358, %360 : vector<8x512xf32>
    %362 = vector.extract_strided_slice %361 {offsets = [0, 0], sizes = [8, 128], strides = [1, 1]} : vector<8x512xf32> to vector<8x128xf32>
    %363 = arith.negf %362 : vector<8x128xf32>
    %364 = math.exp %363 : vector<8x128xf32>
    %cst_119 = arith.constant 1.000000e+00 : f32
    %365 = vector.broadcast %cst_119 : f32 to vector<8x128xf32>
    %366 = arith.addf %365, %364 : vector<8x128xf32>
    %367 = arith.divf %365, %366 : vector<8x128xf32>
    %368 = vector.extract_strided_slice %361 {offsets = [0, 128], sizes = [8, 128], strides = [1, 1]} : vector<8x512xf32> to vector<8x128xf32>
    %369 = arith.negf %368 : vector<8x128xf32>
    %370 = math.exp %369 : vector<8x128xf32>
    %cst_120 = arith.constant 1.000000e+00 : f32
    %371 = vector.broadcast %cst_120 : f32 to vector<8x128xf32>
    %372 = arith.addf %371, %370 : vector<8x128xf32>
    %373 = arith.divf %371, %372 : vector<8x128xf32>
    %374 = vector.extract_strided_slice %361 {offsets = [0, 256], sizes = [8, 128], strides = [1, 1]} : vector<8x512xf32> to vector<8x128xf32>
    %375 = math.tanh %374 : vector<8x128xf32>
    %376 = vector.extract_strided_slice %361 {offsets = [0, 384], sizes = [8, 128], strides = [1, 1]} : vector<8x512xf32> to vector<8x128xf32>
    %377 = arith.negf %376 : vector<8x128xf32>
    %378 = math.exp %377 : vector<8x128xf32>
    %cst_121 = arith.constant 1.000000e+00 : f32
    %379 = vector.broadcast %cst_121 : f32 to vector<8x128xf32>
    %380 = arith.addf %379, %378 : vector<8x128xf32>
    %381 = arith.divf %379, %380 : vector<8x128xf32>
    %382 = arith.mulf %373, %354 : vector<8x128xf32>
    %383 = arith.mulf %367, %375 : vector<8x128xf32>
    %384 = arith.addf %382, %383 : vector<8x128xf32>
    %385 = math.tanh %384 : vector<8x128xf32>
    %386 = arith.mulf %381, %385 : vector<8x128xf32>
    %c3_122 = arith.constant 3 : index
    %c0_123 = arith.constant 0 : index
    %c0_124 = arith.constant 0 : index
    %387 = vector.load %arg10[%c3_122, %c0_123, %c0_124] : memref<8x8x512xf32, #tpu.memory_space<vmem>>, vector<1x8x512xf32>
    %388 = vector.shape_cast %387 : vector<1x8x512xf32> to vector<8x512xf32>
    %389 = arith.truncf %386 : vector<8x128xf32> to vector<8x128xbf16>
    %cst_125 = arith.constant dense<0.000000e+00> : vector<8x512xf32>
    %390 = tpu.matmul %389, %286, %cst_125 {dimension_numbers = #tpu.dot_dimension_numbers<[1], [0], [0], [1], [0, 0, 1, 1], [], []>} : vector<8x128xbf16>, vector<128x512xbf16>, vector<8x512xf32> -> vector<8x512xf32>
    %391 = arith.addf %388, %390 : vector<8x512xf32>
    %392 = vector.extract_strided_slice %391 {offsets = [0, 0], sizes = [8, 128], strides = [1, 1]} : vector<8x512xf32> to vector<8x128xf32>
    %393 = arith.negf %392 : vector<8x128xf32>
    %394 = math.exp %393 : vector<8x128xf32>
    %cst_126 = arith.constant 1.000000e+00 : f32
    %395 = vector.broadcast %cst_126 : f32 to vector<8x128xf32>
    %396 = arith.addf %395, %394 : vector<8x128xf32>
    %397 = arith.divf %395, %396 : vector<8x128xf32>
    %398 = vector.extract_strided_slice %391 {offsets = [0, 128], sizes = [8, 128], strides = [1, 1]} : vector<8x512xf32> to vector<8x128xf32>
    %399 = arith.negf %398 : vector<8x128xf32>
    %400 = math.exp %399 : vector<8x128xf32>
    %cst_127 = arith.constant 1.000000e+00 : f32
    %401 = vector.broadcast %cst_127 : f32 to vector<8x128xf32>
    %402 = arith.addf %401, %400 : vector<8x128xf32>
    %403 = arith.divf %401, %402 : vector<8x128xf32>
    %404 = vector.extract_strided_slice %391 {offsets = [0, 256], sizes = [8, 128], strides = [1, 1]} : vector<8x512xf32> to vector<8x128xf32>
    %405 = math.tanh %404 : vector<8x128xf32>
    %406 = vector.extract_strided_slice %391 {offsets = [0, 384], sizes = [8, 128], strides = [1, 1]} : vector<8x512xf32> to vector<8x128xf32>
    %407 = arith.negf %406 : vector<8x128xf32>
    %408 = math.exp %407 : vector<8x128xf32>
    %cst_128 = arith.constant 1.000000e+00 : f32
    %409 = vector.broadcast %cst_128 : f32 to vector<8x128xf32>
    %410 = arith.addf %409, %408 : vector<8x128xf32>
    %411 = arith.divf %409, %410 : vector<8x128xf32>
    %412 = arith.mulf %403, %384 : vector<8x128xf32>
    %413 = arith.mulf %397, %405 : vector<8x128xf32>
    %414 = arith.addf %412, %413 : vector<8x128xf32>
    %415 = math.tanh %414 : vector<8x128xf32>
    %416 = arith.mulf %411, %415 : vector<8x128xf32>
    %c4_129 = arith.constant 4 : index
    %c0_130 = arith.constant 0 : index
    %c0_131 = arith.constant 0 : index
    %417 = vector.load %arg10[%c4_129, %c0_130, %c0_131] : memref<8x8x512xf32, #tpu.memory_space<vmem>>, vector<1x8x512xf32>
    %418 = vector.shape_cast %417 : vector<1x8x512xf32> to vector<8x512xf32>
    %419 = arith.truncf %416 : vector<8x128xf32> to vector<8x128xbf16>
    %cst_132 = arith.constant dense<0.000000e+00> : vector<8x512xf32>
    %420 = tpu.matmul %419, %286, %cst_132 {dimension_numbers = #tpu.dot_dimension_numbers<[1], [0], [0], [1], [0, 0, 1, 1], [], []>} : vector<8x128xbf16>, vector<128x512xbf16>, vector<8x512xf32> -> vector<8x512xf32>
    %421 = arith.addf %418, %420 : vector<8x512xf32>
    %422 = vector.extract_strided_slice %421 {offsets = [0, 0], sizes = [8, 128], strides = [1, 1]} : vector<8x512xf32> to vector<8x128xf32>
    %423 = arith.negf %422 : vector<8x128xf32>
    %424 = math.exp %423 : vector<8x128xf32>
    %cst_133 = arith.constant 1.000000e+00 : f32
    %425 = vector.broadcast %cst_133 : f32 to vector<8x128xf32>
    %426 = arith.addf %425, %424 : vector<8x128xf32>
    %427 = arith.divf %425, %426 : vector<8x128xf32>
    %428 = vector.extract_strided_slice %421 {offsets = [0, 128], sizes = [8, 128], strides = [1, 1]} : vector<8x512xf32> to vector<8x128xf32>
    %429 = arith.negf %428 : vector<8x128xf32>
    %430 = math.exp %429 : vector<8x128xf32>
    %cst_134 = arith.constant 1.000000e+00 : f32
    %431 = vector.broadcast %cst_134 : f32 to vector<8x128xf32>
    %432 = arith.addf %431, %430 : vector<8x128xf32>
    %433 = arith.divf %431, %432 : vector<8x128xf32>
    %434 = vector.extract_strided_slice %421 {offsets = [0, 256], sizes = [8, 128], strides = [1, 1]} : vector<8x512xf32> to vector<8x128xf32>
    %435 = math.tanh %434 : vector<8x128xf32>
    %436 = vector.extract_strided_slice %421 {offsets = [0, 384], sizes = [8, 128], strides = [1, 1]} : vector<8x512xf32> to vector<8x128xf32>
    %437 = arith.negf %436 : vector<8x128xf32>
    %438 = math.exp %437 : vector<8x128xf32>
    %cst_135 = arith.constant 1.000000e+00 : f32
    %439 = vector.broadcast %cst_135 : f32 to vector<8x128xf32>
    %440 = arith.addf %439, %438 : vector<8x128xf32>
    %441 = arith.divf %439, %440 : vector<8x128xf32>
    %442 = arith.mulf %433, %414 : vector<8x128xf32>
    %443 = arith.mulf %427, %435 : vector<8x128xf32>
    %444 = arith.addf %442, %443 : vector<8x128xf32>
    %445 = math.tanh %444 : vector<8x128xf32>
    %446 = arith.mulf %441, %445 : vector<8x128xf32>
    %c5_136 = arith.constant 5 : index
    %c0_137 = arith.constant 0 : index
    %c0_138 = arith.constant 0 : index
    %447 = vector.load %arg10[%c5_136, %c0_137, %c0_138] : memref<8x8x512xf32, #tpu.memory_space<vmem>>, vector<1x8x512xf32>
    %448 = vector.shape_cast %447 : vector<1x8x512xf32> to vector<8x512xf32>
    %449 = arith.truncf %446 : vector<8x128xf32> to vector<8x128xbf16>
    %cst_139 = arith.constant dense<0.000000e+00> : vector<8x512xf32>
    %450 = tpu.matmul %449, %286, %cst_139 {dimension_numbers = #tpu.dot_dimension_numbers<[1], [0], [0], [1], [0, 0, 1, 1], [], []>} : vector<8x128xbf16>, vector<128x512xbf16>, vector<8x512xf32> -> vector<8x512xf32>
    %451 = arith.addf %448, %450 : vector<8x512xf32>
    %452 = vector.extract_strided_slice %451 {offsets = [0, 0], sizes = [8, 128], strides = [1, 1]} : vector<8x512xf32> to vector<8x128xf32>
    %453 = arith.negf %452 : vector<8x128xf32>
    %454 = math.exp %453 : vector<8x128xf32>
    %cst_140 = arith.constant 1.000000e+00 : f32
    %455 = vector.broadcast %cst_140 : f32 to vector<8x128xf32>
    %456 = arith.addf %455, %454 : vector<8x128xf32>
    %457 = arith.divf %455, %456 : vector<8x128xf32>
    %458 = vector.extract_strided_slice %451 {offsets = [0, 128], sizes = [8, 128], strides = [1, 1]} : vector<8x512xf32> to vector<8x128xf32>
    %459 = arith.negf %458 : vector<8x128xf32>
    %460 = math.exp %459 : vector<8x128xf32>
    %cst_141 = arith.constant 1.000000e+00 : f32
    %461 = vector.broadcast %cst_141 : f32 to vector<8x128xf32>
    %462 = arith.addf %461, %460 : vector<8x128xf32>
    %463 = arith.divf %461, %462 : vector<8x128xf32>
    %464 = vector.extract_strided_slice %451 {offsets = [0, 256], sizes = [8, 128], strides = [1, 1]} : vector<8x512xf32> to vector<8x128xf32>
    %465 = math.tanh %464 : vector<8x128xf32>
    %466 = vector.extract_strided_slice %451 {offsets = [0, 384], sizes = [8, 128], strides = [1, 1]} : vector<8x512xf32> to vector<8x128xf32>
    %467 = arith.negf %466 : vector<8x128xf32>
    %468 = math.exp %467 : vector<8x128xf32>
    %cst_142 = arith.constant 1.000000e+00 : f32
    %469 = vector.broadcast %cst_142 : f32 to vector<8x128xf32>
    %470 = arith.addf %469, %468 : vector<8x128xf32>
    %471 = arith.divf %469, %470 : vector<8x128xf32>
    %472 = arith.mulf %463, %444 : vector<8x128xf32>
    %473 = arith.mulf %457, %465 : vector<8x128xf32>
    %474 = arith.addf %472, %473 : vector<8x128xf32>
    %475 = math.tanh %474 : vector<8x128xf32>
    %476 = arith.mulf %471, %475 : vector<8x128xf32>
    %c6_143 = arith.constant 6 : index
    %c0_144 = arith.constant 0 : index
    %c0_145 = arith.constant 0 : index
    %477 = vector.load %arg10[%c6_143, %c0_144, %c0_145] : memref<8x8x512xf32, #tpu.memory_space<vmem>>, vector<1x8x512xf32>
    %478 = vector.shape_cast %477 : vector<1x8x512xf32> to vector<8x512xf32>
    %479 = arith.truncf %476 : vector<8x128xf32> to vector<8x128xbf16>
    %cst_146 = arith.constant dense<0.000000e+00> : vector<8x512xf32>
    %480 = tpu.matmul %479, %286, %cst_146 {dimension_numbers = #tpu.dot_dimension_numbers<[1], [0], [0], [1], [0, 0, 1, 1], [], []>} : vector<8x128xbf16>, vector<128x512xbf16>, vector<8x512xf32> -> vector<8x512xf32>
    %481 = arith.addf %478, %480 : vector<8x512xf32>
    %482 = vector.extract_strided_slice %481 {offsets = [0, 0], sizes = [8, 128], strides = [1, 1]} : vector<8x512xf32> to vector<8x128xf32>
    %483 = arith.negf %482 : vector<8x128xf32>
    %484 = math.exp %483 : vector<8x128xf32>
    %cst_147 = arith.constant 1.000000e+00 : f32
    %485 = vector.broadcast %cst_147 : f32 to vector<8x128xf32>
    %486 = arith.addf %485, %484 : vector<8x128xf32>
    %487 = arith.divf %485, %486 : vector<8x128xf32>
    %488 = vector.extract_strided_slice %481 {offsets = [0, 128], sizes = [8, 128], strides = [1, 1]} : vector<8x512xf32> to vector<8x128xf32>
    %489 = arith.negf %488 : vector<8x128xf32>
    %490 = math.exp %489 : vector<8x128xf32>
    %cst_148 = arith.constant 1.000000e+00 : f32
    %491 = vector.broadcast %cst_148 : f32 to vector<8x128xf32>
    %492 = arith.addf %491, %490 : vector<8x128xf32>
    %493 = arith.divf %491, %492 : vector<8x128xf32>
    %494 = vector.extract_strided_slice %481 {offsets = [0, 256], sizes = [8, 128], strides = [1, 1]} : vector<8x512xf32> to vector<8x128xf32>
    %495 = math.tanh %494 : vector<8x128xf32>
    %496 = vector.extract_strided_slice %481 {offsets = [0, 384], sizes = [8, 128], strides = [1, 1]} : vector<8x512xf32> to vector<8x128xf32>
    %497 = arith.negf %496 : vector<8x128xf32>
    %498 = math.exp %497 : vector<8x128xf32>
    %cst_149 = arith.constant 1.000000e+00 : f32
    %499 = vector.broadcast %cst_149 : f32 to vector<8x128xf32>
    %500 = arith.addf %499, %498 : vector<8x128xf32>
    %501 = arith.divf %499, %500 : vector<8x128xf32>
    %502 = arith.mulf %493, %474 : vector<8x128xf32>
    %503 = arith.mulf %487, %495 : vector<8x128xf32>
    %504 = arith.addf %502, %503 : vector<8x128xf32>
    %505 = math.tanh %504 : vector<8x128xf32>
    %506 = arith.mulf %501, %505 : vector<8x128xf32>
    %c7_150 = arith.constant 7 : index
    %c0_151 = arith.constant 0 : index
    %c0_152 = arith.constant 0 : index
    %507 = vector.load %arg10[%c7_150, %c0_151, %c0_152] : memref<8x8x512xf32, #tpu.memory_space<vmem>>, vector<1x8x512xf32>
    %508 = vector.shape_cast %507 : vector<1x8x512xf32> to vector<8x512xf32>
    %509 = arith.truncf %506 : vector<8x128xf32> to vector<8x128xbf16>
    %cst_153 = arith.constant dense<0.000000e+00> : vector<8x512xf32>
    %510 = tpu.matmul %509, %286, %cst_153 {dimension_numbers = #tpu.dot_dimension_numbers<[1], [0], [0], [1], [0, 0, 1, 1], [], []>} : vector<8x128xbf16>, vector<128x512xbf16>, vector<8x512xf32> -> vector<8x512xf32>
    %511 = arith.addf %508, %510 : vector<8x512xf32>
    %512 = vector.extract_strided_slice %511 {offsets = [0, 0], sizes = [8, 128], strides = [1, 1]} : vector<8x512xf32> to vector<8x128xf32>
    %513 = arith.negf %512 : vector<8x128xf32>
    %514 = math.exp %513 : vector<8x128xf32>
    %cst_154 = arith.constant 1.000000e+00 : f32
    %515 = vector.broadcast %cst_154 : f32 to vector<8x128xf32>
    %516 = arith.addf %515, %514 : vector<8x128xf32>
    %517 = arith.divf %515, %516 : vector<8x128xf32>
    %518 = vector.extract_strided_slice %511 {offsets = [0, 128], sizes = [8, 128], strides = [1, 1]} : vector<8x512xf32> to vector<8x128xf32>
    %519 = arith.negf %518 : vector<8x128xf32>
    %520 = math.exp %519 : vector<8x128xf32>
    %cst_155 = arith.constant 1.000000e+00 : f32
    %521 = vector.broadcast %cst_155 : f32 to vector<8x128xf32>
    %522 = arith.addf %521, %520 : vector<8x128xf32>
    %523 = arith.divf %521, %522 : vector<8x128xf32>
    %524 = vector.extract_strided_slice %511 {offsets = [0, 256], sizes = [8, 128], strides = [1, 1]} : vector<8x512xf32> to vector<8x128xf32>
    %525 = math.tanh %524 : vector<8x128xf32>
    %526 = vector.extract_strided_slice %511 {offsets = [0, 384], sizes = [8, 128], strides = [1, 1]} : vector<8x512xf32> to vector<8x128xf32>
    %527 = arith.negf %526 : vector<8x128xf32>
    %528 = math.exp %527 : vector<8x128xf32>
    %cst_156 = arith.constant 1.000000e+00 : f32
    %529 = vector.broadcast %cst_156 : f32 to vector<8x128xf32>
    %530 = arith.addf %529, %528 : vector<8x128xf32>
    %531 = arith.divf %529, %530 : vector<8x128xf32>
    %532 = arith.mulf %523, %504 : vector<8x128xf32>
    %533 = arith.mulf %517, %525 : vector<8x128xf32>
    %534 = arith.addf %532, %533 : vector<8x128xf32>
    %535 = math.tanh %534 : vector<8x128xf32>
    %536 = arith.mulf %531, %535 : vector<8x128xf32>
    %537 = arith.truncf %536 : vector<8x128xf32> to vector<8x128xbf16>
    %c0_157 = arith.constant 0 : index
    %c0_158 = arith.constant 0 : index
    %538 = vector.load %arg7[%c0_157, %c0_158] : memref<128x128xbf16, #tpu.memory_space<vmem>>, vector<128x128xbf16>
    %cst_159 = arith.constant dense<0.000000e+00> : vector<8x128xf32>
    %539 = tpu.matmul %537, %538, %cst_159 {dimension_numbers = #tpu.dot_dimension_numbers<[1], [0], [0], [1], [0, 0, 1, 1], [], []>} : vector<8x128xbf16>, vector<128x128xbf16>, vector<8x128xf32> -> vector<8x128xf32>
    %c0_160 = arith.constant 0 : index
    %c0_161 = arith.constant 0 : index
    %540 = vector.load %arg8[%c0_160, %c0_161] : memref<1x128xf32, #tpu.memory_space<vmem>>, vector<1x128xf32>
    %541 = vector.broadcast %540 : vector<1x128xf32> to vector<8x128xf32>
    %542 = arith.addf %539, %541 : vector<8x128xf32>
    %c0_162 = arith.constant 0 : index
    %c0_163 = arith.constant 0 : index
    %543 = vector.load %arg9[%c0_162, %c0_163] : memref<8x128xf32, #tpu.memory_space<vmem>>, vector<8x128xf32>
    tpu.vector_store %arg9[%c0_162, %c0_163], %542 {strides = array<i32>} : memref<8x128xf32, #tpu.memory_space<vmem>>, vector<8x128xf32>,
    return
  }
}

</mosaic_0001>

<llo_original>
// kernel: lstm_model_forward.1
$region0: #{lstm_model_forward.1}
  #allocation0 [shape = 'u32[]', space=smem, size = 0x4, offset = 0x4, fixed_abs, tag = 'smem constant byte address 0x4 - core index']
  #allocation1 [shape = 'u32[72,128]{1,0:T(1,128)}', space=vmem, size = 0x9000, scoped, tag = 'internal scratch']
  #allocation2 [shape = 'f32[8,8,512]{2,1,0:T(8,128)}', space=vmem, size = 0x20000, scoped, tag = 'scratch operand']
  #allocation3 [shape = 'bf16[8,8,128]{2,1,0:T(8,128)(2,1)}', space=vmem, size = 0x4000, scoped, tag = 'scratch operand']
  %s0 = inlined_call_operand.vmem [shape: f32[8,8,4], index: 0, kind: input, shape index: {}]
  %s1 = inlined_call_operand.vmem [shape: bf16[4,512], index: 1, kind: input, shape index: {}]
  %s2 = inlined_call_operand.hbm [shape: bf16[128,512], index: 2, kind: input, shape index: {}]
  %s3 = inlined_call_operand.vmem [shape: f32[1,512], index: 3, kind: input, shape index: {}]
  %s4 = inlined_call_operand.hbm [shape: bf16[128,512], index: 4, kind: input, shape index: {}]
  %s5 = inlined_call_operand.hbm [shape: bf16[128,512], index: 5, kind: input, shape index: {}]
  %s6 = inlined_call_operand.vmem [shape: f32[1,512], index: 6, kind: input, shape index: {}]
  %s7 = inlined_call_operand.vmem [shape: bf16[128,128], index: 7, kind: input, shape index: {}]
  %s8 = inlined_call_operand.vmem [shape: f32[1,128], index: 8, kind: input, shape index: {}]
  %s9 = inlined_call_operand.vmem [shape: f32[8,128], index: 9, kind: output, shape index: {}]
  %s10 = sld [smem:[#allocation0]]
  $region58: #{lstm_model_forward.1} parent=0
    _
  %s12 = ssub.s32 1, %s10
  %s13 = scalar_select 0, %s12, %s10
  $region1: #{lstm_model_forward.1} parent=0
    #allocation4 [shape = 'u8[131072]{0}', space=vmem, size = 0x20000, scoped, tag = 'input window, operand 2, single buffered']
    #allocation5 [shape = 's32[1]{0}', space=sflag, size = 0x4, scoped, tag = 'scoped memory for lstm_model_forward.1']
    #allocation6 [shape = 'u8[131072]{0}', space=vmem, size = 0x20000, scoped, tag = 'input window, operand 4, single buffered']
    #allocation7 [shape = 's32[1]{0}', space=sflag, size = 0x4, scoped, tag = 'scoped memory for lstm_model_forward.1']
    #allocation8 [shape = 'u8[131072]{0}', space=vmem, size = 0x20000, scoped, tag = 'input window, operand 5, single buffered']
    %14 = vsyncpa [#allocation5], 0
    %15 = vsyncpa [#allocation7], 0
    // Predicated region
    $region2: #{lstm_model_forward.1} parent=1 // pred_check
      _
    $region3: #{lstm_model_forward.1} parent=1 // pred_check_branch
      %17 = sbr.rel (0) target = $region5
    $region4: #{lstm_model_forward.1} parent=1 // pred_region
      _
    $region5: #{lstm_model_forward.1} parent=1 // pred_fallthru
      _
    // Predicated region
    $region6: #{lstm_model_forward.1} parent=1 // pred_check
      _
    $region7: #{lstm_model_forward.1} parent=1 // pred_check_branch
      %19 = sbr.rel (0) target = $region9
    $region8: #{lstm_model_forward.1} parent=1 // pred_region
      _
    $region9: #{lstm_model_forward.1} parent=1 // pred_fallthru
      _
    // Predicated region
    $region10: #{lstm_model_forward.1} parent=1 // pred_check
      _
    $region11: #{lstm_model_forward.1} parent=1 // pred_check_branch
      %21 = sbr.rel (0) target = $region13
    $region12: #{lstm_model_forward.1} parent=1 // pred_region
      %23 = vsyncadd [#allocation5], 0
      %s24 = sshll.u32 %s2, 4
      %s25 = int_to_ptr.hbm [resolvable:$true] %s24
      %s26 = sshll.u32 [#allocation4], 4
      %s27 = int_to_ptr.vmem [resolvable:$true] %s26
      %32 = dma.hbm_to_vmem [thread:$0]  %s25, 4096, %s27, [#allocation5], 256, 256, 16
    $region13: #{lstm_model_forward.1} parent=1 // pred_fallthru
      _
    // Predicated region
    $region14: #{lstm_model_forward.1} parent=1 // pred_check
      _
    $region15: #{lstm_model_forward.1} parent=1 // pred_check_branch
      %34 = sbr.rel (0) target = $region17
    $region16: #{lstm_model_forward.1} parent=1 // pred_region
      _
    $region17: #{lstm_model_forward.1} parent=1 // pred_fallthru
      _
    // Predicated region
    $region18: #{lstm_model_forward.1} parent=1 // pred_check
      _
    $region19: #{lstm_model_forward.1} parent=1 // pred_check_branch
      %36 = sbr.rel (0) target = $region21
    $region20: #{lstm_model_forward.1} parent=1 // pred_region
      %38 = vsyncadd [#allocation7], 0
      %s39 = sshll.u32 %s4, 4
      %s40 = int_to_ptr.hbm [resolvable:$true] %s39
      %s41 = sshll.u32 [#allocation6], 4
      %s42 = int_to_ptr.vmem [resolvable:$true] %s41
      %47 = dma.hbm_to_vmem [thread:$0]  %s40, 4096, %s42, [#allocation7], 256, 256, 16
    $region21: #{lstm_model_forward.1} parent=1 // pred_fallthru
      _
    // Predicated region
    $region22: #{lstm_model_forward.1} parent=1 // pred_check
      _
    $region23: #{lstm_model_forward.1} parent=1 // pred_check_branch
      %49 = sbr.rel (0) target = $region25
    $region24: #{lstm_model_forward.1} parent=1 // pred_region
      %51 = vsyncadd [#allocation7], 0
      %s52 = sshll.u32 %s5, 4
      %s53 = int_to_ptr.hbm [resolvable:$true] %s52
      %s54 = sshll.u32 [#allocation8], 4
      %s55 = int_to_ptr.vmem [resolvable:$true] %s54
      %60 = dma.hbm_to_vmem [thread:$0]  %s53, 4096, %s55, [#allocation7], 256, 256, 16
    $region25: #{lstm_model_forward.1} parent=1 // pred_fallthru
      _
    // Predicated region
    $region26: #{lstm_model_forward.1} parent=1 // pred_check
      _
    $region27: #{lstm_model_forward.1} parent=1 // pred_check_branch
      %62 = sbr.rel (0) target = $region29
    $region28: #{lstm_model_forward.1} parent=1 // pred_region
      _
    $region29: #{lstm_model_forward.1} parent=1 // pred_fallthru
      _
    // Predicated region
    $region30: #{lstm_model_forward.1} parent=1 // pred_check
      _
    $region31: #{lstm_model_forward.1} parent=1 // pred_check_branch
      %64 = sbr.rel (0) target = $region33
    $region32: #{lstm_model_forward.1} parent=1 // pred_region
      _
    $region33: #{lstm_model_forward.1} parent=1 // pred_fallthru
      _
    // Predicated region
    $region34: #{lstm_model_forward.1} parent=1 // pred_check
      _
    $region35: #{lstm_model_forward.1} parent=1 // pred_check_branch
      %66 = sbr.rel (0) target = $region37
    $region36: #{lstm_model_forward.1} parent=1 // pred_region
      _
    $region37: #{lstm_model_forward.1} parent=1 // pred_fallthru
      _
    // Predicated region
    $region38: #{lstm_model_forward.1} parent=1 // pred_check
      _
    $region39: #{lstm_model_forward.1} parent=1 // pred_check_branch
      %68 = sbr.rel (0) target = $region41
    $region40: #{lstm_model_forward.1} parent=1 // pred_region
      %70 = dma.done [#allocation5], 4096
    $region41: #{lstm_model_forward.1} parent=1 // pred_fallthru
      _
    // Predicated region
    $region42: #{lstm_model_forward.1} parent=1 // pred_check
      _
    $region43: #{lstm_model_forward.1} parent=1 // pred_check_branch
      %72 = sbr.rel (0) target = $region45
    $region44: #{lstm_model_forward.1} parent=1 // pred_region
      %74 = dma.done [#allocation7], 4096
    $region45: #{lstm_model_forward.1} parent=1 // pred_fallthru
      _
    // Predicated region
    $region46: #{lstm_model_forward.1} parent=1 // pred_check
      _
    $region47: #{lstm_model_forward.1} parent=1 // pred_check_branch
      %76 = sbr.rel (0) target = $region49
    $region48: #{lstm_model_forward.1} parent=1 // pred_region
      %78 = dma.done [#allocation7], 4096
    $region49: #{lstm_model_forward.1} parent=1 // pred_fallthru
      _
    %v80 = vld [vmem:[%s1] sm:$0xff]
    %v81 = vld [vmem:[#allocation4] sm:$0xff]
    %v82 = vld [vmem:[#allocation4 + $0x8] sm:$0xff]
    %v83 = vld [vmem:[#allocation4 + $0x10] sm:$0xff]
    %v84 = vld [vmem:[#allocation4 + $0x18] sm:$0xff]
    %v85 = vld [vmem:[#allocation4 + $0x20] sm:$0xff]
    %v86 = vld [vmem:[#allocation4 + $0x28] sm:$0xff]
    %v87 = vld [vmem:[#allocation4 + $0x30] sm:$0xff]
    %v88 = vld [vmem:[#allocation4 + $0x38] sm:$0xff]
    %v89 = vld [vmem:[#allocation4 + $0x40] sm:$0xff]
    %v90 = vld [vmem:[#allocation4 + $0x48] sm:$0xff]
    %v91 = vld [vmem:[#allocation4 + $0x50] sm:$0xff]
    %v92 = vld [vmem:[#allocation4 + $0x58] sm:$0xff]
    %v93 = vld [vmem:[#allocation4 + $0x60] sm:$0xff]
    %v94 = vld [vmem:[#allocation4 + $0x68] sm:$0xff]
    %v95 = vld [vmem:[#allocation4 + $0x70] sm:$0xff]
    %v96 = vld [vmem:[#allocation4 + $0x78] sm:$0xff]
    %v97 = vld [vmem:[#allocation4 + $0x80] sm:$0xff]
    %v98 = vld [vmem:[#allocation4 + $0x88] sm:$0xff]
    %v99 = vld [vmem:[#allocation4 + $0x90] sm:$0xff]
    %v100 = vld [vmem:[#allocation4 + $0x98] sm:$0xff]
    %v101 = vld [vmem:[#allocation4 + $0xa0] sm:$0xff]
    %v102 = vld [vmem:[#allocation4 + $0xa8] sm:$0xff]
    %v103 = vld [vmem:[#allocation4 + $0xb0] sm:$0xff]
    %v104 = vld [vmem:[#allocation4 + $0xb8] sm:$0xff]
    %v105 = vld [vmem:[#allocation4 + $0xc0] sm:$0xff]
    %v106 = vld [vmem:[#allocation4 + $0xc8] sm:$0xff]
    %v107 = vld [vmem:[#allocation4 + $0xd0] sm:$0xff]
    %v108 = vld [vmem:[#allocation4 + $0xd8] sm:$0xff]
    %v109 = vld [vmem:[#allocation4 + $0xe0] sm:$0xff]
    %v110 = vld [vmem:[#allocation4 + $0xe8] sm:$0xff]
    %v111 = vld [vmem:[#allocation4 + $0xf0] sm:$0xff]
    %v112 = vld [vmem:[#allocation4 + $0xf8] sm:$0xff]
    %v113 = vld [vmem:[%s3] sm:$0xf]
    %v114 = vld [vmem:[%s0] sm:$0xff]
    %v115 = vld [vmem:[%s0 + $0x8] sm:$0xff]
    %v116 = vld [vmem:[%s0 + $0x10] sm:$0xff]
    %v117 = vld [vmem:[%s0 + $0x18] sm:$0xff]
    %v118 = vld [vmem:[%s0 + $0x20] sm:$0xff]
    %v119 = vld [vmem:[%s0 + $0x28] sm:$0xff]
    %v120 = vld [vmem:[%s0 + $0x30] sm:$0xff]
    %v121 = vld [vmem:[%s0 + $0x38] sm:$0xff]
    %v122 = vpack.c.bf16 %v115, %v114
    %v123 = vpack.c.bf16 %v117, %v116
    %v124 = vpack.c.bf16 %v119, %v118
    %v125 = vpack.c.bf16 %v121, %v120
    %v127 = vperm.slane %v113, 0
    %v128 = vperm.slane %v113, 1
    %v129 = vperm.slane %v113, 2
    %v130 = vperm.slane %v113, 3
    %136 = vst [vmem:[#allocation1] ss:$4 sm:$0xff] %v80
    %v137 = vld.sshfl [vmem:[#allocation1] sm:$0xff pattern:$0x73625140]
    %v138 = vld.sshfl [vmem:[#allocation1 + $0x8] sm:$0xff pattern:$0x73625140]
    %v139 = vld.sshfl [vmem:[#allocation1 + $0x10] sm:$0xff pattern:$0x73625140]
    %v140 = vld.sshfl [vmem:[#allocation1 + $0x18] sm:$0xff pattern:$0x73625140]
    %vm141 = vcmask 31744
    %v143 = vsel %vm141, %v122, 0
    %v146 = vsel %vm141, %v123, 0
    %v149 = vsel %vm141, %v124, 0
    %v152 = vsel %vm141, %v125, 0
    %vm154 = vcmask 1041408
    %v155 = vsel %vm154, %v137, 0
    %v157 = vsel %vm154, %v138, 0
    %v159 = vsel %vm154, %v139, 0
    %v161 = vsel %vm154, %v140, 0
    %163 = vmatpush.bf16.msra.mxu0 0
    %164 = vmatpush.bf16.msra.mxu0 0
    %165 = vmatpush.bf16.msra.mxu0 0
    %166 = vmatpush.bf16.msra.mxu0 0
    %167 = vmatpush.bf16.msra.mxu0 0
    %168 = vmatpush.bf16.msra.mxu0 0
    %169 = vmatpush.bf16.msra.mxu0 0
    %170 = vmatpush.bf16.msra.mxu0 %v155
    %171 = vmatmul.bf16.gmra.mxu0 %v143
    %v172 = vpop.f32.mrf.mxu0
    %v173 = vadd.f32 %v127, %v172
    %v174 = vpop.f32.mrf.mxu0
    %v175 = vadd.f32 %v127, %v174
    %176 = vmatmul.bf16.gmra.mxu0 %v146
    %v177 = vpop.f32.mrf.mxu0
    %v178 = vadd.f32 %v127, %v177
    %v179 = vpop.f32.mrf.mxu0
    %v180 = vadd.f32 %v127, %v179
    %181 = vmatmul.bf16.gmra.mxu0 %v149
    %v182 = vpop.f32.mrf.mxu0
    %v183 = vadd.f32 %v127, %v182
    %v184 = vpop.f32.mrf.mxu0
    %v185 = vadd.f32 %v127, %v184
    %186 = vmatmul.bf16.gmra.mxu0 %v152
    %v187 = vpop.f32.mrf.mxu0
    %v188 = vadd.f32 %v127, %v187
    %v189 = vpop.f32.mrf.mxu0
    %v190 = vadd.f32 %v127, %v189
    %191 = vdwg.mxu0
    %192 = vmatpush.bf16.msra.mxu0 0
    %193 = vmatpush.bf16.msra.mxu0 0
    %194 = vmatpush.bf16.msra.mxu0 0
    %195 = vmatpush.bf16.msra.mxu0 0
    %196 = vmatpush.bf16.msra.mxu0 0
    %197 = vmatpush.bf16.msra.mxu0 0
    %198 = vmatpush.bf16.msra.mxu0 0
    %199 = vmatpush.bf16.msra.mxu0 %v157
    %200 = vmatmul.bf16.gmra.mxu0 %v143
    %v201 = vpop.f32.mrf.mxu0
    %v202 = vadd.f32 %v128, %v201
    %v203 = vpop.f32.mrf.mxu0
    %v204 = vadd.f32 %v128, %v203
    %205 = vmatmul.bf16.gmra.mxu0 %v146
    %v206 = vpop.f32.mrf.mxu0
    %v207 = vadd.f32 %v128, %v206
    %v208 = vpop.f32.mrf.mxu0
    %v209 = vadd.f32 %v128, %v208
    %210 = vmatmul.bf16.gmra.mxu0 %v149
    %v211 = vpop.f32.mrf.mxu0
    %v212 = vadd.f32 %v128, %v211
    %v213 = vpop.f32.mrf.mxu0
    %v214 = vadd.f32 %v128, %v213
    %215 = vmatmul.bf16.gmra.mxu0 %v152
    %v216 = vpop.f32.mrf.mxu0
    %v217 = vadd.f32 %v128, %v216
    %v218 = vpop.f32.mrf.mxu0
    %v219 = vadd.f32 %v128, %v218
    %220 = vdwg.mxu0
    %221 = vmatpush.bf16.msra.mxu0 0
    %222 = vmatpush.bf16.msra.mxu0 0
    %223 = vmatpush.bf16.msra.mxu0 0
    %224 = vmatpush.bf16.msra.mxu0 0
    %225 = vmatpush.bf16.msra.mxu0 0
    %226 = vmatpush.bf16.msra.mxu0 0
    %227 = vmatpush.bf16.msra.mxu0 0
    %228 = vmatpush.bf16.msra.mxu0 %v159
    %229 = vmatmul.bf16.gmra.mxu0 %v143
    %v230 = vpop.f32.mrf.mxu0
    %v231 = vadd.f32 %v129, %v230
    %v232 = vpop.f32.mrf.mxu0
    %v233 = vadd.f32 %v129, %v232
    %234 = vmatmul.bf16.gmra.mxu0 %v146
    %v235 = vpop.f32.mrf.mxu0
    %v236 = vadd.f32 %v129, %v235
    %v237 = vpop.f32.mrf.mxu0
    %v238 = vadd.f32 %v129, %v237
    %239 = vmatmul.bf16.gmra.mxu0 %v149
    %v240 = vpop.f32.mrf.mxu0
    %v241 = vadd.f32 %v129, %v240
    %v242 = vpop.f32.mrf.mxu0
    %v243 = vadd.f32 %v129, %v242
    %244 = vmatmul.bf16.gmra.mxu0 %v152
    %v245 = vpop.f32.mrf.mxu0
    %v246 = vadd.f32 %v129, %v245
    %v247 = vpop.f32.mrf.mxu0
    %v248 = vadd.f32 %v129, %v247
    %249 = vdwg.mxu0
    %250 = vmatpush.bf16.msra.mxu0 0
    %251 = vmatpush.bf16.msra.mxu0 0
    %252 = vmatpush.bf16.msra.mxu0 0
    %253 = vmatpush.bf16.msra.mxu0 0
    %254 = vmatpush.bf16.msra.mxu0 0
    %255 = vmatpush.bf16.msra.mxu0 0
    %256 = vmatpush.bf16.msra.mxu0 0
    %257 = vmatpush.bf16.msra.mxu0 %v161
    %258 = vmatmul.bf16.gmra.mxu0 %v143
    %v259 = vpop.f32.mrf.mxu0
    %v260 = vadd.f32 %v130, %v259
    %v261 = vpop.f32.mrf.mxu0
    %v262 = vadd.f32 %v130, %v261
    %263 = vmatmul.bf16.gmra.mxu0 %v146
    %v264 = vpop.f32.mrf.mxu0
    %v265 = vadd.f32 %v130, %v264
    %v266 = vpop.f32.mrf.mxu0
    %v267 = vadd.f32 %v130, %v266
    %268 = vmatmul.bf16.gmra.mxu0 %v149
    %v269 = vpop.f32.mrf.mxu0
    %v270 = vadd.f32 %v130, %v269
    %v271 = vpop.f32.mrf.mxu0
    %v272 = vadd.f32 %v130, %v271
    %273 = vmatmul.bf16.gmra.mxu0 %v152
    %v274 = vpop.f32.mrf.mxu0
    %v275 = vadd.f32 %v130, %v274
    %v276 = vpop.f32.mrf.mxu0
    %v277 = vadd.f32 %v130, %v276
    %278 = vdwg.mxu0
    %279 = vst [vmem:[#allocation2] sm:$0xff] %v173
    %280 = vst [vmem:[#allocation2 + $0x8] sm:$0xff] %v202
    %281 = vst [vmem:[#allocation2 + $0x10] sm:$0xff] %v231
    %282 = vst [vmem:[#allocation2 + $0x18] sm:$0xff] %v260
    %283 = vst [vmem:[#allocation2 + $0x20] sm:$0xff] %v175
    %284 = vst [vmem:[#allocation2 + $0x28] sm:$0xff] %v204
    %285 = vst [vmem:[#allocation2 + $0x30] sm:$0xff] %v233
    %286 = vst [vmem:[#allocation2 + $0x38] sm:$0xff] %v262
    %287 = vst [vmem:[#allocation2 + $0x40] sm:$0xff] %v178
    %288 = vst [vmem:[#allocation2 + $0x48] sm:$0xff] %v207
    %289 = vst [vmem:[#allocation2 + $0x50] sm:$0xff] %v236
    %290 = vst [vmem:[#allocation2 + $0x58] sm:$0xff] %v265
    %291 = vst [vmem:[#allocation2 + $0x60] sm:$0xff] %v180
    %292 = vst [vmem:[#allocation2 + $0x68] sm:$0xff] %v209
    %293 = vst [vmem:[#allocation2 + $0x70] sm:$0xff] %v238
    %294 = vst [vmem:[#allocation2 + $0x78] sm:$0xff] %v267
    %295 = vst [vmem:[#allocation2 + $0x80] sm:$0xff] %v183
    %296 = vst [vmem:[#allocation2 + $0x88] sm:$0xff] %v212
    %297 = vst [vmem:[#allocation2 + $0x90] sm:$0xff] %v241
    %298 = vst [vmem:[#allocation2 + $0x98] sm:$0xff] %v270
    %299 = vst [vmem:[#allocation2 + $0xa0] sm:$0xff] %v185
    %300 = vst [vmem:[#allocation2 + $0xa8] sm:$0xff] %v214
    %301 = vst [vmem:[#allocation2 + $0xb0] sm:$0xff] %v243
    %302 = vst [vmem:[#allocation2 + $0xb8] sm:$0xff] %v272
    %303 = vst [vmem:[#allocation2 + $0xc0] sm:$0xff] %v188
    %304 = vst [vmem:[#allocation2 + $0xc8] sm:$0xff] %v217
    %305 = vst [vmem:[#allocation2 + $0xd0] sm:$0xff] %v246
    %306 = vst [vmem:[#allocation2 + $0xd8] sm:$0xff] %v275
    %307 = vst [vmem:[#allocation2 + $0xe0] sm:$0xff] %v190
    %308 = vst [vmem:[#allocation2 + $0xe8] sm:$0xff] %v219
    %309 = vst [vmem:[#allocation2 + $0xf0] sm:$0xff] %v248
    %310 = vst [vmem:[#allocation2 + $0xf8] sm:$0xff] %v277
    %v311 = vld [vmem:[#allocation2] sm:$0xff]
    %v312 = vld [vmem:[#allocation2 + $0x8] sm:$0xff]
    %v313 = vld [vmem:[#allocation2 + $0x10] sm:$0xff]
    %v314 = vld [vmem:[#allocation2 + $0x18] sm:$0xff]
    %v347 = vunpack.c.l.b16 %v81
    %v348 = vunpack.c.h.b16 %v81
    %v349 = vunpack.c.l.b16 %v82
    %v350 = vunpack.c.h.b16 %v82
    %v351 = vunpack.c.l.b16 %v83
    %v352 = vunpack.c.h.b16 %v83
    %v353 = vunpack.c.l.b16 %v84
    %v354 = vunpack.c.h.b16 %v84
    %v355 = vunpack.c.l.b16 %v85
    %v356 = vunpack.c.h.b16 %v85
    %v357 = vunpack.c.l.b16 %v86
    %v358 = vunpack.c.h.b16 %v86
    %v359 = vunpack.c.l.b16 %v87
    %v360 = vunpack.c.h.b16 %v87
    %v361 = vunpack.c.l.b16 %v88
    %v362 = vunpack.c.h.b16 %v88
    %v363 = vunpack.c.l.b16 %v89
    %v364 = vunpack.c.h.b16 %v89
    %v365 = vunpack.c.l.b16 %v90
    %v366 = vunpack.c.h.b16 %v90
    %v367 = vunpack.c.l.b16 %v91
    %v368 = vunpack.c.h.b16 %v91
    %v369 = vunpack.c.l.b16 %v92
    %v370 = vunpack.c.h.b16 %v92
    %v371 = vunpack.c.l.b16 %v93
    %v372 = vunpack.c.h.b16 %v93
    %v373 = vunpack.c.l.b16 %v94
    %v374 = vunpack.c.h.b16 %v94
    %v375 = vunpack.c.l.b16 %v95
    %v376 = vunpack.c.h.b16 %v95
    %v377 = vunpack.c.l.b16 %v96
    %v378 = vunpack.c.h.b16 %v96
    %v379 = vunpack.c.l.b16 %v97
    %v380 = vunpack.c.h.b16 %v97
    %v381 = vunpack.c.l.b16 %v98
    %v382 = vunpack.c.h.b16 %v98
    %v383 = vunpack.c.l.b16 %v99
    %v384 = vunpack.c.h.b16 %v99
    %v385 = vunpack.c.l.b16 %v100
    %v386 = vunpack.c.h.b16 %v100
    %v387 = vunpack.c.l.b16 %v101
    %v388 = vunpack.c.h.b16 %v101
    %v389 = vunpack.c.l.b16 %v102
    %v390 = vunpack.c.h.b16 %v102
    %v391 = vunpack.c.l.b16 %v103
    %v392 = vunpack.c.h.b16 %v103
    %v393 = vunpack.c.l.b16 %v104
    %v394 = vunpack.c.h.b16 %v104
    %v395 = vunpack.c.l.b16 %v105
    %v396 = vunpack.c.h.b16 %v105
    %v397 = vunpack.c.l.b16 %v106
    %v398 = vunpack.c.h.b16 %v106
    %v399 = vunpack.c.l.b16 %v107
    %v400 = vunpack.c.h.b16 %v107
    %v401 = vunpack.c.l.b16 %v108
    %v402 = vunpack.c.h.b16 %v108
    %v403 = vunpack.c.l.b16 %v109
    %v404 = vunpack.c.h.b16 %v109
    %v405 = vunpack.c.l.b16 %v110
    %v406 = vunpack.c.h.b16 %v110
    %v407 = vunpack.c.l.b16 %v111
    %v408 = vunpack.c.h.b16 %v111
    %v409 = vunpack.c.l.b16 %v112
    %v410 = vunpack.c.h.b16 %v112
    %v411 = vpack.c.b16 %v351, %v347
    %v412 = vpack.c.b16 %v352, %v348
    %v413 = vpack.c.b16 %v353, %v349
    %v414 = vpack.c.b16 %v354, %v350
    %v415 = vpack.c.b16 %v359, %v355
    %v416 = vpack.c.b16 %v360, %v356
    %v417 = vpack.c.b16 %v361, %v357
    %v418 = vpack.c.b16 %v362, %v358
    %v419 = vpack.c.b16 %v367, %v363
    %v420 = vpack.c.b16 %v368, %v364
    %v421 = vpack.c.b16 %v369, %v365
    %v422 = vpack.c.b16 %v370, %v366
    %v423 = vpack.c.b16 %v375, %v371
    %v424 = vpack.c.b16 %v376, %v372
    %v425 = vpack.c.b16 %v377, %v373
    %v426 = vpack.c.b16 %v378, %v374
    %v427 = vpack.c.b16 %v383, %v379
    %v428 = vpack.c.b16 %v384, %v380
    %v429 = vpack.c.b16 %v385, %v381
    %v430 = vpack.c.b16 %v386, %v382
    %v431 = vpack.c.b16 %v391, %v387
    %v432 = vpack.c.b16 %v392, %v388
    %v433 = vpack.c.b16 %v393, %v389
    %v434 = vpack.c.b16 %v394, %v390
    %v435 = vpack.c.b16 %v399, %v395
    %v436 = vpack.c.b16 %v400, %v396
    %v437 = vpack.c.b16 %v401, %v397
    %v438 = vpack.c.b16 %v402, %v398
    %v439 = vpack.c.b16 %v407, %v403
    %v440 = vpack.c.b16 %v408, %v404
    %v441 = vpack.c.b16 %v409, %v405
    %v442 = vpack.c.b16 %v410, %v406
    %475 = vmatpush.bf16.msra.mxu0 %v439
    %476 = vmatpush.bf16.msra.mxu0 %v435
    %477 = vmatpush.bf16.msra.mxu0 %v431
    %478 = vmatpush.bf16.msra.mxu0 %v427
    %479 = vmatpush.bf16.msra.mxu0 %v423
    %480 = vmatpush.bf16.msra.mxu0 %v419
    %481 = vmatpush.bf16.msra.mxu0 %v415
    %482 = vmatpush.bf16.msra.mxu0 %v411
    %483 = vmatmul.bf16.gmra.mxu0 0
    %v484 = vpop.f32.mrf.mxu0
    %v485 = vadd.f32 0.0, %v484
    %v486 = vpop.f32.mrf.mxu0
    %487 = vdwg.mxu0
    %488 = vmatpush.bf16.msra.mxu0 %v440
    %489 = vmatpush.bf16.msra.mxu0 %v436
    %490 = vmatpush.bf16.msra.mxu0 %v432
    %491 = vmatpush.bf16.msra.mxu0 %v428
    %492 = vmatpush.bf16.msra.mxu0 %v424
    %493 = vmatpush.bf16.msra.mxu0 %v420
    %494 = vmatpush.bf16.msra.mxu0 %v416
    %495 = vmatpush.bf16.msra.mxu0 %v412
    %496 = vmatmul.bf16.gmra.mxu0 0
    %v497 = vpop.f32.mrf.mxu0
    %v498 = vadd.f32 0.0, %v497
    %v499 = vpop.f32.mrf.mxu0
    %500 = vdwg.mxu0
    %501 = vmatpush.bf16.msra.mxu0 %v441
    %502 = vmatpush.bf16.msra.mxu0 %v437
    %503 = vmatpush.bf16.msra.mxu0 %v433
    %504 = vmatpush.bf16.msra.mxu0 %v429
    %505 = vmatpush.bf16.msra.mxu0 %v425
    %506 = vmatpush.bf16.msra.mxu0 %v421
    %507 = vmatpush.bf16.msra.mxu0 %v417
    %508 = vmatpush.bf16.msra.mxu0 %v413
    %509 = vmatmul.bf16.gmra.mxu0 0
    %v510 = vpop.f32.mrf.mxu0
    %v511 = vadd.f32 0.0, %v510
    %v512 = vpop.f32.mrf.mxu0
    %513 = vdwg.mxu0
    %514 = vmatpush.bf16.msra.mxu0 %v442
    %515 = vmatpush.bf16.msra.mxu0 %v438
    %516 = vmatpush.bf16.msra.mxu0 %v434
    %517 = vmatpush.bf16.msra.mxu0 %v430
    %518 = vmatpush.bf16.msra.mxu0 %v426
    %519 = vmatpush.bf16.msra.mxu0 %v422
    %520 = vmatpush.bf16.msra.mxu0 %v418
    %521 = vmatpush.bf16.msra.mxu0 %v414
    %522 = vmatmul.bf16.gmra.mxu0 0
    %v523 = vpop.f32.mrf.mxu0
    %v524 = vadd.f32 0.0, %v523
    %v525 = vpop.f32.mrf.mxu0
    %526 = vdwg.mxu0
    %v527 = vadd.f32 %v311, %v485
    %v528 = vadd.f32 %v312, %v498
    %v529 = vadd.f32 %v313, %v511
    %v530 = vadd.f32 %v314, %v524
    %v531 = vxor.u32 %v527, 2147483648
    %v532 = vmul.f32 %v531, 1.442695
    %v533 = vpow.pop %v532
    %v534 = vadd.f32 %v533, 1.0
    %v535 = vrcp.pop %v534
    %v536 = vmul.f32 %v534, %v535
    %v537 = vsub.f32 1.0, %v536
    %v538 = vmul.f32 %v535, %v537
    %v539 = vadd.f32 %v535, %v538
    %vm540 = vweird.f32 %v534
    %vm541 = vweird.f32 %v535
    %vm542 = vmor %vm540, %vm541
    %v543 = vsel %vm542, %v535, %v539
    %v544 = vand.u32 2147483647, %v534
    %vm545 = vcmp.eq.f32.partialorder %v544, 8.507059e+37
    %v546 = vand.u32 %v534, 2147483648
    %v547 = vor.u32 1.1754944e-38, %v546
    %v548 = vsel %vm545, %v547, %v543
    %v549 = vmul.f32 1.0, %v548
    %v550 = vxor.u32 %v528, 2147483648
    %v551 = vmul.f32 %v550, 1.442695
    %v552 = vpow.pop %v551
    %v553 = vadd.f32 %v552, 1.0
    %v554 = vrcp.pop %v553
    %v555 = vmul.f32 %v553, %v554
    %v556 = vsub.f32 1.0, %v555
    %v557 = vmul.f32 %v554, %v556
    %v558 = vadd.f32 %v554, %v557
    %vm559 = vweird.f32 %v553
    %vm560 = vweird.f32 %v554
    %vm561 = vmor %vm559, %vm560
    %v562 = vsel %vm561, %v554, %v558
    %v563 = vand.u32 2147483647, %v553
    %vm564 = vcmp.eq.f32.partialorder %v563, 8.507059e+37
    %v565 = vand.u32 %v553, 2147483648
    %v566 = vor.u32 1.1754944e-38, %v565
    %v567 = vsel %vm564, %v566, %v562
    %v568 = vmul.f32 1.0, %v567
    %v569 = vtanh.pop %v529
    %v570 = vxor.u32 %v530, 2147483648
    %v571 = vmul.f32 %v570, 1.442695
    %v572 = vpow.pop %v571
    %v573 = vadd.f32 %v572, 1.0
    %v574 = vrcp.pop %v573
    %v575 = vmul.f32 %v573, %v574
    %v576 = vsub.f32 1.0, %v575
    %v577 = vmul.f32 %v574, %v576
    %v578 = vadd.f32 %v574, %v577
    %vm579 = vweird.f32 %v573
    %vm580 = vweird.f32 %v574
    %vm581 = vmor %vm579, %vm580
    %v582 = vsel %vm581, %v574, %v578
    %v583 = vand.u32 2147483647, %v573
    %vm584 = vcmp.eq.f32.partialorder %v583, 8.507059e+37
    %v585 = vand.u32 %v573, 2147483648
    %v586 = vor.u32 1.1754944e-38, %v585
    %v587 = vsel %vm584, %v586, %v582
    %v588 = vmul.f32 1.0, %v587
    %v589 = vmul.f32 %v568, 0.0
    %v590 = vmul.f32 %v549, %v569
    %v591 = vadd.f32 %v589, %v590
    %v592 = vtanh.pop %v591
    %v593 = vmul.f32 %v588, %v592
    %v594 = vpack.c.bf16 %v593, %v593
    %595 = vst [vmem:[#allocation3] sm:$0xf] %v594
    %s596 = scalar_lea.vmem [#allocation2], 32
    %v597 = vld [vmem:[%s596] sm:$0xff]
    %v598 = vld [vmem:[%s596 + $0x8] sm:$0xff]
    %v599 = vld [vmem:[%s596 + $0x10] sm:$0xff]
    %v600 = vld [vmem:[%s596 + $0x18] sm:$0xff]
    %601 = vmatpush.bf16.msra.mxu0 %v439
    %602 = vmatpush.bf16.msra.mxu0 %v435
    %603 = vmatpush.bf16.msra.mxu0 %v431
    %604 = vmatpush.bf16.msra.mxu0 %v427
    %605 = vmatpush.bf16.msra.mxu0 %v423
    %606 = vmatpush.bf16.msra.mxu0 %v419
    %607 = vmatpush.bf16.msra.mxu0 %v415
    %608 = vmatpush.bf16.msra.mxu0 %v411
    %609 = vmatmul.bf16.gmra.mxu0 %v594
    %v610 = vpop.f32.mrf.mxu0
    %v611 = vadd.f32 0.0, %v610
    %v612 = vpop.f32.mrf.mxu0
    %613 = vdwg.mxu0
    %614 = vmatpush.bf16.msra.mxu0 %v440
    %615 = vmatpush.bf16.msra.mxu0 %v436
    %616 = vmatpush.bf16.msra.mxu0 %v432
    %617 = vmatpush.bf16.msra.mxu0 %v428
    %618 = vmatpush.bf16.msra.mxu0 %v424
    %619 = vmatpush.bf16.msra.mxu0 %v420
    %620 = vmatpush.bf16.msra.mxu0 %v416
    %621 = vmatpush.bf16.msra.mxu0 %v412
    %622 = vmatmul.bf16.gmra.mxu0 %v594
    %v623 = vpop.f32.mrf.mxu0
    %v624 = vadd.f32 0.0, %v623
    %v625 = vpop.f32.mrf.mxu0
    %626 = vdwg.mxu0
    %627 = vmatpush.bf16.msra.mxu0 %v441
    %628 = vmatpush.bf16.msra.mxu0 %v437
    %629 = vmatpush.bf16.msra.mxu0 %v433
    %630 = vmatpush.bf16.msra.mxu0 %v429
    %631 = vmatpush.bf16.msra.mxu0 %v425
    %632 = vmatpush.bf16.msra.mxu0 %v421
    %633 = vmatpush.bf16.msra.mxu0 %v417
    %634 = vmatpush.bf16.msra.mxu0 %v413
    %635 = vmatmul.bf16.gmra.mxu0 %v594
    %v636 = vpop.f32.mrf.mxu0
    %v637 = vadd.f32 0.0, %v636
    %v638 = vpop.f32.mrf.mxu0
    %639 = vdwg.mxu0
    %640 = vmatpush.bf16.msra.mxu0 %v442
    %641 = vmatpush.bf16.msra.mxu0 %v438
    %642 = vmatpush.bf16.msra.mxu0 %v434
    %643 = vmatpush.bf16.msra.mxu0 %v430
    %644 = vmatpush.bf16.msra.mxu0 %v426
    %645 = vmatpush.bf16.msra.mxu0 %v422
    %646 = vmatpush.bf16.msra.mxu0 %v418
    %647 = vmatpush.bf16.msra.mxu0 %v414
    %648 = vmatmul.bf16.gmra.mxu0 %v594
    %v649 = vpop.f32.mrf.mxu0
    %v650 = vadd.f32 0.0, %v649
    %v651 = vpop.f32.mrf.mxu0
    %652 = vdwg.mxu0
    %v653 = vadd.f32 %v597, %v611
    %v654 = vadd.f32 %v598, %v624
    %v655 = vadd.f32 %v599, %v637
    %v656 = vadd.f32 %v600, %v650
    %v657 = vxor.u32 %v653, 2147483648
    %v658 = vmul.f32 %v657, 1.442695
    %v659 = vpow.pop %v658
    %v660 = vadd.f32 %v659, 1.0
    %v661 = vrcp.pop %v660
    %v662 = vmul.f32 %v660, %v661
    %v663 = vsub.f32 1.0, %v662
    %v664 = vmul.f32 %v661, %v663
    %v665 = vadd.f32 %v661, %v664
    %vm666 = vweird.f32 %v660
    %vm667 = vweird.f32 %v661
    %vm668 = vmor %vm666, %vm667
    %v669 = vsel %vm668, %v661, %v665
    %v670 = vand.u32 2147483647, %v660
    %vm671 = vcmp.eq.f32.partialorder %v670, 8.507059e+37
    %v672 = vand.u32 %v660, 2147483648
    %v673 = vor.u32 1.1754944e-38, %v672
    %v674 = vsel %vm671, %v673, %v669
    %v675 = vmul.f32 1.0, %v674
    %v676 = vxor.u32 %v654, 2147483648
    %v677 = vmul.f32 %v676, 1.442695
    %v678 = vpow.pop %v677
    %v679 = vadd.f32 %v678, 1.0
    %v680 = vrcp.pop %v679
    %v681 = vmul.f32 %v679, %v680
    %v682 = vsub.f32 1.0, %v681
    %v683 = vmul.f32 %v680, %v682
    %v684 = vadd.f32 %v680, %v683
    %vm685 = vweird.f32 %v679
    %vm686 = vweird.f32 %v680
    %vm687 = vmor %vm685, %vm686
    %v688 = vsel %vm687, %v680, %v684
    %v689 = vand.u32 2147483647, %v679
    %vm690 = vcmp.eq.f32.partialorder %v689, 8.507059e+37
    %v691 = vand.u32 %v679, 2147483648
    %v692 = vor.u32 1.1754944e-38, %v691
    %v693 = vsel %vm690, %v692, %v688
    %v694 = vmul.f32 1.0, %v693
    %v695 = vtanh.pop %v655
    %v696 = vxor.u32 %v656, 2147483648
    %v697 = vmul.f32 %v696, 1.442695
    %v698 = vpow.pop %v697
    %v699 = vadd.f32 %v698, 1.0
    %v700 = vrcp.pop %v699
    %v701 = vmul.f32 %v699, %v700
    %v702 = vsub.f32 1.0, %v701
    %v703 = vmul.f32 %v700, %v702
    %v704 = vadd.f32 %v700, %v703
    %vm705 = vweird.f32 %v699
    %vm706 = vweird.f32 %v700
    %vm707 = vmor %vm705, %vm706
    %v708 = vsel %vm707, %v700, %v704
    %v709 = vand.u32 2147483647, %v699
    %vm710 = vcmp.eq.f32.partialorder %v709, 8.507059e+37
    %v711 = vand.u32 %v699, 2147483648
    %v712 = vor.u32 1.1754944e-38, %v711
    %v713 = vsel %vm710, %v712, %v708
    %v714 = vmul.f32 1.0, %v713
    %v715 = vmul.f32 %v694, %v591
    %v716 = vmul.f32 %v675, %v695
    %v717 = vadd.f32 %v715, %v716
    %v718 = vtanh.pop %v717
    %v719 = vmul.f32 %v714, %v718
    %v720 = vpack.c.bf16 %v719, %v719
    %s721 = scalar_lea.vmem [#allocation3], 4
    %722 = vst [vmem:[%s721] sm:$0xf] %v720
    %s723 = scalar_lea.vmem [#allocation2], 64
    %v724 = vld [vmem:[%s723] sm:$0xff]
    %v725 = vld [vmem:[%s723 + $0x8] sm:$0xff]
    %v726 = vld [vmem:[%s723 + $0x10] sm:$0xff]
    %v727 = vld [vmem:[%s723 + $0x18] sm:$0xff]
    %728 = vmatpush.bf16.msra.mxu0 %v439
    %729 = vmatpush.bf16.msra.mxu0 %v435
    %730 = vmatpush.bf16.msra.mxu0 %v431
    %731 = vmatpush.bf16.msra.mxu0 %v427
    %732 = vmatpush.bf16.msra.mxu0 %v423
    %733 = vmatpush.bf16.msra.mxu0 %v419
    %734 = vmatpush.bf16.msra.mxu0 %v415
    %735 = vmatpush.bf16.msra.mxu0 %v411
    %736 = vmatmul.bf16.gmra.mxu0 %v720
    %v737 = vpop.f32.mrf.mxu0
    %v738 = vadd.f32 0.0, %v737
    %v739 = vpop.f32.mrf.mxu0
    %740 = vdwg.mxu0
    %741 = vmatpush.bf16.msra.mxu0 %v440
    %742 = vmatpush.bf16.msra.mxu0 %v436
    %743 = vmatpush.bf16.msra.mxu0 %v432
    %744 = vmatpush.bf16.msra.mxu0 %v428
    %745 = vmatpush.bf16.msra.mxu0 %v424
    %746 = vmatpush.bf16.msra.mxu0 %v420
    %747 = vmatpush.bf16.msra.mxu0 %v416
    %748 = vmatpush.bf16.msra.mxu0 %v412
    %749 = vmatmul.bf16.gmra.mxu0 %v720
    %v750 = vpop.f32.mrf.mxu0
    %v751 = vadd.f32 0.0, %v750
    %v752 = vpop.f32.mrf.mxu0
    %753 = vdwg.mxu0
    %754 = vmatpush.bf16.msra.mxu0 %v441
    %755 = vmatpush.bf16.msra.mxu0 %v437
    %756 = vmatpush.bf16.msra.mxu0 %v433
    %757 = vmatpush.bf16.msra.mxu0 %v429
    %758 = vmatpush.bf16.msra.mxu0 %v425
    %759 = vmatpush.bf16.msra.mxu0 %v421
    %760 = vmatpush.bf16.msra.mxu0 %v417
    %761 = vmatpush.bf16.msra.mxu0 %v413
    %762 = vmatmul.bf16.gmra.mxu0 %v720
    %v763 = vpop.f32.mrf.mxu0
    %v764 = vadd.f32 0.0, %v763
    %v765 = vpop.f32.mrf.mxu0
    %766 = vdwg.mxu0
    %767 = vmatpush.bf16.msra.mxu0 %v442
    %768 = vmatpush.bf16.msra.mxu0 %v438
    %769 = vmatpush.bf16.msra.mxu0 %v434
    %770 = vmatpush.bf16.msra.mxu0 %v430
    %771 = vmatpush.bf16.msra.mxu0 %v426
    %772 = vmatpush.bf16.msra.mxu0 %v422
    %773 = vmatpush.bf16.msra.mxu0 %v418
    %774 = vmatpush.bf16.msra.mxu0 %v414
    %775 = vmatmul.bf16.gmra.mxu0 %v720
    %v776 = vpop.f32.mrf.mxu0
    %v777 = vadd.f32 0.0, %v776
    %v778 = vpop.f32.mrf.mxu0
    %779 = vdwg.mxu0
    %v780 = vadd.f32 %v724, %v738
    %v781 = vadd.f32 %v725, %v751
    %v782 = vadd.f32 %v726, %v764
    %v783 = vadd.f32 %v727, %v777
    %v784 = vxor.u32 %v780, 2147483648
    %v785 = vmul.f32 %v784, 1.442695
    %v786 = vpow.pop %v785
    %v787 = vadd.f32 %v786, 1.0
    %v788 = vrcp.pop %v787
    %v789 = vmul.f32 %v787, %v788
    %v790 = vsub.f32 1.0, %v789
    %v791 = vmul.f32 %v788, %v790
    %v792 = vadd.f32 %v788, %v791
    %vm793 = vweird.f32 %v787
    %vm794 = vweird.f32 %v788
    %vm795 = vmor %vm793, %vm794
    %v796 = vsel %vm795, %v788, %v792
    %v797 = vand.u32 2147483647, %v787
    %vm798 = vcmp.eq.f32.partialorder %v797, 8.507059e+37
    %v799 = vand.u32 %v787, 2147483648
    %v800 = vor.u32 1.1754944e-38, %v799
    %v801 = vsel %vm798, %v800, %v796
    %v802 = vmul.f32 1.0, %v801
    %v803 = vxor.u32 %v781, 2147483648
    %v804 = vmul.f32 %v803, 1.442695
    %v805 = vpow.pop %v804
    %v806 = vadd.f32 %v805, 1.0
    %v807 = vrcp.pop %v806
    %v808 = vmul.f32 %v806, %v807
    %v809 = vsub.f32 1.0, %v808
    %v810 = vmul.f32 %v807, %v809
    %v811 = vadd.f32 %v807, %v810
    %vm812 = vweird.f32 %v806
    %vm813 = vweird.f32 %v807
    %vm814 = vmor %vm812, %vm813
    %v815 = vsel %vm814, %v807, %v811
    %v816 = vand.u32 2147483647, %v806
    %vm817 = vcmp.eq.f32.partialorder %v816, 8.507059e+37
    %v818 = vand.u32 %v806, 2147483648
    %v819 = vor.u32 1.1754944e-38, %v818
    %v820 = vsel %vm817, %v819, %v815
    %v821 = vmul.f32 1.0, %v820
    %v822 = vtanh.pop %v782
    %v823 = vxor.u32 %v783, 2147483648
    %v824 = vmul.f32 %v823, 1.442695
    %v825 = vpow.pop %v824
    %v826 = vadd.f32 %v825, 1.0
    %v827 = vrcp.pop %v826
    %v828 = vmul.f32 %v826, %v827
    %v829 = vsub.f32 1.0, %v828
    %v830 = vmul.f32 %v827, %v829
    %v831 = vadd.f32 %v827, %v830
    %vm832 = vweird.f32 %v826
    %vm833 = vweird.f32 %v827
    %vm834 = vmor %vm832, %vm833
    %v835 = vsel %vm834, %v827, %v831
    %v836 = vand.u32 2147483647, %v826
    %vm837 = vcmp.eq.f32.partialorder %v836, 8.507059e+37
    %v838 = vand.u32 %v826, 2147483648
    %v839 = vor.u32 1.1754944e-38, %v838
    %v840 = vsel %vm837, %v839, %v835
    %v841 = vmul.f32 1.0, %v840
    %v842 = vmul.f32 %v821, %v717
    %v843 = vmul.f32 %v802, %v822
    %v844 = vadd.f32 %v842, %v843
    %v845 = vtanh.pop %v844
    %v846 = vmul.f32 %v841, %v845
    %v847 = vpack.c.bf16 %v846, %v846
    %s848 = scalar_lea.vmem [#allocation3], 8
    %849 = vst [vmem:[%s848] sm:$0xf] %v847
    %s850 = scalar_lea.vmem [#allocation2], 96
    %v851 = vld [vmem:[%s850] sm:$0xff]
    %v852 = vld [vmem:[%s850 + $0x8] sm:$0xff]
    %v853 = vld [vmem:[%s850 + $0x10] sm:$0xff]
    %v854 = vld [vmem:[%s850 + $0x18] sm:$0xff]
    %855 = vmatpush.bf16.msra.mxu0 %v439
    %856 = vmatpush.bf16.msra.mxu0 %v435
    %857 = vmatpush.bf16.msra.mxu0 %v431
    %858 = vmatpush.bf16.msra.mxu0 %v427
    %859 = vmatpush.bf16.msra.mxu0 %v423
    %860 = vmatpush.bf16.msra.mxu0 %v419
    %861 = vmatpush.bf16.msra.mxu0 %v415
    %862 = vmatpush.bf16.msra.mxu0 %v411
    %863 = vmatmul.bf16.gmra.mxu0 %v847
    %v864 = vpop.f32.mrf.mxu0
    %v865 = vadd.f32 0.0, %v864
    %v866 = vpop.f32.mrf.mxu0
    %867 = vdwg.mxu0
    %868 = vmatpush.bf16.msra.mxu0 %v440
    %869 = vmatpush.bf16.msra.mxu0 %v436
    %870 = vmatpush.bf16.msra.mxu0 %v432
    %871 = vmatpush.bf16.msra.mxu0 %v428
    %872 = vmatpush.bf16.msra.mxu0 %v424
    %873 = vmatpush.bf16.msra.mxu0 %v420
    %874 = vmatpush.bf16.msra.mxu0 %v416
    %875 = vmatpush.bf16.msra.mxu0 %v412
    %876 = vmatmul.bf16.gmra.mxu0 %v847
    %v877 = vpop.f32.mrf.mxu0
    %v878 = vadd.f32 0.0, %v877
    %v879 = vpop.f32.mrf.mxu0
    %880 = vdwg.mxu0
    %881 = vmatpush.bf16.msra.mxu0 %v441
    %882 = vmatpush.bf16.msra.mxu0 %v437
    %883 = vmatpush.bf16.msra.mxu0 %v433
    %884 = vmatpush.bf16.msra.mxu0 %v429
    %885 = vmatpush.bf16.msra.mxu0 %v425
    %886 = vmatpush.bf16.msra.mxu0 %v421
    %887 = vmatpush.bf16.msra.mxu0 %v417
    %888 = vmatpush.bf16.msra.mxu0 %v413
    %889 = vmatmul.bf16.gmra.mxu0 %v847
    %v890 = vpop.f32.mrf.mxu0
    %v891 = vadd.f32 0.0, %v890
    %v892 = vpop.f32.mrf.mxu0
    %893 = vdwg.mxu0
    %894 = vmatpush.bf16.msra.mxu0 %v442
    %895 = vmatpush.bf16.msra.mxu0 %v438
    %896 = vmatpush.bf16.msra.mxu0 %v434
    %897 = vmatpush.bf16.msra.mxu0 %v430
    %898 = vmatpush.bf16.msra.mxu0 %v426
    %899 = vmatpush.bf16.msra.mxu0 %v422
    %900 = vmatpush.bf16.msra.mxu0 %v418
    %901 = vmatpush.bf16.msra.mxu0 %v414
    %902 = vmatmul.bf16.gmra.mxu0 %v847
    %v903 = vpop.f32.mrf.mxu0
    %v904 = vadd.f32 0.0, %v903
    %v905 = vpop.f32.mrf.mxu0
    %906 = vdwg.mxu0
    %v907 = vadd.f32 %v851, %v865
    %v908 = vadd.f32 %v852, %v878
    %v909 = vadd.f32 %v853, %v891
    %v910 = vadd.f32 %v854, %v904
    %v911 = vxor.u32 %v907, 2147483648
    %v912 = vmul.f32 %v911, 1.442695
    %v913 = vpow.pop %v912
    %v914 = vadd.f32 %v913, 1.0
    %v915 = vrcp.pop %v914
    %v916 = vmul.f32 %v914, %v915
    %v917 = vsub.f32 1.0, %v916
    %v918 = vmul.f32 %v915, %v917
    %v919 = vadd.f32 %v915, %v918
    %vm920 = vweird.f32 %v914
    %vm921 = vweird.f32 %v915
    %vm922 = vmor %vm920, %vm921
    %v923 = vsel %vm922, %v915, %v919
    %v924 = vand.u32 2147483647, %v914
    %vm925 = vcmp.eq.f32.partialorder %v924, 8.507059e+37
    %v926 = vand.u32 %v914, 2147483648
    %v927 = vor.u32 1.1754944e-38, %v926
    %v928 = vsel %vm925, %v927, %v923
    %v929 = vmul.f32 1.0, %v928
    %v930 = vxor.u32 %v908, 2147483648
    %v931 = vmul.f32 %v930, 1.442695
    %v932 = vpow.pop %v931
    %v933 = vadd.f32 %v932, 1.0
    %v934 = vrcp.pop %v933
    %v935 = vmul.f32 %v933, %v934
    %v936 = vsub.f32 1.0, %v935
    %v937 = vmul.f32 %v934, %v936
    %v938 = vadd.f32 %v934, %v937
    %vm939 = vweird.f32 %v933
    %vm940 = vweird.f32 %v934
    %vm941 = vmor %vm939, %vm940
    %v942 = vsel %vm941, %v934, %v938
    %v943 = vand.u32 2147483647, %v933
    %vm944 = vcmp.eq.f32.partialorder %v943, 8.507059e+37
    %v945 = vand.u32 %v933, 2147483648
    %v946 = vor.u32 1.1754944e-38, %v945
    %v947 = vsel %vm944, %v946, %v942
    %v948 = vmul.f32 1.0, %v947
    %v949 = vtanh.pop %v909
    %v950 = vxor.u32 %v910, 2147483648
    %v951 = vmul.f32 %v950, 1.442695
    %v952 = vpow.pop %v951
    %v953 = vadd.f32 %v952, 1.0
    %v954 = vrcp.pop %v953
    %v955 = vmul.f32 %v953, %v954
    %v956 = vsub.f32 1.0, %v955
    %v957 = vmul.f32 %v954, %v956
    %v958 = vadd.f32 %v954, %v957
    %vm959 = vweird.f32 %v953
    %vm960 = vweird.f32 %v954
    %vm961 = vmor %vm959, %vm960
    %v962 = vsel %vm961, %v954, %v958
    %v963 = vand.u32 2147483647, %v953
    %vm964 = vcmp.eq.f32.partialorder %v963, 8.507059e+37
    %v965 = vand.u32 %v953, 2147483648
    %v966 = vor.u32 1.1754944e-38, %v965
    %v967 = vsel %vm964, %v966, %v962
    %v968 = vmul.f32 1.0, %v967
    %v969 = vmul.f32 %v948, %v844
    %v970 = vmul.f32 %v929, %v949
    %v971 = vadd.f32 %v969, %v970
    %v972 = vtanh.pop %v971
    %v973 = vmul.f32 %v968, %v972
    %v974 = vpack.c.bf16 %v973, %v973
    %s975 = scalar_lea.vmem [#allocation3], 12
    %976 = vst [vmem:[%s975] sm:$0xf] %v974
    %s977 = scalar_lea.vmem [#allocation2], 128
    %v978 = vld [vmem:[%s977] sm:$0xff]
    %v979 = vld [vmem:[%s977 + $0x8] sm:$0xff]
    %v980 = vld [vmem:[%s977 + $0x10] sm:$0xff]
    %v981 = vld [vmem:[%s977 + $0x18] sm:$0xff]
    %982 = vmatpush.bf16.msra.mxu0 %v439
    %983 = vmatpush.bf16.msra.mxu0 %v435
    %984 = vmatpush.bf16.msra.mxu0 %v431
    %985 = vmatpush.bf16.msra.mxu0 %v427
    %986 = vmatpush.bf16.msra.mxu0 %v423
    %987 = vmatpush.bf16.msra.mxu0 %v419
    %988 = vmatpush.bf16.msra.mxu0 %v415
    %989 = vmatpush.bf16.msra.mxu0 %v411
    %990 = vmatmul.bf16.gmra.mxu0 %v974
    %v991 = vpop.f32.mrf.mxu0
    %v992 = vadd.f32 0.0, %v991
    %v993 = vpop.f32.mrf.mxu0
    %994 = vdwg.mxu0
    %995 = vmatpush.bf16.msra.mxu0 %v440
    %996 = vmatpush.bf16.msra.mxu0 %v436
    %997 = vmatpush.bf16.msra.mxu0 %v432
    %998 = vmatpush.bf16.msra.mxu0 %v428
    %999 = vmatpush.bf16.msra.mxu0 %v424
    %1000 = vmatpush.bf16.msra.mxu0 %v420
    %1001 = vmatpush.bf16.msra.mxu0 %v416
    %1002 = vmatpush.bf16.msra.mxu0 %v412
    %1003 = vmatmul.bf16.gmra.mxu0 %v974
    %v1004 = vpop.f32.mrf.mxu0
    %v1005 = vadd.f32 0.0, %v1004
    %v1006 = vpop.f32.mrf.mxu0
    %1007 = vdwg.mxu0
    %1008 = vmatpush.bf16.msra.mxu0 %v441
    %1009 = vmatpush.bf16.msra.mxu0 %v437
    %1010 = vmatpush.bf16.msra.mxu0 %v433
    %1011 = vmatpush.bf16.msra.mxu0 %v429
    %1012 = vmatpush.bf16.msra.mxu0 %v425
    %1013 = vmatpush.bf16.msra.mxu0 %v421
    %1014 = vmatpush.bf16.msra.mxu0 %v417
    %1015 = vmatpush.bf16.msra.mxu0 %v413
    %1016 = vmatmul.bf16.gmra.mxu0 %v974
    %v1017 = vpop.f32.mrf.mxu0
    %v1018 = vadd.f32 0.0, %v1017
    %v1019 = vpop.f32.mrf.mxu0
    %1020 = vdwg.mxu0
    %1021 = vmatpush.bf16.msra.mxu0 %v442
    %1022 = vmatpush.bf16.msra.mxu0 %v438
    %1023 = vmatpush.bf16.msra.mxu0 %v434
    %1024 = vmatpush.bf16.msra.mxu0 %v430
    %1025 = vmatpush.bf16.msra.mxu0 %v426
    %1026 = vmatpush.bf16.msra.mxu0 %v422
    %1027 = vmatpush.bf16.msra.mxu0 %v418
    %1028 = vmatpush.bf16.msra.mxu0 %v414
    %1029 = vmatmul.bf16.gmra.mxu0 %v974
    %v1030 = vpop.f32.mrf.mxu0
    %v1031 = vadd.f32 0.0, %v1030
    %v1032 = vpop.f32.mrf.mxu0
    %1033 = vdwg.mxu0
    %v1034 = vadd.f32 %v978, %v992
    %v1035 = vadd.f32 %v979, %v1005
    %v1036 = vadd.f32 %v980, %v1018
    %v1037 = vadd.f32 %v981, %v1031
    %v1038 = vxor.u32 %v1034, 2147483648
    %v1039 = vmul.f32 %v1038, 1.442695
    %v1040 = vpow.pop %v1039
    %v1041 = vadd.f32 %v1040, 1.0
    %v1042 = vrcp.pop %v1041
    %v1043 = vmul.f32 %v1041, %v1042
    %v1044 = vsub.f32 1.0, %v1043
    %v1045 = vmul.f32 %v1042, %v1044
    %v1046 = vadd.f32 %v1042, %v1045
    %vm1047 = vweird.f32 %v1041
    %vm1048 = vweird.f32 %v1042
    %vm1049 = vmor %vm1047, %vm1048
    %v1050 = vsel %vm1049, %v1042, %v1046
    %v1051 = vand.u32 2147483647, %v1041
    %vm1052 = vcmp.eq.f32.partialorder %v1051, 8.507059e+37
    %v1053 = vand.u32 %v1041, 2147483648
    %v1054 = vor.u32 1.1754944e-38, %v1053
    %v1055 = vsel %vm1052, %v1054, %v1050
    %v1056 = vmul.f32 1.0, %v1055
    %v1057 = vxor.u32 %v1035, 2147483648
    %v1058 = vmul.f32 %v1057, 1.442695
    %v1059 = vpow.pop %v1058
    %v1060 = vadd.f32 %v1059, 1.0
    %v1061 = vrcp.pop %v1060
    %v1062 = vmul.f32 %v1060, %v1061
    %v1063 = vsub.f32 1.0, %v1062
    %v1064 = vmul.f32 %v1061, %v1063
    %v1065 = vadd.f32 %v1061, %v1064
    %vm1066 = vweird.f32 %v1060
    %vm1067 = vweird.f32 %v1061
    %vm1068 = vmor %vm1066, %vm1067
    %v1069 = vsel %vm1068, %v1061, %v1065
    %v1070 = vand.u32 2147483647, %v1060
    %vm1071 = vcmp.eq.f32.partialorder %v1070, 8.507059e+37
    %v1072 = vand.u32 %v1060, 2147483648
    %v1073 = vor.u32 1.1754944e-38, %v1072
    %v1074 = vsel %vm1071, %v1073, %v1069
    %v1075 = vmul.f32 1.0, %v1074
    %v1076 = vtanh.pop %v1036
    %v1077 = vxor.u32 %v1037, 2147483648
    %v1078 = vmul.f32 %v1077, 1.442695
    %v1079 = vpow.pop %v1078
    %v1080 = vadd.f32 %v1079, 1.0
    %v1081 = vrcp.pop %v1080
    %v1082 = vmul.f32 %v1080, %v1081
    %v1083 = vsub.f32 1.0, %v1082
    %v1084 = vmul.f32 %v1081, %v1083
    %v1085 = vadd.f32 %v1081, %v1084
    %vm1086 = vweird.f32 %v1080
    %vm1087 = vweird.f32 %v1081
    %vm1088 = vmor %vm1086, %vm1087
    %v1089 = vsel %vm1088, %v1081, %v1085
    %v1090 = vand.u32 2147483647, %v1080
    %vm1091 = vcmp.eq.f32.partialorder %v1090, 8.507059e+37
    %v1092 = vand.u32 %v1080, 2147483648
    %v1093 = vor.u32 1.1754944e-38, %v1092
    %v1094 = vsel %vm1091, %v1093, %v1089
    %v1095 = vmul.f32 1.0, %v1094
    %v1096 = vmul.f32 %v1075, %v971
    %v1097 = vmul.f32 %v1056, %v1076
    %v1098 = vadd.f32 %v1096, %v1097
    %v1099 = vtanh.pop %v1098
    %v1100 = vmul.f32 %v1095, %v1099
    %v1101 = vpack.c.bf16 %v1100, %v1100
    %s1102 = scalar_lea.vmem [#allocation3], 16
    %1103 = vst [vmem:[%s1102] sm:$0xf] %v1101
    %s1104 = scalar_lea.vmem [#allocation2], 160
    %v1105 = vld [vmem:[%s1104] sm:$0xff]
    %v1106 = vld [vmem:[%s1104 + $0x8] sm:$0xff]
    %v1107 = vld [vmem:[%s1104 + $0x10] sm:$0xff]
    %v1108 = vld [vmem:[%s1104 + $0x18] sm:$0xff]
    %1109 = vmatpush.bf16.msra.mxu0 %v439
    %1110 = vmatpush.bf16.msra.mxu0 %v435
    %1111 = vmatpush.bf16.msra.mxu0 %v431
    %1112 = vmatpush.bf16.msra.mxu0 %v427
    %1113 = vmatpush.bf16.msra.mxu0 %v423
    %1114 = vmatpush.bf16.msra.mxu0 %v419
    %1115 = vmatpush.bf16.msra.mxu0 %v415
    %1116 = vmatpush.bf16.msra.mxu0 %v411
    %1117 = vmatmul.bf16.gmra.mxu0 %v1101
    %v1118 = vpop.f32.mrf.mxu0
    %v1119 = vadd.f32 0.0, %v1118
    %v1120 = vpop.f32.mrf.mxu0
    %1121 = vdwg.mxu0
    %1122 = vmatpush.bf16.msra.mxu0 %v440
    %1123 = vmatpush.bf16.msra.mxu0 %v436
    %1124 = vmatpush.bf16.msra.mxu0 %v432
    %1125 = vmatpush.bf16.msra.mxu0 %v428
    %1126 = vmatpush.bf16.msra.mxu0 %v424
    %1127 = vmatpush.bf16.msra.mxu0 %v420
    %1128 = vmatpush.bf16.msra.mxu0 %v416
    %1129 = vmatpush.bf16.msra.mxu0 %v412
    %1130 = vmatmul.bf16.gmra.mxu0 %v1101
    %v1131 = vpop.f32.mrf.mxu0
    %v1132 = vadd.f32 0.0, %v1131
    %v1133 = vpop.f32.mrf.mxu0
    %1134 = vdwg.mxu0
    %1135 = vmatpush.bf16.msra.mxu0 %v441
    %1136 = vmatpush.bf16.msra.mxu0 %v437
    %1137 = vmatpush.bf16.msra.mxu0 %v433
    %1138 = vmatpush.bf16.msra.mxu0 %v429
    %1139 = vmatpush.bf16.msra.mxu0 %v425
    %1140 = vmatpush.bf16.msra.mxu0 %v421
    %1141 = vmatpush.bf16.msra.mxu0 %v417
    %1142 = vmatpush.bf16.msra.mxu0 %v413
    %1143 = vmatmul.bf16.gmra.mxu0 %v1101
    %v1144 = vpop.f32.mrf.mxu0
    %v1145 = vadd.f32 0.0, %v1144
    %v1146 = vpop.f32.mrf.mxu0
    %1147 = vdwg.mxu0
    %1148 = vmatpush.bf16.msra.mxu0 %v442
    %1149 = vmatpush.bf16.msra.mxu0 %v438
    %1150 = vmatpush.bf16.msra.mxu0 %v434
    %1151 = vmatpush.bf16.msra.mxu0 %v430
    %1152 = vmatpush.bf16.msra.mxu0 %v426
    %1153 = vmatpush.bf16.msra.mxu0 %v422
    %1154 = vmatpush.bf16.msra.mxu0 %v418
    %1155 = vmatpush.bf16.msra.mxu0 %v414
    %1156 = vmatmul.bf16.gmra.mxu0 %v1101
    %v1157 = vpop.f32.mrf.mxu0
    %v1158 = vadd.f32 0.0, %v1157
    %v1159 = vpop.f32.mrf.mxu0
    %1160 = vdwg.mxu0
    %v1161 = vadd.f32 %v1105, %v1119
    %v1162 = vadd.f32 %v1106, %v1132
    %v1163 = vadd.f32 %v1107, %v1145
    %v1164 = vadd.f32 %v1108, %v1158
    %v1165 = vxor.u32 %v1161, 2147483648
    %v1166 = vmul.f32 %v1165, 1.442695
    %v1167 = vpow.pop %v1166
    %v1168 = vadd.f32 %v1167, 1.0
    %v1169 = vrcp.pop %v1168
    %v1170 = vmul.f32 %v1168, %v1169
    %v1171 = vsub.f32 1.0, %v1170
    %v1172 = vmul.f32 %v1169, %v1171
    %v1173 = vadd.f32 %v1169, %v1172
    %vm1174 = vweird.f32 %v1168
    %vm1175 = vweird.f32 %v1169
    %vm1176 = vmor %vm1174, %vm1175
    %v1177 = vsel %vm1176, %v1169, %v1173
    %v1178 = vand.u32 2147483647, %v1168
    %vm1179 = vcmp.eq.f32.partialorder %v1178, 8.507059e+37
    %v1180 = vand.u32 %v1168, 2147483648
    %v1181 = vor.u32 1.1754944e-38, %v1180
    %v1182 = vsel %vm1179, %v1181, %v1177
    %v1183 = vmul.f32 1.0, %v1182
    %v1184 = vxor.u32 %v1162, 2147483648
    %v1185 = vmul.f32 %v1184, 1.442695
    %v1186 = vpow.pop %v1185
    %v1187 = vadd.f32 %v1186, 1.0
    %v1188 = vrcp.pop %v1187
    %v1189 = vmul.f32 %v1187, %v1188
    %v1190 = vsub.f32 1.0, %v1189
    %v1191 = vmul.f32 %v1188, %v1190
    %v1192 = vadd.f32 %v1188, %v1191
    %vm1193 = vweird.f32 %v1187
    %vm1194 = vweird.f32 %v1188
    %vm1195 = vmor %vm1193, %vm1194
    %v1196 = vsel %vm1195, %v1188, %v1192
    %v1197 = vand.u32 2147483647, %v1187
    %vm1198 = vcmp.eq.f32.partialorder %v1197, 8.507059e+37
    %v1199 = vand.u32 %v1187, 2147483648
    %v1200 = vor.u32 1.1754944e-38, %v1199
    %v1201 = vsel %vm1198, %v1200, %v1196
    %v1202 = vmul.f32 1.0, %v1201
    %v1203 = vtanh.pop %v1163
    %v1204 = vxor.u32 %v1164, 2147483648
    %v1205 = vmul.f32 %v1204, 1.442695
    %v1206 = vpow.pop %v1205
    %v1207 = vadd.f32 %v1206, 1.0
    %v1208 = vrcp.pop %v1207
    %v1209 = vmul.f32 %v1207, %v1208
    %v1210 = vsub.f32 1.0, %v1209
    %v1211 = vmul.f32 %v1208, %v1210
    %v1212 = vadd.f32 %v1208, %v1211
    %vm1213 = vweird.f32 %v1207
    %vm1214 = vweird.f32 %v1208
    %vm1215 = vmor %vm1213, %vm1214
    %v1216 = vsel %vm1215, %v1208, %v1212
    %v1217 = vand.u32 2147483647, %v1207
    %vm1218 = vcmp.eq.f32.partialorder %v1217, 8.507059e+37
    %v1219 = vand.u32 %v1207, 2147483648
    %v1220 = vor.u32 1.1754944e-38, %v1219
    %v1221 = vsel %vm1218, %v1220, %v1216
    %v1222 = vmul.f32 1.0, %v1221
    %v1223 = vmul.f32 %v1202, %v1098
    %v1224 = vmul.f32 %v1183, %v1203
    %v1225 = vadd.f32 %v1223, %v1224
    %v1226 = vtanh.pop %v1225
    %v1227 = vmul.f32 %v1222, %v1226
    %v1228 = vpack.c.bf16 %v1227, %v1227
    %s1229 = scalar_lea.vmem [#allocation3], 20
    %1230 = vst [vmem:[%s1229] sm:$0xf] %v1228
    %s1231 = scalar_lea.vmem [#allocation2], 192
    %v1232 = vld [vmem:[%s1231] sm:$0xff]
    %v1233 = vld [vmem:[%s1231 + $0x8] sm:$0xff]
    %v1234 = vld [vmem:[%s1231 + $0x10] sm:$0xff]
    %v1235 = vld [vmem:[%s1231 + $0x18] sm:$0xff]
    %1236 = vmatpush.bf16.msra.mxu0 %v439
    %1237 = vmatpush.bf16.msra.mxu0 %v435
    %1238 = vmatpush.bf16.msra.mxu0 %v431
    %1239 = vmatpush.bf16.msra.mxu0 %v427
    %1240 = vmatpush.bf16.msra.mxu0 %v423
    %1241 = vmatpush.bf16.msra.mxu0 %v419
    %1242 = vmatpush.bf16.msra.mxu0 %v415
    %1243 = vmatpush.bf16.msra.mxu0 %v411
    %1244 = vmatmul.bf16.gmra.mxu0 %v1228
    %v1245 = vpop.f32.mrf.mxu0
    %v1246 = vadd.f32 0.0, %v1245
    %v1247 = vpop.f32.mrf.mxu0
    %1248 = vdwg.mxu0
    %1249 = vmatpush.bf16.msra.mxu0 %v440
    %1250 = vmatpush.bf16.msra.mxu0 %v436
    %1251 = vmatpush.bf16.msra.mxu0 %v432
    %1252 = vmatpush.bf16.msra.mxu0 %v428
    %1253 = vmatpush.bf16.msra.mxu0 %v424
    %1254 = vmatpush.bf16.msra.mxu0 %v420
    %1255 = vmatpush.bf16.msra.mxu0 %v416
    %1256 = vmatpush.bf16.msra.mxu0 %v412
    %1257 = vmatmul.bf16.gmra.mxu0 %v1228
    %v1258 = vpop.f32.mrf.mxu0
    %v1259 = vadd.f32 0.0, %v1258
    %v1260 = vpop.f32.mrf.mxu0
    %1261 = vdwg.mxu0
    %1262 = vmatpush.bf16.msra.mxu0 %v441
    %1263 = vmatpush.bf16.msra.mxu0 %v437
    %1264 = vmatpush.bf16.msra.mxu0 %v433
    %1265 = vmatpush.bf16.msra.mxu0 %v429
    %1266 = vmatpush.bf16.msra.mxu0 %v425
    %1267 = vmatpush.bf16.msra.mxu0 %v421
    %1268 = vmatpush.bf16.msra.mxu0 %v417
    %1269 = vmatpush.bf16.msra.mxu0 %v413
    %1270 = vmatmul.bf16.gmra.mxu0 %v1228
    %v1271 = vpop.f32.mrf.mxu0
    %v1272 = vadd.f32 0.0, %v1271
    %v1273 = vpop.f32.mrf.mxu0
    %1274 = vdwg.mxu0
    %1275 = vmatpush.bf16.msra.mxu0 %v442
    %1276 = vmatpush.bf16.msra.mxu0 %v438
    %1277 = vmatpush.bf16.msra.mxu0 %v434
    %1278 = vmatpush.bf16.msra.mxu0 %v430
    %1279 = vmatpush.bf16.msra.mxu0 %v426
    %1280 = vmatpush.bf16.msra.mxu0 %v422
    %1281 = vmatpush.bf16.msra.mxu0 %v418
    %1282 = vmatpush.bf16.msra.mxu0 %v414
    %1283 = vmatmul.bf16.gmra.mxu0 %v1228
    %v1284 = vpop.f32.mrf.mxu0
    %v1285 = vadd.f32 0.0, %v1284
    %v1286 = vpop.f32.mrf.mxu0
    %1287 = vdwg.mxu0
    %v1288 = vadd.f32 %v1232, %v1246
    %v1289 = vadd.f32 %v1233, %v1259
    %v1290 = vadd.f32 %v1234, %v1272
    %v1291 = vadd.f32 %v1235, %v1285
    %v1292 = vxor.u32 %v1288, 2147483648
    %v1293 = vmul.f32 %v1292, 1.442695
    %v1294 = vpow.pop %v1293
    %v1295 = vadd.f32 %v1294, 1.0
    %v1296 = vrcp.pop %v1295
    %v1297 = vmul.f32 %v1295, %v1296
    %v1298 = vsub.f32 1.0, %v1297
    %v1299 = vmul.f32 %v1296, %v1298
    %v1300 = vadd.f32 %v1296, %v1299
    %vm1301 = vweird.f32 %v1295
    %vm1302 = vweird.f32 %v1296
    %vm1303 = vmor %vm1301, %vm1302
    %v1304 = vsel %vm1303, %v1296, %v1300
    %v1305 = vand.u32 2147483647, %v1295
    %vm1306 = vcmp.eq.f32.partialorder %v1305, 8.507059e+37
    %v1307 = vand.u32 %v1295, 2147483648
    %v1308 = vor.u32 1.1754944e-38, %v1307
    %v1309 = vsel %vm1306, %v1308, %v1304
    %v1310 = vmul.f32 1.0, %v1309
    %v1311 = vxor.u32 %v1289, 2147483648
    %v1312 = vmul.f32 %v1311, 1.442695
    %v1313 = vpow.pop %v1312
    %v1314 = vadd.f32 %v1313, 1.0
    %v1315 = vrcp.pop %v1314
    %v1316 = vmul.f32 %v1314, %v1315
    %v1317 = vsub.f32 1.0, %v1316
    %v1318 = vmul.f32 %v1315, %v1317
    %v1319 = vadd.f32 %v1315, %v1318
    %vm1320 = vweird.f32 %v1314
    %vm1321 = vweird.f32 %v1315
    %vm1322 = vmor %vm1320, %vm1321
    %v1323 = vsel %vm1322, %v1315, %v1319
    %v1324 = vand.u32 2147483647, %v1314
    %vm1325 = vcmp.eq.f32.partialorder %v1324, 8.507059e+37
    %v1326 = vand.u32 %v1314, 2147483648
    %v1327 = vor.u32 1.1754944e-38, %v1326
    %v1328 = vsel %vm1325, %v1327, %v1323
    %v1329 = vmul.f32 1.0, %v1328
    %v1330 = vtanh.pop %v1290
    %v1331 = vxor.u32 %v1291, 2147483648
    %v1332 = vmul.f32 %v1331, 1.442695
    %v1333 = vpow.pop %v1332
    %v1334 = vadd.f32 %v1333, 1.0
    %v1335 = vrcp.pop %v1334
    %v1336 = vmul.f32 %v1334, %v1335
    %v1337 = vsub.f32 1.0, %v1336
    %v1338 = vmul.f32 %v1335, %v1337
    %v1339 = vadd.f32 %v1335, %v1338
    %vm1340 = vweird.f32 %v1334
    %vm1341 = vweird.f32 %v1335
    %vm1342 = vmor %vm1340, %vm1341
    %v1343 = vsel %vm1342, %v1335, %v1339
    %v1344 = vand.u32 2147483647, %v1334
    %vm1345 = vcmp.eq.f32.partialorder %v1344, 8.507059e+37
    %v1346 = vand.u32 %v1334, 2147483648
    %v1347 = vor.u32 1.1754944e-38, %v1346
    %v1348 = vsel %vm1345, %v1347, %v1343
    %v1349 = vmul.f32 1.0, %v1348
    %v1350 = vmul.f32 %v1329, %v1225
    %v1351 = vmul.f32 %v1310, %v1330
    %v1352 = vadd.f32 %v1350, %v1351
    %v1353 = vtanh.pop %v1352
    %v1354 = vmul.f32 %v1349, %v1353
    %v1355 = vpack.c.bf16 %v1354, %v1354
    %s1356 = scalar_lea.vmem [#allocation3], 24
    %1357 = vst [vmem:[%s1356] sm:$0xf] %v1355
    %s1358 = scalar_lea.vmem [#allocation2], 224
    %v1359 = vld [vmem:[%s1358] sm:$0xff]
    %v1360 = vld [vmem:[%s1358 + $0x8] sm:$0xff]
    %v1361 = vld [vmem:[%s1358 + $0x10] sm:$0xff]
    %v1362 = vld [vmem:[%s1358 + $0x18] sm:$0xff]
    %1363 = vmatpush.bf16.msra.mxu0 %v439
    %1364 = vmatpush.bf16.msra.mxu0 %v435
    %1365 = vmatpush.bf16.msra.mxu0 %v431
    %1366 = vmatpush.bf16.msra.mxu0 %v427
    %1367 = vmatpush.bf16.msra.mxu0 %v423
    %1368 = vmatpush.bf16.msra.mxu0 %v419
    %1369 = vmatpush.bf16.msra.mxu0 %v415
    %1370 = vmatpush.bf16.msra.mxu0 %v411
    %1371 = vmatmul.bf16.gmra.mxu0 %v1355
    %v1372 = vpop.f32.mrf.mxu0
    %v1373 = vadd.f32 0.0, %v1372
    %v1374 = vpop.f32.mrf.mxu0
    %1375 = vdwg.mxu0
    %1376 = vmatpush.bf16.msra.mxu0 %v440
    %1377 = vmatpush.bf16.msra.mxu0 %v436
    %1378 = vmatpush.bf16.msra.mxu0 %v432
    %1379 = vmatpush.bf16.msra.mxu0 %v428
    %1380 = vmatpush.bf16.msra.mxu0 %v424
    %1381 = vmatpush.bf16.msra.mxu0 %v420
    %1382 = vmatpush.bf16.msra.mxu0 %v416
    %1383 = vmatpush.bf16.msra.mxu0 %v412
    %1384 = vmatmul.bf16.gmra.mxu0 %v1355
    %v1385 = vpop.f32.mrf.mxu0
    %v1386 = vadd.f32 0.0, %v1385
    %v1387 = vpop.f32.mrf.mxu0
    %1388 = vdwg.mxu0
    %1389 = vmatpush.bf16.msra.mxu0 %v441
    %1390 = vmatpush.bf16.msra.mxu0 %v437
    %1391 = vmatpush.bf16.msra.mxu0 %v433
    %1392 = vmatpush.bf16.msra.mxu0 %v429
    %1393 = vmatpush.bf16.msra.mxu0 %v425
    %1394 = vmatpush.bf16.msra.mxu0 %v421
    %1395 = vmatpush.bf16.msra.mxu0 %v417
    %1396 = vmatpush.bf16.msra.mxu0 %v413
    %1397 = vmatmul.bf16.gmra.mxu0 %v1355
    %v1398 = vpop.f32.mrf.mxu0
    %v1399 = vadd.f32 0.0, %v1398
    %v1400 = vpop.f32.mrf.mxu0
    %1401 = vdwg.mxu0
    %1402 = vmatpush.bf16.msra.mxu0 %v442
    %1403 = vmatpush.bf16.msra.mxu0 %v438
    %1404 = vmatpush.bf16.msra.mxu0 %v434
    %1405 = vmatpush.bf16.msra.mxu0 %v430
    %1406 = vmatpush.bf16.msra.mxu0 %v426
    %1407 = vmatpush.bf16.msra.mxu0 %v422
    %1408 = vmatpush.bf16.msra.mxu0 %v418
    %1409 = vmatpush.bf16.msra.mxu0 %v414
    %1410 = vmatmul.bf16.gmra.mxu0 %v1355
    %v1411 = vpop.f32.mrf.mxu0
    %v1412 = vadd.f32 0.0, %v1411
    %v1413 = vpop.f32.mrf.mxu0
    %1414 = vdwg.mxu0
    %v1415 = vadd.f32 %v1359, %v1373
    %v1416 = vadd.f32 %v1360, %v1386
    %v1417 = vadd.f32 %v1361, %v1399
    %v1418 = vadd.f32 %v1362, %v1412
    %v1419 = vxor.u32 %v1415, 2147483648
    %v1420 = vmul.f32 %v1419, 1.442695
    %v1421 = vpow.pop %v1420
    %v1422 = vadd.f32 %v1421, 1.0
    %v1423 = vrcp.pop %v1422
    %v1424 = vmul.f32 %v1422, %v1423
    %v1425 = vsub.f32 1.0, %v1424
    %v1426 = vmul.f32 %v1423, %v1425
    %v1427 = vadd.f32 %v1423, %v1426
    %vm1428 = vweird.f32 %v1422
    %vm1429 = vweird.f32 %v1423
    %vm1430 = vmor %vm1428, %vm1429
    %v1431 = vsel %vm1430, %v1423, %v1427
    %v1432 = vand.u32 2147483647, %v1422
    %vm1433 = vcmp.eq.f32.partialorder %v1432, 8.507059e+37
    %v1434 = vand.u32 %v1422, 2147483648
    %v1435 = vor.u32 1.1754944e-38, %v1434
    %v1436 = vsel %vm1433, %v1435, %v1431
    %v1437 = vmul.f32 1.0, %v1436
    %v1438 = vxor.u32 %v1416, 2147483648
    %v1439 = vmul.f32 %v1438, 1.442695
    %v1440 = vpow.pop %v1439
    %v1441 = vadd.f32 %v1440, 1.0
    %v1442 = vrcp.pop %v1441
    %v1443 = vmul.f32 %v1441, %v1442
    %v1444 = vsub.f32 1.0, %v1443
    %v1445 = vmul.f32 %v1442, %v1444
    %v1446 = vadd.f32 %v1442, %v1445
    %vm1447 = vweird.f32 %v1441
    %vm1448 = vweird.f32 %v1442
    %vm1449 = vmor %vm1447, %vm1448
    %v1450 = vsel %vm1449, %v1442, %v1446
    %v1451 = vand.u32 2147483647, %v1441
    %vm1452 = vcmp.eq.f32.partialorder %v1451, 8.507059e+37
    %v1453 = vand.u32 %v1441, 2147483648
    %v1454 = vor.u32 1.1754944e-38, %v1453
    %v1455 = vsel %vm1452, %v1454, %v1450
    %v1456 = vmul.f32 1.0, %v1455
    %v1457 = vtanh.pop %v1417
    %v1458 = vxor.u32 %v1418, 2147483648
    %v1459 = vmul.f32 %v1458, 1.442695
    %v1460 = vpow.pop %v1459
    %v1461 = vadd.f32 %v1460, 1.0
    %v1462 = vrcp.pop %v1461
    %v1463 = vmul.f32 %v1461, %v1462
    %v1464 = vsub.f32 1.0, %v1463
    %v1465 = vmul.f32 %v1462, %v1464
    %v1466 = vadd.f32 %v1462, %v1465
    %vm1467 = vweird.f32 %v1461
    %vm1468 = vweird.f32 %v1462
    %vm1469 = vmor %vm1467, %vm1468
    %v1470 = vsel %vm1469, %v1462, %v1466
    %v1471 = vand.u32 2147483647, %v1461
    %vm1472 = vcmp.eq.f32.partialorder %v1471, 8.507059e+37
    %v1473 = vand.u32 %v1461, 2147483648
    %v1474 = vor.u32 1.1754944e-38, %v1473
    %v1475 = vsel %vm1472, %v1474, %v1470
    %v1476 = vmul.f32 1.0, %v1475
    %v1477 = vmul.f32 %v1456, %v1352
    %v1478 = vmul.f32 %v1437, %v1457
    %v1479 = vadd.f32 %v1477, %v1478
    %v1480 = vtanh.pop %v1479
    %v1481 = vmul.f32 %v1476, %v1480
    %v1482 = vpack.c.bf16 %v1481, %v1481
    %s1483 = scalar_lea.vmem [#allocation3], 28
    %1484 = vst [vmem:[%s1483] sm:$0xf] %v1482
    %v1485 = vld [vmem:[#allocation6] sm:$0xff]
    %v1486 = vld [vmem:[#allocation6 + $0x8] sm:$0xff]
    %v1487 = vld [vmem:[#allocation6 + $0x10] sm:$0xff]
    %v1488 = vld [vmem:[#allocation6 + $0x18] sm:$0xff]
    %v1489 = vld [vmem:[#allocation6 + $0x20] sm:$0xff]
    %v1490 = vld [vmem:[#allocation6 + $0x28] sm:$0xff]
    %v1491 = vld [vmem:[#allocation6 + $0x30] sm:$0xff]
    %v1492 = vld [vmem:[#allocation6 + $0x38] sm:$0xff]
    %v1493 = vld [vmem:[#allocation6 + $0x40] sm:$0xff]
    %v1494 = vld [vmem:[#allocation6 + $0x48] sm:$0xff]
    %v1495 = vld [vmem:[#allocation6 + $0x50] sm:$0xff]
    %v1496 = vld [vmem:[#allocation6 + $0x58] sm:$0xff]
    %v1497 = vld [vmem:[#allocation6 + $0x60] sm:$0xff]
    %v1498 = vld [vmem:[#allocation6 + $0x68] sm:$0xff]
    %v1499 = vld [vmem:[#allocation6 + $0x70] sm:$0xff]
    %v1500 = vld [vmem:[#allocation6 + $0x78] sm:$0xff]
    %v1501 = vld [vmem:[#allocation6 + $0x80] sm:$0xff]
    %v1502 = vld [vmem:[#allocation6 + $0x88] sm:$0xff]
    %v1503 = vld [vmem:[#allocation6 + $0x90] sm:$0xff]
    %v1504 = vld [vmem:[#allocation6 + $0x98] sm:$0xff]
    %v1505 = vld [vmem:[#allocation6 + $0xa0] sm:$0xff]
    %v1506 = vld [vmem:[#allocation6 + $0xa8] sm:$0xff]
    %v1507 = vld [vmem:[#allocation6 + $0xb0] sm:$0xff]
    %v1508 = vld [vmem:[#allocation6 + $0xb8] sm:$0xff]
    %v1509 = vld [vmem:[#allocation6 + $0xc0] sm:$0xff]
    %v1510 = vld [vmem:[#allocation6 + $0xc8] sm:$0xff]
    %v1511 = vld [vmem:[#allocation6 + $0xd0] sm:$0xff]
    %v1512 = vld [vmem:[#allocation6 + $0xd8] sm:$0xff]
    %v1513 = vld [vmem:[#allocation6 + $0xe0] sm:$0xff]
    %v1514 = vld [vmem:[#allocation6 + $0xe8] sm:$0xff]
    %v1515 = vld [vmem:[#allocation6 + $0xf0] sm:$0xff]
    %v1516 = vld [vmem:[#allocation6 + $0xf8] sm:$0xff]
    %v1517 = vld [vmem:[#allocation8] sm:$0xff]
    %v1518 = vld [vmem:[#allocation8 + $0x8] sm:$0xff]
    %v1519 = vld [vmem:[#allocation8 + $0x10] sm:$0xff]
    %v1520 = vld [vmem:[#allocation8 + $0x18] sm:$0xff]
    %v1521 = vld [vmem:[#allocation8 + $0x20] sm:$0xff]
    %v1522 = vld [vmem:[#allocation8 + $0x28] sm:$0xff]
    %v1523 = vld [vmem:[#allocation8 + $0x30] sm:$0xff]
    %v1524 = vld [vmem:[#allocation8 + $0x38] sm:$0xff]
    %v1525 = vld [vmem:[#allocation8 + $0x40] sm:$0xff]
    %v1526 = vld [vmem:[#allocation8 + $0x48] sm:$0xff]
    %v1527 = vld [vmem:[#allocation8 + $0x50] sm:$0xff]
    %v1528 = vld [vmem:[#allocation8 + $0x58] sm:$0xff]
    %v1529 = vld [vmem:[#allocation8 + $0x60] sm:$0xff]
    %v1530 = vld [vmem:[#allocation8 + $0x68] sm:$0xff]
    %v1531 = vld [vmem:[#allocation8 + $0x70] sm:$0xff]
    %v1532 = vld [vmem:[#allocation8 + $0x78] sm:$0xff]
    %v1533 = vld [vmem:[#allocation8 + $0x80] sm:$0xff]
    %v1534 = vld [vmem:[#allocation8 + $0x88] sm:$0xff]
    %v1535 = vld [vmem:[#allocation8 + $0x90] sm:$0xff]
    %v1536 = vld [vmem:[#allocation8 + $0x98] sm:$0xff]
    %v1537 = vld [vmem:[#allocation8 + $0xa0] sm:$0xff]
    %v1538 = vld [vmem:[#allocation8 + $0xa8] sm:$0xff]
    %v1539 = vld [vmem:[#allocation8 + $0xb0] sm:$0xff]
    %v1540 = vld [vmem:[#allocation8 + $0xb8] sm:$0xff]
    %v1541 = vld [vmem:[#allocation8 + $0xc0] sm:$0xff]
    %v1542 = vld [vmem:[#allocation8 + $0xc8] sm:$0xff]
    %v1543 = vld [vmem:[#allocation8 + $0xd0] sm:$0xff]
    %v1544 = vld [vmem:[#allocation8 + $0xd8] sm:$0xff]
    %v1545 = vld [vmem:[#allocation8 + $0xe0] sm:$0xff]
    %v1546 = vld [vmem:[#allocation8 + $0xe8] sm:$0xff]
    %v1547 = vld [vmem:[#allocation8 + $0xf0] sm:$0xff]
    %v1548 = vld [vmem:[#allocation8 + $0xf8] sm:$0xff]
    %v1549 = vld [vmem:[%s6] sm:$0xf]
    %v1550 = vld [vmem:[#allocation3] sm:$0xf]
    %v1551 = vld [vmem:[#allocation3 + $0x4] sm:$0xf]
    %v1552 = vld [vmem:[#allocation3 + $0x8] sm:$0xf]
    %v1553 = vld [vmem:[#allocation3 + $0xc] sm:$0xf]
    %v1554 = vld [vmem:[#allocation3 + $0x10] sm:$0xf]
    %v1555 = vld [vmem:[#allocation3 + $0x14] sm:$0xf]
    %v1556 = vld [vmem:[#allocation3 + $0x18] sm:$0xf]
    %v1557 = vld [vmem:[#allocation3 + $0x1c] sm:$0xf]
    %v1559 = vperm.slane %v1549, 0
    %v1560 = vperm.slane %v1549, 1
    %v1561 = vperm.slane %v1549, 2
    %v1562 = vperm.slane %v1549, 3
    %v1575 = vunpack.c.l.b16 %v1550
    %v1576 = vunpack.c.l.b16 %v1551
    %v1577 = vunpack.c.l.b16 %v1552
    %v1578 = vunpack.c.l.b16 %v1553
    %v1579 = vunpack.c.l.b16 %v1554
    %v1580 = vunpack.c.l.b16 %v1555
    %v1581 = vunpack.c.l.b16 %v1556
    %v1582 = vunpack.c.l.b16 %v1557
    %v1583 = vpack.c.b16 %v1576, %v1575
    %v1584 = vpack.c.b16 %v1578, %v1577
    %v1585 = vpack.c.b16 %v1580, %v1579
    %v1586 = vpack.c.b16 %v1582, %v1581
    %v1623 = vunpack.c.l.b16 %v1485
    %v1624 = vunpack.c.h.b16 %v1485
    %v1625 = vunpack.c.l.b16 %v1486
    %v1626 = vunpack.c.h.b16 %v1486
    %v1627 = vunpack.c.l.b16 %v1487
    %v1628 = vunpack.c.h.b16 %v1487
    %v1629 = vunpack.c.l.b16 %v1488
    %v1630 = vunpack.c.h.b16 %v1488
    %v1631 = vunpack.c.l.b16 %v1489
    %v1632 = vunpack.c.h.b16 %v1489
    %v1633 = vunpack.c.l.b16 %v1490
    %v1634 = vunpack.c.h.b16 %v1490
    %v1635 = vunpack.c.l.b16 %v1491
    %v1636 = vunpack.c.h.b16 %v1491
    %v1637 = vunpack.c.l.b16 %v1492
    %v1638 = vunpack.c.h.b16 %v1492
    %v1639 = vunpack.c.l.b16 %v1493
    %v1640 = vunpack.c.h.b16 %v1493
    %v1641 = vunpack.c.l.b16 %v1494
    %v1642 = vunpack.c.h.b16 %v1494
    %v1643 = vunpack.c.l.b16 %v1495
    %v1644 = vunpack.c.h.b16 %v1495
    %v1645 = vunpack.c.l.b16 %v1496
    %v1646 = vunpack.c.h.b16 %v1496
    %v1647 = vunpack.c.l.b16 %v1497
    %v1648 = vunpack.c.h.b16 %v1497
    %v1649 = vunpack.c.l.b16 %v1498
    %v1650 = vunpack.c.h.b16 %v1498
    %v1651 = vunpack.c.l.b16 %v1499
    %v1652 = vunpack.c.h.b16 %v1499
    %v1653 = vunpack.c.l.b16 %v1500
    %v1654 = vunpack.c.h.b16 %v1500
    %v1655 = vunpack.c.l.b16 %v1501
    %v1656 = vunpack.c.h.b16 %v1501
    %v1657 = vunpack.c.l.b16 %v1502
    %v1658 = vunpack.c.h.b16 %v1502
    %v1659 = vunpack.c.l.b16 %v1503
    %v1660 = vunpack.c.h.b16 %v1503
    %v1661 = vunpack.c.l.b16 %v1504
    %v1662 = vunpack.c.h.b16 %v1504
    %v1663 = vunpack.c.l.b16 %v1505
    %v1664 = vunpack.c.h.b16 %v1505
    %v1665 = vunpack.c.l.b16 %v1506
    %v1666 = vunpack.c.h.b16 %v1506
    %v1667 = vunpack.c.l.b16 %v1507
    %v1668 = vunpack.c.h.b16 %v1507
    %v1669 = vunpack.c.l.b16 %v1508
    %v1670 = vunpack.c.h.b16 %v1508
    %v1671 = vunpack.c.l.b16 %v1509
    %v1672 = vunpack.c.h.b16 %v1509
    %v1673 = vunpack.c.l.b16 %v1510
    %v1674 = vunpack.c.h.b16 %v1510
    %v1675 = vunpack.c.l.b16 %v1511
    %v1676 = vunpack.c.h.b16 %v1511
    %v1677 = vunpack.c.l.b16 %v1512
    %v1678 = vunpack.c.h.b16 %v1512
    %v1679 = vunpack.c.l.b16 %v1513
    %v1680 = vunpack.c.h.b16 %v1513
    %v1681 = vunpack.c.l.b16 %v1514
    %v1682 = vunpack.c.h.b16 %v1514
    %v1683 = vunpack.c.l.b16 %v1515
    %v1684 = vunpack.c.h.b16 %v1515
    %v1685 = vunpack.c.l.b16 %v1516
    %v1686 = vunpack.c.h.b16 %v1516
    %v1687 = vpack.c.b16 %v1627, %v1623
    %v1688 = vpack.c.b16 %v1628, %v1624
    %v1689 = vpack.c.b16 %v1629, %v1625
    %v1690 = vpack.c.b16 %v1630, %v1626
    %v1691 = vpack.c.b16 %v1635, %v1631
    %v1692 = vpack.c.b16 %v1636, %v1632
    %v1693 = vpack.c.b16 %v1637, %v1633
    %v1694 = vpack.c.b16 %v1638, %v1634
    %v1695 = vpack.c.b16 %v1643, %v1639
    %v1696 = vpack.c.b16 %v1644, %v1640
    %v1697 = vpack.c.b16 %v1645, %v1641
    %v1698 = vpack.c.b16 %v1646, %v1642
    %v1699 = vpack.c.b16 %v1651, %v1647
    %v1700 = vpack.c.b16 %v1652, %v1648
    %v1701 = vpack.c.b16 %v1653, %v1649
    %v1702 = vpack.c.b16 %v1654, %v1650
    %v1703 = vpack.c.b16 %v1659, %v1655
    %v1704 = vpack.c.b16 %v1660, %v1656
    %v1705 = vpack.c.b16 %v1661, %v1657
    %v1706 = vpack.c.b16 %v1662, %v1658
    %v1707 = vpack.c.b16 %v1667, %v1663
    %v1708 = vpack.c.b16 %v1668, %v1664
    %v1709 = vpack.c.b16 %v1669, %v1665
    %v1710 = vpack.c.b16 %v1670, %v1666
    %v1711 = vpack.c.b16 %v1675, %v1671
    %v1712 = vpack.c.b16 %v1676, %v1672
    %v1713 = vpack.c.b16 %v1677, %v1673
    %v1714 = vpack.c.b16 %v1678, %v1674
    %v1715 = vpack.c.b16 %v1683, %v1679
    %v1716 = vpack.c.b16 %v1684, %v1680
    %v1717 = vpack.c.b16 %v1685, %v1681
    %v1718 = vpack.c.b16 %v1686, %v1682
    %1751 = vmatpush.bf16.msra.mxu0 %v1715
    %1752 = vmatpush.bf16.msra.mxu0 %v1711
    %1753 = vmatpush.bf16.msra.mxu0 %v1707
    %1754 = vmatpush.bf16.msra.mxu0 %v1703
    %1755 = vmatpush.bf16.msra.mxu0 %v1699
    %1756 = vmatpush.bf16.msra.mxu0 %v1695
    %1757 = vmatpush.bf16.msra.mxu0 %v1691
    %1758 = vmatpush.bf16.msra.mxu0 %v1687
    %1759 = vmatmul.bf16.gmra.mxu0 %v1583
    %v1760 = vpop.f32.mrf.mxu0
    %v1761 = vadd.f32 %v1559, %v1760
    %v1762 = vpop.f32.mrf.mxu0
    %v1763 = vadd.f32 %v1559, %v1762
    %1764 = vmatmul.bf16.gmra.mxu0 %v1584
    %v1765 = vpop.f32.mrf.mxu0
    %v1766 = vadd.f32 %v1559, %v1765
    %v1767 = vpop.f32.mrf.mxu0
    %v1768 = vadd.f32 %v1559, %v1767
    %1769 = vmatmul.bf16.gmra.mxu0 %v1585
    %v1770 = vpop.f32.mrf.mxu0
    %v1771 = vadd.f32 %v1559, %v1770
    %v1772 = vpop.f32.mrf.mxu0
    %v1773 = vadd.f32 %v1559, %v1772
    %1774 = vmatmul.bf16.gmra.mxu0 %v1586
    %v1775 = vpop.f32.mrf.mxu0
    %v1776 = vadd.f32 %v1559, %v1775
    %v1777 = vpop.f32.mrf.mxu0
    %v1778 = vadd.f32 %v1559, %v1777
    %1779 = vdwg.mxu0
    %1780 = vmatpush.bf16.msra.mxu0 %v1716
    %1781 = vmatpush.bf16.msra.mxu0 %v1712
    %1782 = vmatpush.bf16.msra.mxu0 %v1708
    %1783 = vmatpush.bf16.msra.mxu0 %v1704
    %1784 = vmatpush.bf16.msra.mxu0 %v1700
    %1785 = vmatpush.bf16.msra.mxu0 %v1696
    %1786 = vmatpush.bf16.msra.mxu0 %v1692
    %1787 = vmatpush.bf16.msra.mxu0 %v1688
    %1788 = vmatmul.bf16.gmra.mxu0 %v1583
    %v1789 = vpop.f32.mrf.mxu0
    %v1790 = vadd.f32 %v1560, %v1789
    %v1791 = vpop.f32.mrf.mxu0
    %v1792 = vadd.f32 %v1560, %v1791
    %1793 = vmatmul.bf16.gmra.mxu0 %v1584
    %v1794 = vpop.f32.mrf.mxu0
    %v1795 = vadd.f32 %v1560, %v1794
    %v1796 = vpop.f32.mrf.mxu0
    %v1797 = vadd.f32 %v1560, %v1796
    %1798 = vmatmul.bf16.gmra.mxu0 %v1585
    %v1799 = vpop.f32.mrf.mxu0
    %v1800 = vadd.f32 %v1560, %v1799
    %v1801 = vpop.f32.mrf.mxu0
    %v1802 = vadd.f32 %v1560, %v1801
    %1803 = vmatmul.bf16.gmra.mxu0 %v1586
    %v1804 = vpop.f32.mrf.mxu0
    %v1805 = vadd.f32 %v1560, %v1804
    %v1806 = vpop.f32.mrf.mxu0
    %v1807 = vadd.f32 %v1560, %v1806
    %1808 = vdwg.mxu0
    %1809 = vmatpush.bf16.msra.mxu0 %v1717
    %1810 = vmatpush.bf16.msra.mxu0 %v1713
    %1811 = vmatpush.bf16.msra.mxu0 %v1709
    %1812 = vmatpush.bf16.msra.mxu0 %v1705
    %1813 = vmatpush.bf16.msra.mxu0 %v1701
    %1814 = vmatpush.bf16.msra.mxu0 %v1697
    %1815 = vmatpush.bf16.msra.mxu0 %v1693
    %1816 = vmatpush.bf16.msra.mxu0 %v1689
    %1817 = vmatmul.bf16.gmra.mxu0 %v1583
    %v1818 = vpop.f32.mrf.mxu0
    %v1819 = vadd.f32 %v1561, %v1818
    %v1820 = vpop.f32.mrf.mxu0
    %v1821 = vadd.f32 %v1561, %v1820
    %1822 = vmatmul.bf16.gmra.mxu0 %v1584
    %v1823 = vpop.f32.mrf.mxu0
    %v1824 = vadd.f32 %v1561, %v1823
    %v1825 = vpop.f32.mrf.mxu0
    %v1826 = vadd.f32 %v1561, %v1825
    %1827 = vmatmul.bf16.gmra.mxu0 %v1585
    %v1828 = vpop.f32.mrf.mxu0
    %v1829 = vadd.f32 %v1561, %v1828
    %v1830 = vpop.f32.mrf.mxu0
    %v1831 = vadd.f32 %v1561, %v1830
    %1832 = vmatmul.bf16.gmra.mxu0 %v1586
    %v1833 = vpop.f32.mrf.mxu0
    %v1834 = vadd.f32 %v1561, %v1833
    %v1835 = vpop.f32.mrf.mxu0
    %v1836 = vadd.f32 %v1561, %v1835
    %1837 = vdwg.mxu0
    %1838 = vmatpush.bf16.msra.mxu0 %v1718
    %1839 = vmatpush.bf16.msra.mxu0 %v1714
    %1840 = vmatpush.bf16.msra.mxu0 %v1710
    %1841 = vmatpush.bf16.msra.mxu0 %v1706
    %1842 = vmatpush.bf16.msra.mxu0 %v1702
    %1843 = vmatpush.bf16.msra.mxu0 %v1698
    %1844 = vmatpush.bf16.msra.mxu0 %v1694
    %1845 = vmatpush.bf16.msra.mxu0 %v1690
    %1846 = vmatmul.bf16.gmra.mxu0 %v1583
    %v1847 = vpop.f32.mrf.mxu0
    %v1848 = vadd.f32 %v1562, %v1847
    %v1849 = vpop.f32.mrf.mxu0
    %v1850 = vadd.f32 %v1562, %v1849
    %1851 = vmatmul.bf16.gmra.mxu0 %v1584
    %v1852 = vpop.f32.mrf.mxu0
    %v1853 = vadd.f32 %v1562, %v1852
    %v1854 = vpop.f32.mrf.mxu0
    %v1855 = vadd.f32 %v1562, %v1854
    %1856 = vmatmul.bf16.gmra.mxu0 %v1585
    %v1857 = vpop.f32.mrf.mxu0
    %v1858 = vadd.f32 %v1562, %v1857
    %v1859 = vpop.f32.mrf.mxu0
    %v1860 = vadd.f32 %v1562, %v1859
    %1861 = vmatmul.bf16.gmra.mxu0 %v1586
    %v1862 = vpop.f32.mrf.mxu0
    %v1863 = vadd.f32 %v1562, %v1862
    %v1864 = vpop.f32.mrf.mxu0
    %v1865 = vadd.f32 %v1562, %v1864
    %1866 = vdwg.mxu0
    %1867 = vst [vmem:[#allocation2] sm:$0xff] %v1761
    %1868 = vst [vmem:[#allocation2 + $0x8] sm:$0xff] %v1790
    %1869 = vst [vmem:[#allocation2 + $0x10] sm:$0xff] %v1819
    %1870 = vst [vmem:[#allocation2 + $0x18] sm:$0xff] %v1848
    %1871 = vst [vmem:[#allocation2 + $0x20] sm:$0xff] %v1763
    %1872 = vst [vmem:[#allocation2 + $0x28] sm:$0xff] %v1792
    %1873 = vst [vmem:[#allocation2 + $0x30] sm:$0xff] %v1821
    %1874 = vst [vmem:[#allocation2 + $0x38] sm:$0xff] %v1850
    %1875 = vst [vmem:[#allocation2 + $0x40] sm:$0xff] %v1766
    %1876 = vst [vmem:[#allocation2 + $0x48] sm:$0xff] %v1795
    %1877 = vst [vmem:[#allocation2 + $0x50] sm:$0xff] %v1824
    %1878 = vst [vmem:[#allocation2 + $0x58] sm:$0xff] %v1853
    %1879 = vst [vmem:[#allocation2 + $0x60] sm:$0xff] %v1768
    %1880 = vst [vmem:[#allocation2 + $0x68] sm:$0xff] %v1797
    %1881 = vst [vmem:[#allocation2 + $0x70] sm:$0xff] %v1826
    %1882 = vst [vmem:[#allocation2 + $0x78] sm:$0xff] %v1855
    %1883 = vst [vmem:[#allocation2 + $0x80] sm:$0xff] %v1771
    %1884 = vst [vmem:[#allocation2 + $0x88] sm:$0xff] %v1800
    %1885 = vst [vmem:[#allocation2 + $0x90] sm:$0xff] %v1829
    %1886 = vst [vmem:[#allocation2 + $0x98] sm:$0xff] %v1858
    %1887 = vst [vmem:[#allocation2 + $0xa0] sm:$0xff] %v1773
    %1888 = vst [vmem:[#allocation2 + $0xa8] sm:$0xff] %v1802
    %1889 = vst [vmem:[#allocation2 + $0xb0] sm:$0xff] %v1831
    %1890 = vst [vmem:[#allocation2 + $0xb8] sm:$0xff] %v1860
    %1891 = vst [vmem:[#allocation2 + $0xc0] sm:$0xff] %v1776
    %1892 = vst [vmem:[#allocation2 + $0xc8] sm:$0xff] %v1805
    %1893 = vst [vmem:[#allocation2 + $0xd0] sm:$0xff] %v1834
    %1894 = vst [vmem:[#allocation2 + $0xd8] sm:$0xff] %v1863
    %1895 = vst [vmem:[#allocation2 + $0xe0] sm:$0xff] %v1778
    %1896 = vst [vmem:[#allocation2 + $0xe8] sm:$0xff] %v1807
    %1897 = vst [vmem:[#allocation2 + $0xf0] sm:$0xff] %v1836
    %1898 = vst [vmem:[#allocation2 + $0xf8] sm:$0xff] %v1865
    %v1899 = vld [vmem:[#allocation2] sm:$0xff]
    %v1900 = vld [vmem:[#allocation2 + $0x8] sm:$0xff]
    %v1901 = vld [vmem:[#allocation2 + $0x10] sm:$0xff]
    %v1902 = vld [vmem:[#allocation2 + $0x18] sm:$0xff]
    %v1935 = vunpack.c.l.b16 %v1517
    %v1936 = vunpack.c.h.b16 %v1517
    %v1937 = vunpack.c.l.b16 %v1518
    %v1938 = vunpack.c.h.b16 %v1518
    %v1939 = vunpack.c.l.b16 %v1519
    %v1940 = vunpack.c.h.b16 %v1519
    %v1941 = vunpack.c.l.b16 %v1520
    %v1942 = vunpack.c.h.b16 %v1520
    %v1943 = vunpack.c.l.b16 %v1521
    %v1944 = vunpack.c.h.b16 %v1521
    %v1945 = vunpack.c.l.b16 %v1522
    %v1946 = vunpack.c.h.b16 %v1522
    %v1947 = vunpack.c.l.b16 %v1523
    %v1948 = vunpack.c.h.b16 %v1523
    %v1949 = vunpack.c.l.b16 %v1524
    %v1950 = vunpack.c.h.b16 %v1524
    %v1951 = vunpack.c.l.b16 %v1525
    %v1952 = vunpack.c.h.b16 %v1525
    %v1953 = vunpack.c.l.b16 %v1526
    %v1954 = vunpack.c.h.b16 %v1526
    %v1955 = vunpack.c.l.b16 %v1527
    %v1956 = vunpack.c.h.b16 %v1527
    %v1957 = vunpack.c.l.b16 %v1528
    %v1958 = vunpack.c.h.b16 %v1528
    %v1959 = vunpack.c.l.b16 %v1529
    %v1960 = vunpack.c.h.b16 %v1529
    %v1961 = vunpack.c.l.b16 %v1530
    %v1962 = vunpack.c.h.b16 %v1530
    %v1963 = vunpack.c.l.b16 %v1531
    %v1964 = vunpack.c.h.b16 %v1531
    %v1965 = vunpack.c.l.b16 %v1532
    %v1966 = vunpack.c.h.b16 %v1532
    %v1967 = vunpack.c.l.b16 %v1533
    %v1968 = vunpack.c.h.b16 %v1533
    %v1969 = vunpack.c.l.b16 %v1534
    %v1970 = vunpack.c.h.b16 %v1534
    %v1971 = vunpack.c.l.b16 %v1535
    %v1972 = vunpack.c.h.b16 %v1535
    %v1973 = vunpack.c.l.b16 %v1536
    %v1974 = vunpack.c.h.b16 %v1536
    %v1975 = vunpack.c.l.b16 %v1537
    %v1976 = vunpack.c.h.b16 %v1537
    %v1977 = vunpack.c.l.b16 %v1538
    %v1978 = vunpack.c.h.b16 %v1538
    %v1979 = vunpack.c.l.b16 %v1539
    %v1980 = vunpack.c.h.b16 %v1539
    %v1981 = vunpack.c.l.b16 %v1540
    %v1982 = vunpack.c.h.b16 %v1540
    %v1983 = vunpack.c.l.b16 %v1541
    %v1984 = vunpack.c.h.b16 %v1541
    %v1985 = vunpack.c.l.b16 %v1542
    %v1986 = vunpack.c.h.b16 %v1542
    %v1987 = vunpack.c.l.b16 %v1543
    %v1988 = vunpack.c.h.b16 %v1543
    %v1989 = vunpack.c.l.b16 %v1544
    %v1990 = vunpack.c.h.b16 %v1544
    %v1991 = vunpack.c.l.b16 %v1545
    %v1992 = vunpack.c.h.b16 %v1545
    %v1993 = vunpack.c.l.b16 %v1546
    %v1994 = vunpack.c.h.b16 %v1546
    %v1995 = vunpack.c.l.b16 %v1547
    %v1996 = vunpack.c.h.b16 %v1547
    %v1997 = vunpack.c.l.b16 %v1548
    %v1998 = vunpack.c.h.b16 %v1548
    %v1999 = vpack.c.b16 %v1939, %v1935
    %v2000 = vpack.c.b16 %v1940, %v1936
    %v2001 = vpack.c.b16 %v1941, %v1937
    %v2002 = vpack.c.b16 %v1942, %v1938
    %v2003 = vpack.c.b16 %v1947, %v1943
    %v2004 = vpack.c.b16 %v1948, %v1944
    %v2005 = vpack.c.b16 %v1949, %v1945
    %v2006 = vpack.c.b16 %v1950, %v1946
    %v2007 = vpack.c.b16 %v1955, %v1951
    %v2008 = vpack.c.b16 %v1956, %v1952
    %v2009 = vpack.c.b16 %v1957, %v1953
    %v2010 = vpack.c.b16 %v1958, %v1954
    %v2011 = vpack.c.b16 %v1963, %v1959
    %v2012 = vpack.c.b16 %v1964, %v1960
    %v2013 = vpack.c.b16 %v1965, %v1961
    %v2014 = vpack.c.b16 %v1966, %v1962
    %v2015 = vpack.c.b16 %v1971, %v1967
    %v2016 = vpack.c.b16 %v1972, %v1968
    %v2017 = vpack.c.b16 %v1973, %v1969
    %v2018 = vpack.c.b16 %v1974, %v1970
    %v2019 = vpack.c.b16 %v1979, %v1975
    %v2020 = vpack.c.b16 %v1980, %v1976
    %v2021 = vpack.c.b16 %v1981, %v1977
    %v2022 = vpack.c.b16 %v1982, %v1978
    %v2023 = vpack.c.b16 %v1987, %v1983
    %v2024 = vpack.c.b16 %v1988, %v1984
    %v2025 = vpack.c.b16 %v1989, %v1985
    %v2026 = vpack.c.b16 %v1990, %v1986
    %v2027 = vpack.c.b16 %v1995, %v1991
    %v2028 = vpack.c.b16 %v1996, %v1992
    %v2029 = vpack.c.b16 %v1997, %v1993
    %v2030 = vpack.c.b16 %v1998, %v1994
    %2063 = vmatpush.bf16.msra.mxu0 %v2027
    %2064 = vmatpush.bf16.msra.mxu0 %v2023
    %2065 = vmatpush.bf16.msra.mxu0 %v2019
    %2066 = vmatpush.bf16.msra.mxu0 %v2015
    %2067 = vmatpush.bf16.msra.mxu0 %v2011
    %2068 = vmatpush.bf16.msra.mxu0 %v2007
    %2069 = vmatpush.bf16.msra.mxu0 %v2003
    %2070 = vmatpush.bf16.msra.mxu0 %v1999
    %2071 = vmatmul.bf16.gmra.mxu0 0
    %v2072 = vpop.f32.mrf.mxu0
    %v2073 = vadd.f32 0.0, %v2072
    %v2074 = vpop.f32.mrf.mxu0
    %2075 = vdwg.mxu0
    %2076 = vmatpush.bf16.msra.mxu0 %v2028
    %2077 = vmatpush.bf16.msra.mxu0 %v2024
    %2078 = vmatpush.bf16.msra.mxu0 %v2020
    %2079 = vmatpush.bf16.msra.mxu0 %v2016
    %2080 = vmatpush.bf16.msra.mxu0 %v2012
    %2081 = vmatpush.bf16.msra.mxu0 %v2008
    %2082 = vmatpush.bf16.msra.mxu0 %v2004
    %2083 = vmatpush.bf16.msra.mxu0 %v2000
    %2084 = vmatmul.bf16.gmra.mxu0 0
    %v2085 = vpop.f32.mrf.mxu0
    %v2086 = vadd.f32 0.0, %v2085
    %v2087 = vpop.f32.mrf.mxu0
    %2088 = vdwg.mxu0
    %2089 = vmatpush.bf16.msra.mxu0 %v2029
    %2090 = vmatpush.bf16.msra.mxu0 %v2025
    %2091 = vmatpush.bf16.msra.mxu0 %v2021
    %2092 = vmatpush.bf16.msra.mxu0 %v2017
    %2093 = vmatpush.bf16.msra.mxu0 %v2013
    %2094 = vmatpush.bf16.msra.mxu0 %v2009
    %2095 = vmatpush.bf16.msra.mxu0 %v2005
    %2096 = vmatpush.bf16.msra.mxu0 %v2001
    %2097 = vmatmul.bf16.gmra.mxu0 0
    %v2098 = vpop.f32.mrf.mxu0
    %v2099 = vadd.f32 0.0, %v2098
    %v2100 = vpop.f32.mrf.mxu0
    %2101 = vdwg.mxu0
    %2102 = vmatpush.bf16.msra.mxu0 %v2030
    %2103 = vmatpush.bf16.msra.mxu0 %v2026
    %2104 = vmatpush.bf16.msra.mxu0 %v2022
    %2105 = vmatpush.bf16.msra.mxu0 %v2018
    %2106 = vmatpush.bf16.msra.mxu0 %v2014
    %2107 = vmatpush.bf16.msra.mxu0 %v2010
    %2108 = vmatpush.bf16.msra.mxu0 %v2006
    %2109 = vmatpush.bf16.msra.mxu0 %v2002
    %2110 = vmatmul.bf16.gmra.mxu0 0
    %v2111 = vpop.f32.mrf.mxu0
    %v2112 = vadd.f32 0.0, %v2111
    %v2113 = vpop.f32.mrf.mxu0
    %2114 = vdwg.mxu0
    %v2115 = vadd.f32 %v1899, %v2073
    %v2116 = vadd.f32 %v1900, %v2086
    %v2117 = vadd.f32 %v1901, %v2099
    %v2118 = vadd.f32 %v1902, %v2112
    %v2119 = vxor.u32 %v2115, 2147483648
    %v2120 = vmul.f32 %v2119, 1.442695
    %v2121 = vpow.pop %v2120
    %v2122 = vadd.f32 %v2121, 1.0
    %v2123 = vrcp.pop %v2122
    %v2124 = vmul.f32 %v2122, %v2123
    %v2125 = vsub.f32 1.0, %v2124
    %v2126 = vmul.f32 %v2123, %v2125
    %v2127 = vadd.f32 %v2123, %v2126
    %vm2128 = vweird.f32 %v2122
    %vm2129 = vweird.f32 %v2123
    %vm2130 = vmor %vm2128, %vm2129
    %v2131 = vsel %vm2130, %v2123, %v2127
    %v2132 = vand.u32 2147483647, %v2122
    %vm2133 = vcmp.eq.f32.partialorder %v2132, 8.507059e+37
    %v2134 = vand.u32 %v2122, 2147483648
    %v2135 = vor.u32 1.1754944e-38, %v2134
    %v2136 = vsel %vm2133, %v2135, %v2131
    %v2137 = vmul.f32 1.0, %v2136
    %v2138 = vxor.u32 %v2116, 2147483648
    %v2139 = vmul.f32 %v2138, 1.442695
    %v2140 = vpow.pop %v2139
    %v2141 = vadd.f32 %v2140, 1.0
    %v2142 = vrcp.pop %v2141
    %v2143 = vmul.f32 %v2141, %v2142
    %v2144 = vsub.f32 1.0, %v2143
    %v2145 = vmul.f32 %v2142, %v2144
    %v2146 = vadd.f32 %v2142, %v2145
    %vm2147 = vweird.f32 %v2141
    %vm2148 = vweird.f32 %v2142
    %vm2149 = vmor %vm2147, %vm2148
    %v2150 = vsel %vm2149, %v2142, %v2146
    %v2151 = vand.u32 2147483647, %v2141
    %vm2152 = vcmp.eq.f32.partialorder %v2151, 8.507059e+37
    %v2153 = vand.u32 %v2141, 2147483648
    %v2154 = vor.u32 1.1754944e-38, %v2153
    %v2155 = vsel %vm2152, %v2154, %v2150
    %v2156 = vmul.f32 1.0, %v2155
    %v2157 = vtanh.pop %v2117
    %v2158 = vxor.u32 %v2118, 2147483648
    %v2159 = vmul.f32 %v2158, 1.442695
    %v2160 = vpow.pop %v2159
    %v2161 = vadd.f32 %v2160, 1.0
    %v2162 = vrcp.pop %v2161
    %v2163 = vmul.f32 %v2161, %v2162
    %v2164 = vsub.f32 1.0, %v2163
    %v2165 = vmul.f32 %v2162, %v2164
    %v2166 = vadd.f32 %v2162, %v2165
    %vm2167 = vweird.f32 %v2161
    %vm2168 = vweird.f32 %v2162
    %vm2169 = vmor %vm2167, %vm2168
    %v2170 = vsel %vm2169, %v2162, %v2166
    %v2171 = vand.u32 2147483647, %v2161
    %vm2172 = vcmp.eq.f32.partialorder %v2171, 8.507059e+37
    %v2173 = vand.u32 %v2161, 2147483648
    %v2174 = vor.u32 1.1754944e-38, %v2173
    %v2175 = vsel %vm2172, %v2174, %v2170
    %v2176 = vmul.f32 1.0, %v2175
    %v2177 = vmul.f32 %v2156, 0.0
    %v2178 = vmul.f32 %v2137, %v2157
    %v2179 = vadd.f32 %v2177, %v2178
    %v2180 = vtanh.pop %v2179
    %v2181 = vmul.f32 %v2176, %v2180
    %v2182 = vld [vmem:[%s596] sm:$0xff]
    %v2183 = vld [vmem:[%s596 + $0x8] sm:$0xff]
    %v2184 = vld [vmem:[%s596 + $0x10] sm:$0xff]
    %v2185 = vld [vmem:[%s596 + $0x18] sm:$0xff]
    %v2186 = vpack.c.bf16 %v2181, %v2181
    %2187 = vmatpush.bf16.msra.mxu0 %v2027
    %2188 = vmatpush.bf16.msra.mxu0 %v2023
    %2189 = vmatpush.bf16.msra.mxu0 %v2019
    %2190 = vmatpush.bf16.msra.mxu0 %v2015
    %2191 = vmatpush.bf16.msra.mxu0 %v2011
    %2192 = vmatpush.bf16.msra.mxu0 %v2007
    %2193 = vmatpush.bf16.msra.mxu0 %v2003
    %2194 = vmatpush.bf16.msra.mxu0 %v1999
    %2195 = vmatmul.bf16.gmra.mxu0 %v2186
    %v2196 = vpop.f32.mrf.mxu0
    %v2197 = vadd.f32 0.0, %v2196
    %v2198 = vpop.f32.mrf.mxu0
    %2199 = vdwg.mxu0
    %2200 = vmatpush.bf16.msra.mxu0 %v2028
    %2201 = vmatpush.bf16.msra.mxu0 %v2024
    %2202 = vmatpush.bf16.msra.mxu0 %v2020
    %2203 = vmatpush.bf16.msra.mxu0 %v2016
    %2204 = vmatpush.bf16.msra.mxu0 %v2012
    %2205 = vmatpush.bf16.msra.mxu0 %v2008
    %2206 = vmatpush.bf16.msra.mxu0 %v2004
    %2207 = vmatpush.bf16.msra.mxu0 %v2000
    %2208 = vmatmul.bf16.gmra.mxu0 %v2186
    %v2209 = vpop.f32.mrf.mxu0
    %v2210 = vadd.f32 0.0, %v2209
    %v2211 = vpop.f32.mrf.mxu0
    %2212 = vdwg.mxu0
    %2213 = vmatpush.bf16.msra.mxu0 %v2029
    %2214 = vmatpush.bf16.msra.mxu0 %v2025
    %2215 = vmatpush.bf16.msra.mxu0 %v2021
    %2216 = vmatpush.bf16.msra.mxu0 %v2017
    %2217 = vmatpush.bf16.msra.mxu0 %v2013
    %2218 = vmatpush.bf16.msra.mxu0 %v2009
    %2219 = vmatpush.bf16.msra.mxu0 %v2005
    %2220 = vmatpush.bf16.msra.mxu0 %v2001
    %2221 = vmatmul.bf16.gmra.mxu0 %v2186
    %v2222 = vpop.f32.mrf.mxu0
    %v2223 = vadd.f32 0.0, %v2222
    %v2224 = vpop.f32.mrf.mxu0
    %2225 = vdwg.mxu0
    %2226 = vmatpush.bf16.msra.mxu0 %v2030
    %2227 = vmatpush.bf16.msra.mxu0 %v2026
    %2228 = vmatpush.bf16.msra.mxu0 %v2022
    %2229 = vmatpush.bf16.msra.mxu0 %v2018
    %2230 = vmatpush.bf16.msra.mxu0 %v2014
    %2231 = vmatpush.bf16.msra.mxu0 %v2010
    %2232 = vmatpush.bf16.msra.mxu0 %v2006
    %2233 = vmatpush.bf16.msra.mxu0 %v2002
    %2234 = vmatmul.bf16.gmra.mxu0 %v2186
    %v2235 = vpop.f32.mrf.mxu0
    %v2236 = vadd.f32 0.0, %v2235
    %v2237 = vpop.f32.mrf.mxu0
    %2238 = vdwg.mxu0
    %v2239 = vadd.f32 %v2182, %v2197
    %v2240 = vadd.f32 %v2183, %v2210
    %v2241 = vadd.f32 %v2184, %v2223
    %v2242 = vadd.f32 %v2185, %v2236
    %v2243 = vxor.u32 %v2239, 2147483648
    %v2244 = vmul.f32 %v2243, 1.442695
    %v2245 = vpow.pop %v2244
    %v2246 = vadd.f32 %v2245, 1.0
    %v2247 = vrcp.pop %v2246
    %v2248 = vmul.f32 %v2246, %v2247
    %v2249 = vsub.f32 1.0, %v2248
    %v2250 = vmul.f32 %v2247, %v2249
    %v2251 = vadd.f32 %v2247, %v2250
    %vm2252 = vweird.f32 %v2246
    %vm2253 = vweird.f32 %v2247
    %vm2254 = vmor %vm2252, %vm2253
    %v2255 = vsel %vm2254, %v2247, %v2251
    %v2256 = vand.u32 2147483647, %v2246
    %vm2257 = vcmp.eq.f32.partialorder %v2256, 8.507059e+37
    %v2258 = vand.u32 %v2246, 2147483648
    %v2259 = vor.u32 1.1754944e-38, %v2258
    %v2260 = vsel %vm2257, %v2259, %v2255
    %v2261 = vmul.f32 1.0, %v2260
    %v2262 = vxor.u32 %v2240, 2147483648
    %v2263 = vmul.f32 %v2262, 1.442695
    %v2264 = vpow.pop %v2263
    %v2265 = vadd.f32 %v2264, 1.0
    %v2266 = vrcp.pop %v2265
    %v2267 = vmul.f32 %v2265, %v2266
    %v2268 = vsub.f32 1.0, %v2267
    %v2269 = vmul.f32 %v2266, %v2268
    %v2270 = vadd.f32 %v2266, %v2269
    %vm2271 = vweird.f32 %v2265
    %vm2272 = vweird.f32 %v2266
    %vm2273 = vmor %vm2271, %vm2272
    %v2274 = vsel %vm2273, %v2266, %v2270
    %v2275 = vand.u32 2147483647, %v2265
    %vm2276 = vcmp.eq.f32.partialorder %v2275, 8.507059e+37
    %v2277 = vand.u32 %v2265, 2147483648
    %v2278 = vor.u32 1.1754944e-38, %v2277
    %v2279 = vsel %vm2276, %v2278, %v2274
    %v2280 = vmul.f32 1.0, %v2279
    %v2281 = vtanh.pop %v2241
    %v2282 = vxor.u32 %v2242, 2147483648
    %v2283 = vmul.f32 %v2282, 1.442695
    %v2284 = vpow.pop %v2283
    %v2285 = vadd.f32 %v2284, 1.0
    %v2286 = vrcp.pop %v2285
    %v2287 = vmul.f32 %v2285, %v2286
    %v2288 = vsub.f32 1.0, %v2287
    %v2289 = vmul.f32 %v2286, %v2288
    %v2290 = vadd.f32 %v2286, %v2289
    %vm2291 = vweird.f32 %v2285
    %vm2292 = vweird.f32 %v2286
    %vm2293 = vmor %vm2291, %vm2292
    %v2294 = vsel %vm2293, %v2286, %v2290
    %v2295 = vand.u32 2147483647, %v2285
    %vm2296 = vcmp.eq.f32.partialorder %v2295, 8.507059e+37
    %v2297 = vand.u32 %v2285, 2147483648
    %v2298 = vor.u32 1.1754944e-38, %v2297
    %v2299 = vsel %vm2296, %v2298, %v2294
    %v2300 = vmul.f32 1.0, %v2299
    %v2301 = vmul.f32 %v2280, %v2179
    %v2302 = vmul.f32 %v2261, %v2281
    %v2303 = vadd.f32 %v2301, %v2302
    %v2304 = vtanh.pop %v2303
    %v2305 = vmul.f32 %v2300, %v2304
    %v2306 = vld [vmem:[%s723] sm:$0xff]
    %v2307 = vld [vmem:[%s723 + $0x8] sm:$0xff]
    %v2308 = vld [vmem:[%s723 + $0x10] sm:$0xff]
    %v2309 = vld [vmem:[%s723 + $0x18] sm:$0xff]
    %v2310 = vpack.c.bf16 %v2305, %v2305
    %2311 = vmatpush.bf16.msra.mxu0 %v2027
    %2312 = vmatpush.bf16.msra.mxu0 %v2023
    %2313 = vmatpush.bf16.msra.mxu0 %v2019
    %2314 = vmatpush.bf16.msra.mxu0 %v2015
    %2315 = vmatpush.bf16.msra.mxu0 %v2011
    %2316 = vmatpush.bf16.msra.mxu0 %v2007
    %2317 = vmatpush.bf16.msra.mxu0 %v2003
    %2318 = vmatpush.bf16.msra.mxu0 %v1999
    %2319 = vmatmul.bf16.gmra.mxu0 %v2310
    %v2320 = vpop.f32.mrf.mxu0
    %v2321 = vadd.f32 0.0, %v2320
    %v2322 = vpop.f32.mrf.mxu0
    %2323 = vdwg.mxu0
    %2324 = vmatpush.bf16.msra.mxu0 %v2028
    %2325 = vmatpush.bf16.msra.mxu0 %v2024
    %2326 = vmatpush.bf16.msra.mxu0 %v2020
    %2327 = vmatpush.bf16.msra.mxu0 %v2016
    %2328 = vmatpush.bf16.msra.mxu0 %v2012
    %2329 = vmatpush.bf16.msra.mxu0 %v2008
    %2330 = vmatpush.bf16.msra.mxu0 %v2004
    %2331 = vmatpush.bf16.msra.mxu0 %v2000
    %2332 = vmatmul.bf16.gmra.mxu0 %v2310
    %v2333 = vpop.f32.mrf.mxu0
    %v2334 = vadd.f32 0.0, %v2333
    %v2335 = vpop.f32.mrf.mxu0
    %2336 = vdwg.mxu0
    %2337 = vmatpush.bf16.msra.mxu0 %v2029
    %2338 = vmatpush.bf16.msra.mxu0 %v2025
    %2339 = vmatpush.bf16.msra.mxu0 %v2021
    %2340 = vmatpush.bf16.msra.mxu0 %v2017
    %2341 = vmatpush.bf16.msra.mxu0 %v2013
    %2342 = vmatpush.bf16.msra.mxu0 %v2009
    %2343 = vmatpush.bf16.msra.mxu0 %v2005
    %2344 = vmatpush.bf16.msra.mxu0 %v2001
    %2345 = vmatmul.bf16.gmra.mxu0 %v2310
    %v2346 = vpop.f32.mrf.mxu0
    %v2347 = vadd.f32 0.0, %v2346
    %v2348 = vpop.f32.mrf.mxu0
    %2349 = vdwg.mxu0
    %2350 = vmatpush.bf16.msra.mxu0 %v2030
    %2351 = vmatpush.bf16.msra.mxu0 %v2026
    %2352 = vmatpush.bf16.msra.mxu0 %v2022
    %2353 = vmatpush.bf16.msra.mxu0 %v2018
    %2354 = vmatpush.bf16.msra.mxu0 %v2014
    %2355 = vmatpush.bf16.msra.mxu0 %v2010
    %2356 = vmatpush.bf16.msra.mxu0 %v2006
    %2357 = vmatpush.bf16.msra.mxu0 %v2002
    %2358 = vmatmul.bf16.gmra.mxu0 %v2310
    %v2359 = vpop.f32.mrf.mxu0
    %v2360 = vadd.f32 0.0, %v2359
    %v2361 = vpop.f32.mrf.mxu0
    %2362 = vdwg.mxu0
    %v2363 = vadd.f32 %v2306, %v2321
    %v2364 = vadd.f32 %v2307, %v2334
    %v2365 = vadd.f32 %v2308, %v2347
    %v2366 = vadd.f32 %v2309, %v2360
    %v2367 = vxor.u32 %v2363, 2147483648
    %v2368 = vmul.f32 %v2367, 1.442695
    %v2369 = vpow.pop %v2368
    %v2370 = vadd.f32 %v2369, 1.0
    %v2371 = vrcp.pop %v2370
    %v2372 = vmul.f32 %v2370, %v2371
    %v2373 = vsub.f32 1.0, %v2372
    %v2374 = vmul.f32 %v2371, %v2373
    %v2375 = vadd.f32 %v2371, %v2374
    %vm2376 = vweird.f32 %v2370
    %vm2377 = vweird.f32 %v2371
    %vm2378 = vmor %vm2376, %vm2377
    %v2379 = vsel %vm2378, %v2371, %v2375
    %v2380 = vand.u32 2147483647, %v2370
    %vm2381 = vcmp.eq.f32.partialorder %v2380, 8.507059e+37
    %v2382 = vand.u32 %v2370, 2147483648
    %v2383 = vor.u32 1.1754944e-38, %v2382
    %v2384 = vsel %vm2381, %v2383, %v2379
    %v2385 = vmul.f32 1.0, %v2384
    %v2386 = vxor.u32 %v2364, 2147483648
    %v2387 = vmul.f32 %v2386, 1.442695
    %v2388 = vpow.pop %v2387
    %v2389 = vadd.f32 %v2388, 1.0
    %v2390 = vrcp.pop %v2389
    %v2391 = vmul.f32 %v2389, %v2390
    %v2392 = vsub.f32 1.0, %v2391
    %v2393 = vmul.f32 %v2390, %v2392
    %v2394 = vadd.f32 %v2390, %v2393
    %vm2395 = vweird.f32 %v2389
    %vm2396 = vweird.f32 %v2390
    %vm2397 = vmor %vm2395, %vm2396
    %v2398 = vsel %vm2397, %v2390, %v2394
    %v2399 = vand.u32 2147483647, %v2389
    %vm2400 = vcmp.eq.f32.partialorder %v2399, 8.507059e+37
    %v2401 = vand.u32 %v2389, 2147483648
    %v2402 = vor.u32 1.1754944e-38, %v2401
    %v2403 = vsel %vm2400, %v2402, %v2398
    %v2404 = vmul.f32 1.0, %v2403
    %v2405 = vtanh.pop %v2365
    %v2406 = vxor.u32 %v2366, 2147483648
    %v2407 = vmul.f32 %v2406, 1.442695
    %v2408 = vpow.pop %v2407
    %v2409 = vadd.f32 %v2408, 1.0
    %v2410 = vrcp.pop %v2409
    %v2411 = vmul.f32 %v2409, %v2410
    %v2412 = vsub.f32 1.0, %v2411
    %v2413 = vmul.f32 %v2410, %v2412
    %v2414 = vadd.f32 %v2410, %v2413
    %vm2415 = vweird.f32 %v2409
    %vm2416 = vweird.f32 %v2410
    %vm2417 = vmor %vm2415, %vm2416
    %v2418 = vsel %vm2417, %v2410, %v2414
    %v2419 = vand.u32 2147483647, %v2409
    %vm2420 = vcmp.eq.f32.partialorder %v2419, 8.507059e+37
    %v2421 = vand.u32 %v2409, 2147483648
    %v2422 = vor.u32 1.1754944e-38, %v2421
    %v2423 = vsel %vm2420, %v2422, %v2418
    %v2424 = vmul.f32 1.0, %v2423
    %v2425 = vmul.f32 %v2404, %v2303
    %v2426 = vmul.f32 %v2385, %v2405
    %v2427 = vadd.f32 %v2425, %v2426
    %v2428 = vtanh.pop %v2427
    %v2429 = vmul.f32 %v2424, %v2428
    %v2430 = vld [vmem:[%s850] sm:$0xff]
    %v2431 = vld [vmem:[%s850 + $0x8] sm:$0xff]
    %v2432 = vld [vmem:[%s850 + $0x10] sm:$0xff]
    %v2433 = vld [vmem:[%s850 + $0x18] sm:$0xff]
    %v2434 = vpack.c.bf16 %v2429, %v2429
    %2435 = vmatpush.bf16.msra.mxu0 %v2027
    %2436 = vmatpush.bf16.msra.mxu0 %v2023
    %2437 = vmatpush.bf16.msra.mxu0 %v2019
    %2438 = vmatpush.bf16.msra.mxu0 %v2015
    %2439 = vmatpush.bf16.msra.mxu0 %v2011
    %2440 = vmatpush.bf16.msra.mxu0 %v2007
    %2441 = vmatpush.bf16.msra.mxu0 %v2003
    %2442 = vmatpush.bf16.msra.mxu0 %v1999
    %2443 = vmatmul.bf16.gmra.mxu0 %v2434
    %v2444 = vpop.f32.mrf.mxu0
    %v2445 = vadd.f32 0.0, %v2444
    %v2446 = vpop.f32.mrf.mxu0
    %2447 = vdwg.mxu0
    %2448 = vmatpush.bf16.msra.mxu0 %v2028
    %2449 = vmatpush.bf16.msra.mxu0 %v2024
    %2450 = vmatpush.bf16.msra.mxu0 %v2020
    %2451 = vmatpush.bf16.msra.mxu0 %v2016
    %2452 = vmatpush.bf16.msra.mxu0 %v2012
    %2453 = vmatpush.bf16.msra.mxu0 %v2008
    %2454 = vmatpush.bf16.msra.mxu0 %v2004
    %2455 = vmatpush.bf16.msra.mxu0 %v2000
    %2456 = vmatmul.bf16.gmra.mxu0 %v2434
    %v2457 = vpop.f32.mrf.mxu0
    %v2458 = vadd.f32 0.0, %v2457
    %v2459 = vpop.f32.mrf.mxu0
    %2460 = vdwg.mxu0
    %2461 = vmatpush.bf16.msra.mxu0 %v2029
    %2462 = vmatpush.bf16.msra.mxu0 %v2025
    %2463 = vmatpush.bf16.msra.mxu0 %v2021
    %2464 = vmatpush.bf16.msra.mxu0 %v2017
    %2465 = vmatpush.bf16.msra.mxu0 %v2013
    %2466 = vmatpush.bf16.msra.mxu0 %v2009
    %2467 = vmatpush.bf16.msra.mxu0 %v2005
    %2468 = vmatpush.bf16.msra.mxu0 %v2001
    %2469 = vmatmul.bf16.gmra.mxu0 %v2434
    %v2470 = vpop.f32.mrf.mxu0
    %v2471 = vadd.f32 0.0, %v2470
    %v2472 = vpop.f32.mrf.mxu0
    %2473 = vdwg.mxu0
    %2474 = vmatpush.bf16.msra.mxu0 %v2030
    %2475 = vmatpush.bf16.msra.mxu0 %v2026
    %2476 = vmatpush.bf16.msra.mxu0 %v2022
    %2477 = vmatpush.bf16.msra.mxu0 %v2018
    %2478 = vmatpush.bf16.msra.mxu0 %v2014
    %2479 = vmatpush.bf16.msra.mxu0 %v2010
    %2480 = vmatpush.bf16.msra.mxu0 %v2006
    %2481 = vmatpush.bf16.msra.mxu0 %v2002
    %2482 = vmatmul.bf16.gmra.mxu0 %v2434
    %v2483 = vpop.f32.mrf.mxu0
    %v2484 = vadd.f32 0.0, %v2483
    %v2485 = vpop.f32.mrf.mxu0
    %2486 = vdwg.mxu0
    %v2487 = vadd.f32 %v2430, %v2445
    %v2488 = vadd.f32 %v2431, %v2458
    %v2489 = vadd.f32 %v2432, %v2471
    %v2490 = vadd.f32 %v2433, %v2484
    %v2491 = vxor.u32 %v2487, 2147483648
    %v2492 = vmul.f32 %v2491, 1.442695
    %v2493 = vpow.pop %v2492
    %v2494 = vadd.f32 %v2493, 1.0
    %v2495 = vrcp.pop %v2494
    %v2496 = vmul.f32 %v2494, %v2495
    %v2497 = vsub.f32 1.0, %v2496
    %v2498 = vmul.f32 %v2495, %v2497
    %v2499 = vadd.f32 %v2495, %v2498
    %vm2500 = vweird.f32 %v2494
    %vm2501 = vweird.f32 %v2495
    %vm2502 = vmor %vm2500, %vm2501
    %v2503 = vsel %vm2502, %v2495, %v2499
    %v2504 = vand.u32 2147483647, %v2494
    %vm2505 = vcmp.eq.f32.partialorder %v2504, 8.507059e+37
    %v2506 = vand.u32 %v2494, 2147483648
    %v2507 = vor.u32 1.1754944e-38, %v2506
    %v2508 = vsel %vm2505, %v2507, %v2503
    %v2509 = vmul.f32 1.0, %v2508
    %v2510 = vxor.u32 %v2488, 2147483648
    %v2511 = vmul.f32 %v2510, 1.442695
    %v2512 = vpow.pop %v2511
    %v2513 = vadd.f32 %v2512, 1.0
    %v2514 = vrcp.pop %v2513
    %v2515 = vmul.f32 %v2513, %v2514
    %v2516 = vsub.f32 1.0, %v2515
    %v2517 = vmul.f32 %v2514, %v2516
    %v2518 = vadd.f32 %v2514, %v2517
    %vm2519 = vweird.f32 %v2513
    %vm2520 = vweird.f32 %v2514
    %vm2521 = vmor %vm2519, %vm2520
    %v2522 = vsel %vm2521, %v2514, %v2518
    %v2523 = vand.u32 2147483647, %v2513
    %vm2524 = vcmp.eq.f32.partialorder %v2523, 8.507059e+37
    %v2525 = vand.u32 %v2513, 2147483648
    %v2526 = vor.u32 1.1754944e-38, %v2525
    %v2527 = vsel %vm2524, %v2526, %v2522
    %v2528 = vmul.f32 1.0, %v2527
    %v2529 = vtanh.pop %v2489
    %v2530 = vxor.u32 %v2490, 2147483648
    %v2531 = vmul.f32 %v2530, 1.442695
    %v2532 = vpow.pop %v2531
    %v2533 = vadd.f32 %v2532, 1.0
    %v2534 = vrcp.pop %v2533
    %v2535 = vmul.f32 %v2533, %v2534
    %v2536 = vsub.f32 1.0, %v2535
    %v2537 = vmul.f32 %v2534, %v2536
    %v2538 = vadd.f32 %v2534, %v2537
    %vm2539 = vweird.f32 %v2533
    %vm2540 = vweird.f32 %v2534
    %vm2541 = vmor %vm2539, %vm2540
    %v2542 = vsel %vm2541, %v2534, %v2538
    %v2543 = vand.u32 2147483647, %v2533
    %vm2544 = vcmp.eq.f32.partialorder %v2543, 8.507059e+37
    %v2545 = vand.u32 %v2533, 2147483648
    %v2546 = vor.u32 1.1754944e-38, %v2545
    %v2547 = vsel %vm2544, %v2546, %v2542
    %v2548 = vmul.f32 1.0, %v2547
    %v2549 = vmul.f32 %v2528, %v2427
    %v2550 = vmul.f32 %v2509, %v2529
    %v2551 = vadd.f32 %v2549, %v2550
    %v2552 = vtanh.pop %v2551
    %v2553 = vmul.f32 %v2548, %v2552
    %v2554 = vld [vmem:[%s977] sm:$0xff]
    %v2555 = vld [vmem:[%s977 + $0x8] sm:$0xff]
    %v2556 = vld [vmem:[%s977 + $0x10] sm:$0xff]
    %v2557 = vld [vmem:[%s977 + $0x18] sm:$0xff]
    %v2558 = vpack.c.bf16 %v2553, %v2553
    %2559 = vmatpush.bf16.msra.mxu0 %v2027
    %2560 = vmatpush.bf16.msra.mxu0 %v2023
    %2561 = vmatpush.bf16.msra.mxu0 %v2019
    %2562 = vmatpush.bf16.msra.mxu0 %v2015
    %2563 = vmatpush.bf16.msra.mxu0 %v2011
    %2564 = vmatpush.bf16.msra.mxu0 %v2007
    %2565 = vmatpush.bf16.msra.mxu0 %v2003
    %2566 = vmatpush.bf16.msra.mxu0 %v1999
    %2567 = vmatmul.bf16.gmra.mxu0 %v2558
    %v2568 = vpop.f32.mrf.mxu0
    %v2569 = vadd.f32 0.0, %v2568
    %v2570 = vpop.f32.mrf.mxu0
    %2571 = vdwg.mxu0
    %2572 = vmatpush.bf16.msra.mxu0 %v2028
    %2573 = vmatpush.bf16.msra.mxu0 %v2024
    %2574 = vmatpush.bf16.msra.mxu0 %v2020
    %2575 = vmatpush.bf16.msra.mxu0 %v2016
    %2576 = vmatpush.bf16.msra.mxu0 %v2012
    %2577 = vmatpush.bf16.msra.mxu0 %v2008
    %2578 = vmatpush.bf16.msra.mxu0 %v2004
    %2579 = vmatpush.bf16.msra.mxu0 %v2000
    %2580 = vmatmul.bf16.gmra.mxu0 %v2558
    %v2581 = vpop.f32.mrf.mxu0
    %v2582 = vadd.f32 0.0, %v2581
    %v2583 = vpop.f32.mrf.mxu0
    %2584 = vdwg.mxu0
    %2585 = vmatpush.bf16.msra.mxu0 %v2029
    %2586 = vmatpush.bf16.msra.mxu0 %v2025
    %2587 = vmatpush.bf16.msra.mxu0 %v2021
    %2588 = vmatpush.bf16.msra.mxu0 %v2017
    %2589 = vmatpush.bf16.msra.mxu0 %v2013
    %2590 = vmatpush.bf16.msra.mxu0 %v2009
    %2591 = vmatpush.bf16.msra.mxu0 %v2005
    %2592 = vmatpush.bf16.msra.mxu0 %v2001
    %2593 = vmatmul.bf16.gmra.mxu0 %v2558
    %v2594 = vpop.f32.mrf.mxu0
    %v2595 = vadd.f32 0.0, %v2594
    %v2596 = vpop.f32.mrf.mxu0
    %2597 = vdwg.mxu0
    %2598 = vmatpush.bf16.msra.mxu0 %v2030
    %2599 = vmatpush.bf16.msra.mxu0 %v2026
    %2600 = vmatpush.bf16.msra.mxu0 %v2022
    %2601 = vmatpush.bf16.msra.mxu0 %v2018
    %2602 = vmatpush.bf16.msra.mxu0 %v2014
    %2603 = vmatpush.bf16.msra.mxu0 %v2010
    %2604 = vmatpush.bf16.msra.mxu0 %v2006
    %2605 = vmatpush.bf16.msra.mxu0 %v2002
    %2606 = vmatmul.bf16.gmra.mxu0 %v2558
    %v2607 = vpop.f32.mrf.mxu0
    %v2608 = vadd.f32 0.0, %v2607
    %v2609 = vpop.f32.mrf.mxu0
    %2610 = vdwg.mxu0
    %v2611 = vadd.f32 %v2554, %v2569
    %v2612 = vadd.f32 %v2555, %v2582
    %v2613 = vadd.f32 %v2556, %v2595
    %v2614 = vadd.f32 %v2557, %v2608
    %v2615 = vxor.u32 %v2611, 2147483648
    %v2616 = vmul.f32 %v2615, 1.442695
    %v2617 = vpow.pop %v2616
    %v2618 = vadd.f32 %v2617, 1.0
    %v2619 = vrcp.pop %v2618
    %v2620 = vmul.f32 %v2618, %v2619
    %v2621 = vsub.f32 1.0, %v2620
    %v2622 = vmul.f32 %v2619, %v2621
    %v2623 = vadd.f32 %v2619, %v2622
    %vm2624 = vweird.f32 %v2618
    %vm2625 = vweird.f32 %v2619
    %vm2626 = vmor %vm2624, %vm2625
    %v2627 = vsel %vm2626, %v2619, %v2623
    %v2628 = vand.u32 2147483647, %v2618
    %vm2629 = vcmp.eq.f32.partialorder %v2628, 8.507059e+37
    %v2630 = vand.u32 %v2618, 2147483648
    %v2631 = vor.u32 1.1754944e-38, %v2630
    %v2632 = vsel %vm2629, %v2631, %v2627
    %v2633 = vmul.f32 1.0, %v2632
    %v2634 = vxor.u32 %v2612, 2147483648
    %v2635 = vmul.f32 %v2634, 1.442695
    %v2636 = vpow.pop %v2635
    %v2637 = vadd.f32 %v2636, 1.0
    %v2638 = vrcp.pop %v2637
    %v2639 = vmul.f32 %v2637, %v2638
    %v2640 = vsub.f32 1.0, %v2639
    %v2641 = vmul.f32 %v2638, %v2640
    %v2642 = vadd.f32 %v2638, %v2641
    %vm2643 = vweird.f32 %v2637
    %vm2644 = vweird.f32 %v2638
    %vm2645 = vmor %vm2643, %vm2644
    %v2646 = vsel %vm2645, %v2638, %v2642
    %v2647 = vand.u32 2147483647, %v2637
    %vm2648 = vcmp.eq.f32.partialorder %v2647, 8.507059e+37
    %v2649 = vand.u32 %v2637, 2147483648
    %v2650 = vor.u32 1.1754944e-38, %v2649
    %v2651 = vsel %vm2648, %v2650, %v2646
    %v2652 = vmul.f32 1.0, %v2651
    %v2653 = vtanh.pop %v2613
    %v2654 = vxor.u32 %v2614, 2147483648
    %v2655 = vmul.f32 %v2654, 1.442695
    %v2656 = vpow.pop %v2655
    %v2657 = vadd.f32 %v2656, 1.0
    %v2658 = vrcp.pop %v2657
    %v2659 = vmul.f32 %v2657, %v2658
    %v2660 = vsub.f32 1.0, %v2659
    %v2661 = vmul.f32 %v2658, %v2660
    %v2662 = vadd.f32 %v2658, %v2661
    %vm2663 = vweird.f32 %v2657
    %vm2664 = vweird.f32 %v2658
    %vm2665 = vmor %vm2663, %vm2664
    %v2666 = vsel %vm2665, %v2658, %v2662
    %v2667 = vand.u32 2147483647, %v2657
    %vm2668 = vcmp.eq.f32.partialorder %v2667, 8.507059e+37
    %v2669 = vand.u32 %v2657, 2147483648
    %v2670 = vor.u32 1.1754944e-38, %v2669
    %v2671 = vsel %vm2668, %v2670, %v2666
    %v2672 = vmul.f32 1.0, %v2671
    %v2673 = vmul.f32 %v2652, %v2551
    %v2674 = vmul.f32 %v2633, %v2653
    %v2675 = vadd.f32 %v2673, %v2674
    %v2676 = vtanh.pop %v2675
    %v2677 = vmul.f32 %v2672, %v2676
    %v2678 = vld [vmem:[%s1104] sm:$0xff]
    %v2679 = vld [vmem:[%s1104 + $0x8] sm:$0xff]
    %v2680 = vld [vmem:[%s1104 + $0x10] sm:$0xff]
    %v2681 = vld [vmem:[%s1104 + $0x18] sm:$0xff]
    %v2682 = vpack.c.bf16 %v2677, %v2677
    %2683 = vmatpush.bf16.msra.mxu0 %v2027
    %2684 = vmatpush.bf16.msra.mxu0 %v2023
    %2685 = vmatpush.bf16.msra.mxu0 %v2019
    %2686 = vmatpush.bf16.msra.mxu0 %v2015
    %2687 = vmatpush.bf16.msra.mxu0 %v2011
    %2688 = vmatpush.bf16.msra.mxu0 %v2007
    %2689 = vmatpush.bf16.msra.mxu0 %v2003
    %2690 = vmatpush.bf16.msra.mxu0 %v1999
    %2691 = vmatmul.bf16.gmra.mxu0 %v2682
    %v2692 = vpop.f32.mrf.mxu0
    %v2693 = vadd.f32 0.0, %v2692
    %v2694 = vpop.f32.mrf.mxu0
    %2695 = vdwg.mxu0
    %2696 = vmatpush.bf16.msra.mxu0 %v2028
    %2697 = vmatpush.bf16.msra.mxu0 %v2024
    %2698 = vmatpush.bf16.msra.mxu0 %v2020
    %2699 = vmatpush.bf16.msra.mxu0 %v2016
    %2700 = vmatpush.bf16.msra.mxu0 %v2012
    %2701 = vmatpush.bf16.msra.mxu0 %v2008
    %2702 = vmatpush.bf16.msra.mxu0 %v2004
    %2703 = vmatpush.bf16.msra.mxu0 %v2000
    %2704 = vmatmul.bf16.gmra.mxu0 %v2682
    %v2705 = vpop.f32.mrf.mxu0
    %v2706 = vadd.f32 0.0, %v2705
    %v2707 = vpop.f32.mrf.mxu0
    %2708 = vdwg.mxu0
    %2709 = vmatpush.bf16.msra.mxu0 %v2029
    %2710 = vmatpush.bf16.msra.mxu0 %v2025
    %2711 = vmatpush.bf16.msra.mxu0 %v2021
    %2712 = vmatpush.bf16.msra.mxu0 %v2017
    %2713 = vmatpush.bf16.msra.mxu0 %v2013
    %2714 = vmatpush.bf16.msra.mxu0 %v2009
    %2715 = vmatpush.bf16.msra.mxu0 %v2005
    %2716 = vmatpush.bf16.msra.mxu0 %v2001
    %2717 = vmatmul.bf16.gmra.mxu0 %v2682
    %v2718 = vpop.f32.mrf.mxu0
    %v2719 = vadd.f32 0.0, %v2718
    %v2720 = vpop.f32.mrf.mxu0
    %2721 = vdwg.mxu0
    %2722 = vmatpush.bf16.msra.mxu0 %v2030
    %2723 = vmatpush.bf16.msra.mxu0 %v2026
    %2724 = vmatpush.bf16.msra.mxu0 %v2022
    %2725 = vmatpush.bf16.msra.mxu0 %v2018
    %2726 = vmatpush.bf16.msra.mxu0 %v2014
    %2727 = vmatpush.bf16.msra.mxu0 %v2010
    %2728 = vmatpush.bf16.msra.mxu0 %v2006
    %2729 = vmatpush.bf16.msra.mxu0 %v2002
    %2730 = vmatmul.bf16.gmra.mxu0 %v2682
    %v2731 = vpop.f32.mrf.mxu0
    %v2732 = vadd.f32 0.0, %v2731
    %v2733 = vpop.f32.mrf.mxu0
    %2734 = vdwg.mxu0
    %v2735 = vadd.f32 %v2678, %v2693
    %v2736 = vadd.f32 %v2679, %v2706
    %v2737 = vadd.f32 %v2680, %v2719
    %v2738 = vadd.f32 %v2681, %v2732
    %v2739 = vxor.u32 %v2735, 2147483648
    %v2740 = vmul.f32 %v2739, 1.442695
    %v2741 = vpow.pop %v2740
    %v2742 = vadd.f32 %v2741, 1.0
    %v2743 = vrcp.pop %v2742
    %v2744 = vmul.f32 %v2742, %v2743
    %v2745 = vsub.f32 1.0, %v2744
    %v2746 = vmul.f32 %v2743, %v2745
    %v2747 = vadd.f32 %v2743, %v2746
    %vm2748 = vweird.f32 %v2742
    %vm2749 = vweird.f32 %v2743
    %vm2750 = vmor %vm2748, %vm2749
    %v2751 = vsel %vm2750, %v2743, %v2747
    %v2752 = vand.u32 2147483647, %v2742
    %vm2753 = vcmp.eq.f32.partialorder %v2752, 8.507059e+37
    %v2754 = vand.u32 %v2742, 2147483648
    %v2755 = vor.u32 1.1754944e-38, %v2754
    %v2756 = vsel %vm2753, %v2755, %v2751
    %v2757 = vmul.f32 1.0, %v2756
    %v2758 = vxor.u32 %v2736, 2147483648
    %v2759 = vmul.f32 %v2758, 1.442695
    %v2760 = vpow.pop %v2759
    %v2761 = vadd.f32 %v2760, 1.0
    %v2762 = vrcp.pop %v2761
    %v2763 = vmul.f32 %v2761, %v2762
    %v2764 = vsub.f32 1.0, %v2763
    %v2765 = vmul.f32 %v2762, %v2764
    %v2766 = vadd.f32 %v2762, %v2765
    %vm2767 = vweird.f32 %v2761
    %vm2768 = vweird.f32 %v2762
    %vm2769 = vmor %vm2767, %vm2768
    %v2770 = vsel %vm2769, %v2762, %v2766
    %v2771 = vand.u32 2147483647, %v2761
    %vm2772 = vcmp.eq.f32.partialorder %v2771, 8.507059e+37
    %v2773 = vand.u32 %v2761, 2147483648
    %v2774 = vor.u32 1.1754944e-38, %v2773
    %v2775 = vsel %vm2772, %v2774, %v2770
    %v2776 = vmul.f32 1.0, %v2775
    %v2777 = vtanh.pop %v2737
    %v2778 = vxor.u32 %v2738, 2147483648
    %v2779 = vmul.f32 %v2778, 1.442695
    %v2780 = vpow.pop %v2779
    %v2781 = vadd.f32 %v2780, 1.0
    %v2782 = vrcp.pop %v2781
    %v2783 = vmul.f32 %v2781, %v2782
    %v2784 = vsub.f32 1.0, %v2783
    %v2785 = vmul.f32 %v2782, %v2784
    %v2786 = vadd.f32 %v2782, %v2785
    %vm2787 = vweird.f32 %v2781
    %vm2788 = vweird.f32 %v2782
    %vm2789 = vmor %vm2787, %vm2788
    %v2790 = vsel %vm2789, %v2782, %v2786
    %v2791 = vand.u32 2147483647, %v2781
    %vm2792 = vcmp.eq.f32.partialorder %v2791, 8.507059e+37
    %v2793 = vand.u32 %v2781, 2147483648
    %v2794 = vor.u32 1.1754944e-38, %v2793
    %v2795 = vsel %vm2792, %v2794, %v2790
    %v2796 = vmul.f32 1.0, %v2795
    %v2797 = vmul.f32 %v2776, %v2675
    %v2798 = vmul.f32 %v2757, %v2777
    %v2799 = vadd.f32 %v2797, %v2798
    %v2800 = vtanh.pop %v2799
    %v2801 = vmul.f32 %v2796, %v2800
    %v2802 = vld [vmem:[%s1231] sm:$0xff]
    %v2803 = vld [vmem:[%s1231 + $0x8] sm:$0xff]
    %v2804 = vld [vmem:[%s1231 + $0x10] sm:$0xff]
    %v2805 = vld [vmem:[%s1231 + $0x18] sm:$0xff]
    %v2806 = vpack.c.bf16 %v2801, %v2801
    %2807 = vmatpush.bf16.msra.mxu0 %v2027
    %2808 = vmatpush.bf16.msra.mxu0 %v2023
    %2809 = vmatpush.bf16.msra.mxu0 %v2019
    %2810 = vmatpush.bf16.msra.mxu0 %v2015
    %2811 = vmatpush.bf16.msra.mxu0 %v2011
    %2812 = vmatpush.bf16.msra.mxu0 %v2007
    %2813 = vmatpush.bf16.msra.mxu0 %v2003
    %2814 = vmatpush.bf16.msra.mxu0 %v1999
    %2815 = vmatmul.bf16.gmra.mxu0 %v2806
    %v2816 = vpop.f32.mrf.mxu0
    %v2817 = vadd.f32 0.0, %v2816
    %v2818 = vpop.f32.mrf.mxu0
    %2819 = vdwg.mxu0
    %2820 = vmatpush.bf16.msra.mxu0 %v2028
    %2821 = vmatpush.bf16.msra.mxu0 %v2024
    %2822 = vmatpush.bf16.msra.mxu0 %v2020
    %2823 = vmatpush.bf16.msra.mxu0 %v2016
    %2824 = vmatpush.bf16.msra.mxu0 %v2012
    %2825 = vmatpush.bf16.msra.mxu0 %v2008
    %2826 = vmatpush.bf16.msra.mxu0 %v2004
    %2827 = vmatpush.bf16.msra.mxu0 %v2000
    %2828 = vmatmul.bf16.gmra.mxu0 %v2806
    %v2829 = vpop.f32.mrf.mxu0
    %v2830 = vadd.f32 0.0, %v2829
    %v2831 = vpop.f32.mrf.mxu0
    %2832 = vdwg.mxu0
    %2833 = vmatpush.bf16.msra.mxu0 %v2029
    %2834 = vmatpush.bf16.msra.mxu0 %v2025
    %2835 = vmatpush.bf16.msra.mxu0 %v2021
    %2836 = vmatpush.bf16.msra.mxu0 %v2017
    %2837 = vmatpush.bf16.msra.mxu0 %v2013
    %2838 = vmatpush.bf16.msra.mxu0 %v2009
    %2839 = vmatpush.bf16.msra.mxu0 %v2005
    %2840 = vmatpush.bf16.msra.mxu0 %v2001
    %2841 = vmatmul.bf16.gmra.mxu0 %v2806
    %v2842 = vpop.f32.mrf.mxu0
    %v2843 = vadd.f32 0.0, %v2842
    %v2844 = vpop.f32.mrf.mxu0
    %2845 = vdwg.mxu0
    %2846 = vmatpush.bf16.msra.mxu0 %v2030
    %2847 = vmatpush.bf16.msra.mxu0 %v2026
    %2848 = vmatpush.bf16.msra.mxu0 %v2022
    %2849 = vmatpush.bf16.msra.mxu0 %v2018
    %2850 = vmatpush.bf16.msra.mxu0 %v2014
    %2851 = vmatpush.bf16.msra.mxu0 %v2010
    %2852 = vmatpush.bf16.msra.mxu0 %v2006
    %2853 = vmatpush.bf16.msra.mxu0 %v2002
    %2854 = vmatmul.bf16.gmra.mxu0 %v2806
    %v2855 = vpop.f32.mrf.mxu0
    %v2856 = vadd.f32 0.0, %v2855
    %v2857 = vpop.f32.mrf.mxu0
    %2858 = vdwg.mxu0
    %v2859 = vadd.f32 %v2802, %v2817
    %v2860 = vadd.f32 %v2803, %v2830
    %v2861 = vadd.f32 %v2804, %v2843
    %v2862 = vadd.f32 %v2805, %v2856
    %v2863 = vxor.u32 %v2859, 2147483648
    %v2864 = vmul.f32 %v2863, 1.442695
    %v2865 = vpow.pop %v2864
    %v2866 = vadd.f32 %v2865, 1.0
    %v2867 = vrcp.pop %v2866
    %v2868 = vmul.f32 %v2866, %v2867
    %v2869 = vsub.f32 1.0, %v2868
    %v2870 = vmul.f32 %v2867, %v2869
    %v2871 = vadd.f32 %v2867, %v2870
    %vm2872 = vweird.f32 %v2866
    %vm2873 = vweird.f32 %v2867
    %vm2874 = vmor %vm2872, %vm2873
    %v2875 = vsel %vm2874, %v2867, %v2871
    %v2876 = vand.u32 2147483647, %v2866
    %vm2877 = vcmp.eq.f32.partialorder %v2876, 8.507059e+37
    %v2878 = vand.u32 %v2866, 2147483648
    %v2879 = vor.u32 1.1754944e-38, %v2878
    %v2880 = vsel %vm2877, %v2879, %v2875
    %v2881 = vmul.f32 1.0, %v2880
    %v2882 = vxor.u32 %v2860, 2147483648
    %v2883 = vmul.f32 %v2882, 1.442695
    %v2884 = vpow.pop %v2883
    %v2885 = vadd.f32 %v2884, 1.0
    %v2886 = vrcp.pop %v2885
    %v2887 = vmul.f32 %v2885, %v2886
    %v2888 = vsub.f32 1.0, %v2887
    %v2889 = vmul.f32 %v2886, %v2888
    %v2890 = vadd.f32 %v2886, %v2889
    %vm2891 = vweird.f32 %v2885
    %vm2892 = vweird.f32 %v2886
    %vm2893 = vmor %vm2891, %vm2892
    %v2894 = vsel %vm2893, %v2886, %v2890
    %v2895 = vand.u32 2147483647, %v2885
    %vm2896 = vcmp.eq.f32.partialorder %v2895, 8.507059e+37
    %v2897 = vand.u32 %v2885, 2147483648
    %v2898 = vor.u32 1.1754944e-38, %v2897
    %v2899 = vsel %vm2896, %v2898, %v2894
    %v2900 = vmul.f32 1.0, %v2899
    %v2901 = vtanh.pop %v2861
    %v2902 = vxor.u32 %v2862, 2147483648
    %v2903 = vmul.f32 %v2902, 1.442695
    %v2904 = vpow.pop %v2903
    %v2905 = vadd.f32 %v2904, 1.0
    %v2906 = vrcp.pop %v2905
    %v2907 = vmul.f32 %v2905, %v2906
    %v2908 = vsub.f32 1.0, %v2907
    %v2909 = vmul.f32 %v2906, %v2908
    %v2910 = vadd.f32 %v2906, %v2909
    %vm2911 = vweird.f32 %v2905
    %vm2912 = vweird.f32 %v2906
    %vm2913 = vmor %vm2911, %vm2912
    %v2914 = vsel %vm2913, %v2906, %v2910
    %v2915 = vand.u32 2147483647, %v2905
    %vm2916 = vcmp.eq.f32.partialorder %v2915, 8.507059e+37
    %v2917 = vand.u32 %v2905, 2147483648
    %v2918 = vor.u32 1.1754944e-38, %v2917
    %v2919 = vsel %vm2916, %v2918, %v2914
    %v2920 = vmul.f32 1.0, %v2919
    %v2921 = vmul.f32 %v2900, %v2799
    %v2922 = vmul.f32 %v2881, %v2901
    %v2923 = vadd.f32 %v2921, %v2922
    %v2924 = vtanh.pop %v2923
    %v2925 = vmul.f32 %v2920, %v2924
    %v2926 = vld [vmem:[%s1358] sm:$0xff]
    %v2927 = vld [vmem:[%s1358 + $0x8] sm:$0xff]
    %v2928 = vld [vmem:[%s1358 + $0x10] sm:$0xff]
    %v2929 = vld [vmem:[%s1358 + $0x18] sm:$0xff]
    %v2930 = vpack.c.bf16 %v2925, %v2925
    %2931 = vmatpush.bf16.msra.mxu0 %v2027
    %2932 = vmatpush.bf16.msra.mxu0 %v2023
    %2933 = vmatpush.bf16.msra.mxu0 %v2019
    %2934 = vmatpush.bf16.msra.mxu0 %v2015
    %2935 = vmatpush.bf16.msra.mxu0 %v2011
    %2936 = vmatpush.bf16.msra.mxu0 %v2007
    %2937 = vmatpush.bf16.msra.mxu0 %v2003
    %2938 = vmatpush.bf16.msra.mxu0 %v1999
    %2939 = vmatmul.bf16.gmra.mxu0 %v2930
    %v2940 = vpop.f32.mrf.mxu0
    %v2941 = vadd.f32 0.0, %v2940
    %v2942 = vpop.f32.mrf.mxu0
    %2943 = vdwg.mxu0
    %2944 = vmatpush.bf16.msra.mxu0 %v2028
    %2945 = vmatpush.bf16.msra.mxu0 %v2024
    %2946 = vmatpush.bf16.msra.mxu0 %v2020
    %2947 = vmatpush.bf16.msra.mxu0 %v2016
    %2948 = vmatpush.bf16.msra.mxu0 %v2012
    %2949 = vmatpush.bf16.msra.mxu0 %v2008
    %2950 = vmatpush.bf16.msra.mxu0 %v2004
    %2951 = vmatpush.bf16.msra.mxu0 %v2000
    %2952 = vmatmul.bf16.gmra.mxu0 %v2930
    %v2953 = vpop.f32.mrf.mxu0
    %v2954 = vadd.f32 0.0, %v2953
    %v2955 = vpop.f32.mrf.mxu0
    %2956 = vdwg.mxu0
    %2957 = vmatpush.bf16.msra.mxu0 %v2029
    %2958 = vmatpush.bf16.msra.mxu0 %v2025
    %2959 = vmatpush.bf16.msra.mxu0 %v2021
    %2960 = vmatpush.bf16.msra.mxu0 %v2017
    %2961 = vmatpush.bf16.msra.mxu0 %v2013
    %2962 = vmatpush.bf16.msra.mxu0 %v2009
    %2963 = vmatpush.bf16.msra.mxu0 %v2005
    %2964 = vmatpush.bf16.msra.mxu0 %v2001
    %2965 = vmatmul.bf16.gmra.mxu0 %v2930
    %v2966 = vpop.f32.mrf.mxu0
    %v2967 = vadd.f32 0.0, %v2966
    %v2968 = vpop.f32.mrf.mxu0
    %2969 = vdwg.mxu0
    %2970 = vmatpush.bf16.msra.mxu0 %v2030
    %2971 = vmatpush.bf16.msra.mxu0 %v2026
    %2972 = vmatpush.bf16.msra.mxu0 %v2022
    %2973 = vmatpush.bf16.msra.mxu0 %v2018
    %2974 = vmatpush.bf16.msra.mxu0 %v2014
    %2975 = vmatpush.bf16.msra.mxu0 %v2010
    %2976 = vmatpush.bf16.msra.mxu0 %v2006
    %2977 = vmatpush.bf16.msra.mxu0 %v2002
    %2978 = vmatmul.bf16.gmra.mxu0 %v2930
    %v2979 = vpop.f32.mrf.mxu0
    %v2980 = vadd.f32 0.0, %v2979
    %v2981 = vpop.f32.mrf.mxu0
    %2982 = vdwg.mxu0
    %v2983 = vadd.f32 %v2926, %v2941
    %v2984 = vadd.f32 %v2927, %v2954
    %v2985 = vadd.f32 %v2928, %v2967
    %v2986 = vadd.f32 %v2929, %v2980
    %v2987 = vxor.u32 %v2983, 2147483648
    %v2988 = vmul.f32 %v2987, 1.442695
    %v2989 = vpow.pop %v2988
    %v2990 = vadd.f32 %v2989, 1.0
    %v2991 = vrcp.pop %v2990
    %v2992 = vmul.f32 %v2990, %v2991
    %v2993 = vsub.f32 1.0, %v2992
    %v2994 = vmul.f32 %v2991, %v2993
    %v2995 = vadd.f32 %v2991, %v2994
    %vm2996 = vweird.f32 %v2990
    %vm2997 = vweird.f32 %v2991
    %vm2998 = vmor %vm2996, %vm2997
    %v2999 = vsel %vm2998, %v2991, %v2995
    %v3000 = vand.u32 2147483647, %v2990
    %vm3001 = vcmp.eq.f32.partialorder %v3000, 8.507059e+37
    %v3002 = vand.u32 %v2990, 2147483648
    %v3003 = vor.u32 1.1754944e-38, %v3002
    %v3004 = vsel %vm3001, %v3003, %v2999
    %v3005 = vmul.f32 1.0, %v3004
    %v3006 = vxor.u32 %v2984, 2147483648
    %v3007 = vmul.f32 %v3006, 1.442695
    %v3008 = vpow.pop %v3007
    %v3009 = vadd.f32 %v3008, 1.0
    %v3010 = vrcp.pop %v3009
    %v3011 = vmul.f32 %v3009, %v3010
    %v3012 = vsub.f32 1.0, %v3011
    %v3013 = vmul.f32 %v3010, %v3012
    %v3014 = vadd.f32 %v3010, %v3013
    %vm3015 = vweird.f32 %v3009
    %vm3016 = vweird.f32 %v3010
    %vm3017 = vmor %vm3015, %vm3016
    %v3018 = vsel %vm3017, %v3010, %v3014
    %v3019 = vand.u32 2147483647, %v3009
    %vm3020 = vcmp.eq.f32.partialorder %v3019, 8.507059e+37
    %v3021 = vand.u32 %v3009, 2147483648
    %v3022 = vor.u32 1.1754944e-38, %v3021
    %v3023 = vsel %vm3020, %v3022, %v3018
    %v3024 = vmul.f32 1.0, %v3023
    %v3025 = vtanh.pop %v2985
    %v3026 = vxor.u32 %v2986, 2147483648
    %v3027 = vmul.f32 %v3026, 1.442695
    %v3028 = vpow.pop %v3027
    %v3029 = vadd.f32 %v3028, 1.0
    %v3030 = vrcp.pop %v3029
    %v3031 = vmul.f32 %v3029, %v3030
    %v3032 = vsub.f32 1.0, %v3031
    %v3033 = vmul.f32 %v3030, %v3032
    %v3034 = vadd.f32 %v3030, %v3033
    %vm3035 = vweird.f32 %v3029
    %vm3036 = vweird.f32 %v3030
    %vm3037 = vmor %vm3035, %vm3036
    %v3038 = vsel %vm3037, %v3030, %v3034
    %v3039 = vand.u32 2147483647, %v3029
    %vm3040 = vcmp.eq.f32.partialorder %v3039, 8.507059e+37
    %v3041 = vand.u32 %v3029, 2147483648
    %v3042 = vor.u32 1.1754944e-38, %v3041
    %v3043 = vsel %vm3040, %v3042, %v3038
    %v3044 = vmul.f32 1.0, %v3043
    %v3045 = vmul.f32 %v3024, %v2923
    %v3046 = vmul.f32 %v3005, %v3025
    %v3047 = vadd.f32 %v3045, %v3046
    %v3048 = vtanh.pop %v3047
    %v3049 = vmul.f32 %v3044, %v3048
    %v3050 = vpack.c.bf16 %v3049, %v3049
    %v3051 = vld [vmem:[%s7] sm:$0xf]
    %v3052 = vld [vmem:[%s7 + $0x4] sm:$0xf]
    %v3053 = vld [vmem:[%s7 + $0x8] sm:$0xf]
    %v3054 = vld [vmem:[%s7 + $0xc] sm:$0xf]
    %v3055 = vld [vmem:[%s7 + $0x10] sm:$0xf]
    %v3056 = vld [vmem:[%s7 + $0x14] sm:$0xf]
    %v3057 = vld [vmem:[%s7 + $0x18] sm:$0xf]
    %v3058 = vld [vmem:[%s7 + $0x1c] sm:$0xf]
    %v3059 = vld [vmem:[%s7 + $0x20] sm:$0xf]
    %v3060 = vld [vmem:[%s7 + $0x24] sm:$0xf]
    %v3061 = vld [vmem:[%s7 + $0x28] sm:$0xf]
    %v3062 = vld [vmem:[%s7 + $0x2c] sm:$0xf]
    %v3063 = vld [vmem:[%s7 + $0x30] sm:$0xf]
    %v3064 = vld [vmem:[%s7 + $0x34] sm:$0xf]
    %v3065 = vld [vmem:[%s7 + $0x38] sm:$0xf]
    %v3066 = vld [vmem:[%s7 + $0x3c] sm:$0xf]
    %v3067 = vld [vmem:[%s8] sm:$0x1]
    %v3069 = vperm.slane %v3067, 0
    %v3087 = vunpack.c.l.b16 %v3051
    %v3088 = vunpack.c.l.b16 %v3052
    %v3089 = vunpack.c.l.b16 %v3053
    %v3090 = vunpack.c.l.b16 %v3054
    %v3091 = vunpack.c.l.b16 %v3055
    %v3092 = vunpack.c.l.b16 %v3056
    %v3093 = vunpack.c.l.b16 %v3057
    %v3094 = vunpack.c.l.b16 %v3058
    %v3095 = vunpack.c.l.b16 %v3059
    %v3096 = vunpack.c.l.b16 %v3060
    %v3097 = vunpack.c.l.b16 %v3061
    %v3098 = vunpack.c.l.b16 %v3062
    %v3099 = vunpack.c.l.b16 %v3063
    %v3100 = vunpack.c.l.b16 %v3064
    %v3101 = vunpack.c.l.b16 %v3065
    %v3102 = vunpack.c.l.b16 %v3066
    %v3103 = vpack.c.b16 %v3088, %v3087
    %v3104 = vpack.c.b16 %v3090, %v3089
    %v3105 = vpack.c.b16 %v3092, %v3091
    %v3106 = vpack.c.b16 %v3094, %v3093
    %v3107 = vpack.c.b16 %v3096, %v3095
    %v3108 = vpack.c.b16 %v3098, %v3097
    %v3109 = vpack.c.b16 %v3100, %v3099
    %v3110 = vpack.c.b16 %v3102, %v3101
    %3119 = vmatpush.bf16.msra.mxu0 %v3110
    %3120 = vmatpush.bf16.msra.mxu0 %v3109
    %3121 = vmatpush.bf16.msra.mxu0 %v3108
    %3122 = vmatpush.bf16.msra.mxu0 %v3107
    %3123 = vmatpush.bf16.msra.mxu0 %v3106
    %3124 = vmatpush.bf16.msra.mxu0 %v3105
    %3125 = vmatpush.bf16.msra.mxu0 %v3104
    %3126 = vmatpush.bf16.msra.mxu0 %v3103
    %3127 = vmatmul.bf16.gmra.mxu0 %v3050
    %v3128 = vpop.f32.mrf.mxu0
    %v3129 = vadd.f32 %v3069, %v3128
    %v3130 = vpop.f32.mrf.mxu0
    %3131 = vdwg.mxu0
    %3132 = vst [vmem:[%s9] sm:$0xff] %v3129
    // Predicated region
    $region50: #{lstm_model_forward.1} parent=1 // pred_check
      _
    $region51: #{lstm_model_forward.1} parent=1 // pred_check_branch
      %3134 = sbr.rel (0) target = $region53
    $region52: #{lstm_model_forward.1} parent=1 // pred_region
      _
    $region53: #{lstm_model_forward.1} parent=1 // pred_fallthru
      _
    // Predicated region
    $region54: #{lstm_model_forward.1} parent=1 // pred_check
      _
    $region55: #{lstm_model_forward.1} parent=1 // pred_check_branch
      %3136 = sbr.rel (0) target = $region57
    $region56: #{lstm_model_forward.1} parent=1 // pred_region
      _
    $region57: #{lstm_model_forward.1} parent=1 // pred_fallthru
      _
    %3137 = vsyncpa [#allocation5], 1
    %3138 = vsyncpa [#allocation7], 1

</llo_original>
